<compile_context>
chip_gen: v7x
topology: tpu7x:2x2x1
jax: 0.10.0
libtpu: 0.0.40
codegen_flags: <defaults>
</compile_context>

<pallas_src>
import numpy as np
import jax
import jax.numpy as jnp
from jax.experimental import pallas as pl
from jax.experimental.pallas import tpu as pltpu

BN_EPS = 1e-5
SQRT_HALF = float(np.sqrt(np.float32(0.5)))   # torch.sqrt(FloatTensor([0.5]))
VIRTUAL_BATCH_SIZE = 128                      # GBN default


# --------------------------------------------------------------------------
# in-kernel helpers
# --------------------------------------------------------------------------
def _bn_train_onepass(y):
    """BatchNorm1d (training mode, gamma=1, beta=0), single pass over y.

    var = E[y^2] - E[y]^2 -> the two cross-sublane reductions are independent XLU
    pushes and the (y - mean) broadcast/subtract over the [N, 2*out] tile happens once.
    """
    m = jnp.mean(y, axis=0, keepdims=True)
    m2 = jnp.mean(y * y, axis=0, keepdims=True)
    var = jnp.maximum(m2 - m * m, 0.0)
    return (y - m) * jax.lax.rsqrt(var + BN_EPS)


def _glu_layer(x_f32, w_bf16, out_dim):
    """GLU_Layer: bias-free fc (weight pre-transposed [in, 2*out], bf16) -> GBN -> gate.

    Matmul operands are bf16 (single-pass MXU), accumulation f32; everything after the
    matmul is f32.  The lane split at out_dim=128 is on a vreg boundary (free).
    """
    y = jnp.dot(x_f32.astype(jnp.bfloat16), w_bf16,
                preferred_element_type=jnp.float32)          # [N, 2*out_dim], MXU
    y = _bn_train_onepass(y)
    return y[:, :out_dim] * jax.nn.sigmoid(y[:, out_dim:])


# --------------------------------------------------------------------------
# fused FeatTransformer kernel
#   grid = (num_row_chunks,), each step processes one GBN chunk of rows.
#   x / out: auto-pipelined row tiles.  ws0: auto-DMA'd, constant index_map (resident).
#   ws1/wi0/wi1: HBM refs (pl.ANY) manually DMA'd into resident VMEM scratch, started
#   at entry of the first grid step and waited right before each layer needs them.
# --------------------------------------------------------------------------
def feat_transformer_kernel(x_ref, ws0_ref, ws1_hbm, wi0_hbm, wi1_hbm,   # inputs
                            o_ref,                                        # output
                            ws1_vmem, wi0_vmem, wi1_vmem, sem):           # scratch
    i = pl.program_id(0)
    out_dim = o_ref.shape[1]
    scale = jnp.float32(SQRT_HALF)

    ws1_cp = pltpu.make_async_copy(ws1_hbm, ws1_vmem, sem.at[0])
    wi0_cp = pltpu.make_async_copy(wi0_hbm, wi0_vmem, sem.at[1])
    wi1_cp = pltpu.make_async_copy(wi1_hbm, wi1_vmem, sem.at[2])

    # Fetch the later-layer weights once; they stay resident for all grid steps.
    @pl.when(i == 0)
    def _():
        ws1_cp.start()
        wi0_cp.start()
        wi1_cp.start()

    # ---- shared GLU block (first=True): layer 0 no residual, layer 1 residual ----
    h = _glu_layer(x_ref[...], ws0_ref[...], out_dim)

    @pl.when(i == 0)
    def _():
        ws1_cp.wait()          # hidden behind layer 0's matmul + BN + gate
    h = (h + _glu_layer(h, ws1_vmem[...], out_dim)) * scale

    # ---- independent GLU block (first=False): both layers residual ----
    @pl.when(i == 0)
    def _():
        wi0_cp.wait()
    h = (h + _glu_layer(h, wi0_vmem[...], out_dim)) * scale

    @pl.when(i == 0)
    def _():
        wi1_cp.wait()
    h = (h + _glu_layer(h, wi1_vmem[...], out_dim)) * scale

    o_ref[...] = h.astype(o_ref.dtype)


def feat_transformer(x, ws0, ws1, wi0, wi1, *, virtual_batch_size=VIRTUAL_BATCH_SIZE):
    n, in_dim = x.shape
    out_dim = ws0.shape[1] // 2
    two_out = 2 * out_dim

    # torch.chunk(ceil(n/vbs)) chunking; only the equal-chunk case is supported.
    n_chunks = int(np.ceil(n / virtual_batch_size))
    chunk = int(np.ceil(n / n_chunks))
    assert n % chunk == 0, "ragged GBN chunks not supported"  # TODO(synk): ragged last chunk
    assert n_chunks == 1 or chunk % 8 == 0, "row chunk must be sublane-aligned when tiled"
    grid = (n // chunk,)

    # bf16 weights: halves the weight DMA (the only meaningful HBM traffic) and feeds
    # the MXU single-pass.  Cast happens outside the kernel, so HBM holds bf16.
    ws0 = ws0.astype(jnp.bfloat16)
    ws1 = ws1.astype(jnp.bfloat16)
    wi0 = wi0.astype(jnp.bfloat16)
    wi1 = wi1.astype(jnp.bfloat16)

    return pl.pallas_call(
        feat_transformer_kernel,
        out_shape=jax.ShapeDtypeStruct((n, out_dim), jnp.float32),
        grid_spec=pltpu.PrefetchScalarGridSpec(
            num_scalar_prefetch=0,
            grid=grid,
            in_specs=[
                pl.BlockSpec((chunk, in_dim), lambda i: (i, 0)),       # x row tiles
                pl.BlockSpec((in_dim, two_out), lambda i: (0, 0)),     # ws0 resident
                pl.BlockSpec(memory_space=pl.ANY),                     # ws1 (manual DMA)
                pl.BlockSpec(memory_space=pl.ANY),                     # wi0 (manual DMA)
                pl.BlockSpec(memory_space=pl.ANY),                     # wi1 (manual DMA)
            ],
            out_specs=pl.BlockSpec((chunk, out_dim), lambda i: (i, 0)),
            scratch_shapes=[
                pltpu.VMEM((out_dim, two_out), jnp.bfloat16),          # ws1
                pltpu.VMEM((out_dim, two_out), jnp.bfloat16),          # wi0
                pltpu.VMEM((out_dim, two_out), jnp.bfloat16),          # wi1
                pltpu.SemaphoreType.DMA((3,)),
            ],
        ),
        compiler_params=pltpu.CompilerParams(
            # "arbitrary": the program_id==0 weight prefetch requires a single core
            # walking the whole row axis (see TODO above for the v7x parallel variant).
            dimension_semantics=("arbitrary",),
            vmem_limit_bytes=32 * 1024 * 1024,
        ),
    )(x, ws0, ws1, wi0, wi1)


# --------------------------------------------------------------------------
# pure-JAX reference (same math, no Pallas) for correctness checks.
#   matmul_dtype=jnp.bfloat16 -> precision-matched to the kernel's MXU path.
#   matmul_dtype=jnp.float32  -> full-precision module semantics.
# --------------------------------------------------------------------------
def _bn_ref(y):
    mean = jnp.mean(y, axis=0, keepdims=True)
    var = jnp.mean(jnp.square(y - mean), axis=0, keepdims=True)
    return (y - mean) * jax.lax.rsqrt(var + BN_EPS)


def _gbn_ref(y, vbs):
    n = y.shape[0]
    n_chunks = int(np.ceil(n / vbs))
    chunk = int(np.ceil(n / n_chunks))
    parts = [_bn_ref(y[c * chunk:(c + 1) * chunk]) for c in range(n_chunks)]
    return jnp.concatenate(parts, axis=0)


def feat_transformer_ref(x, ws0, ws1, wi0, wi1, *, matmul_dtype=jnp.float32,
                         virtual_batch_size=VIRTUAL_BATCH_SIZE):
    out_dim = ws0.shape[1] // 2

    def glu(v, w):
        y = jnp.dot(v.astype(matmul_dtype), w.astype(matmul_dtype),
                    preferred_element_type=jnp.float32,
                    precision=jax.lax.Precision.HIGHEST)
        y = _gbn_ref(y, virtual_batch_size)
        return y[:, :out_dim] * jax.nn.sigmoid(y[:, out_dim:])

    s = jnp.float32(SQRT_HALF)
    h = glu(x, ws0)
    h = (h + glu(h, ws1)) * s
    h = (h + glu(h, wi0)) * s
    h = (h + glu(h, wi1)) * s
    return h


# --------------------------------------------------------------------------
if __name__ == "__main__":
    # input_dim=16 features, output_dim = n_d + n_a = 128 (lane-dense output),
    # batch=256 rows -> two 128-row GBN chunks, exercising the row grid, the resident
    # weights, and the program_id==0 DMA prefetch path.
    batch, input_dim, output_dim = 256, 16, 128

    key = jax.random.PRNGKey(0)
    kx, k0, k1, k2, k3 = jax.random.split(key, 5)

    def init_w(k, fan_in, fan_out2):
        # xavier_normal-style init (initialize_glu gain), stored PRE-TRANSPOSED as
        # [in_features, out_features] so the kernel contracts x @ w directly.
        gain = np.sqrt((fan_in + fan_out2) / np.sqrt(fan_in))
        std = gain * np.sqrt(2.0 / (fan_in + fan_out2))
        return (std * jax.random.normal(k, (fan_in, fan_out2))).astype(jnp.float32)

    x = jax.random.normal(kx, (batch, input_dim), jnp.float32)
    ws0 = init_w(k0, input_dim, 2 * output_dim)    # shared fc 0: Linear(in, 2*out)
    ws1 = init_w(k1, output_dim, 2 * output_dim)   # shared fc 1: Linear(out, 2*out)
    wi0 = init_w(k2, output_dim, 2 * output_dim)   # independent fc 0
    wi1 = init_w(k3, output_dim, 2 * output_dim)   # independent fc 1

    out = jax.jit(feat_transformer)(x, ws0, ws1, wi0, wi1)
    jax.block_until_ready(out)
    assert out.shape == (batch, output_dim)

    # Tight check against a precision-matched reference (bf16 matmul operands, f32
    # accumulation/elementwise) -- validates tiling, GBN chunking, fusion, one-pass BN.
    ref_bf16 = feat_transformer_ref(x, ws0, ws1, wi0, wi1, matmul_dtype=jnp.bfloat16)
    np.testing.assert_allclose(np.asarray(out), np.asarray(ref_bf16),
                               rtol=2e-2, atol=2e-2)

    # Loose sanity check against full f32 module semantics: the remaining gap is purely
    # the bf16 weight/activation quantization at the matmuls.
    ref_f32 = feat_transformer_ref(x, ws0, ws1, wi0, wi1, matmul_dtype=jnp.float32)
    np.testing.assert_allclose(np.asarray(out), np.asarray(ref_f32),
                               rtol=1e-1, atol=1e-1)

    print("KERNEL_OK")
</pallas_src>

<mosaic_0001>
module attributes {stable_mosaic.version = 11 : i64} {
  func.func @feat_transformer_kernel(%arg0: i32, %arg1: memref<128x16xf32, #tpu.memory_space<vmem>>, %arg2: memref<16x256xbf16, #tpu.memory_space<vmem>>, %arg3: memref<128x256xbf16, #tpu.memory_space<any>>, %arg4: memref<128x256xbf16, #tpu.memory_space<any>>, %arg5: memref<128x256xbf16, #tpu.memory_space<any>>, %arg6: memref<128x128xf32, #tpu.memory_space<vmem>>, %arg7: memref<128x256xbf16, #tpu.memory_space<vmem>>, %arg8: memref<128x256xbf16, #tpu.memory_space<vmem>>, %arg9: memref<128x256xbf16, #tpu.memory_space<vmem>>, %arg10: memref<3x!tpu.dma_semaphore, #tpu.memory_space<semaphore_mem>>) attributes {dimension_semantics = [#tpu.dimension_semantics<arbitrary>], iteration_bounds = array<i64: 2>, scalar_prefetch = 0 : i64, scratch_operands = 4 : i64, tpu.core_type = #tpu.core_type<tc>, window_params = [{transform_indices = @transform_0, window_bounds = array<i64: 128, 16>}, {pipeline_mode = #tpu.pipeline_mode<synchronous>, transform_indices = @transform_1, window_bounds = array<i64: 16, 256>}, {}, {}, {}, {transform_indices = @transform_5, window_bounds = array<i64: 128, 128>}]} {
    %c0_i32 = arith.constant 0 : i32
    %0 = arith.cmpi eq, %arg0, %c0_i32 : i32
    %1 = arith.extui %0 : i1 to i32
    %c0_i32_0 = arith.constant 0 : i32
    %c1_i32 = arith.constant 1 : i32
    %c2_i32 = arith.constant 2 : i32
    %c0_i32_1 = arith.constant 0 : i32
    %2 = arith.cmpi ne, %1, %c0_i32_1 : i32
    scf.if %2 {
      %147 = tpu.memref_slice %arg10[%c0_i32_0] : memref<3x!tpu.dma_semaphore, #tpu.memory_space<semaphore_mem>> -> memref<1x!tpu.dma_semaphore, #tpu.memory_space<semaphore_mem>>
      %148 = tpu.memref_squeeze %147 : memref<1x!tpu.dma_semaphore, #tpu.memory_space<semaphore_mem>> -> memref<!tpu.dma_semaphore, #tpu.memory_space<semaphore_mem>>
      tpu.enqueue_dma source(%arg3 : memref<128x256xbf16, #tpu.memory_space<any>>) target(%arg7 : memref<128x256xbf16, #tpu.memory_space<vmem>>) target_semaphore(%148 : memref<!tpu.dma_semaphore, #tpu.memory_space<semaphore_mem>>)
      %149 = tpu.memref_slice %arg10[%c1_i32] : memref<3x!tpu.dma_semaphore, #tpu.memory_space<semaphore_mem>> -> memref<1x!tpu.dma_semaphore, #tpu.memory_space<semaphore_mem>>
      %150 = tpu.memref_squeeze %149 : memref<1x!tpu.dma_semaphore, #tpu.memory_space<semaphore_mem>> -> memref<!tpu.dma_semaphore, #tpu.memory_space<semaphore_mem>>
      tpu.enqueue_dma source(%arg4 : memref<128x256xbf16, #tpu.memory_space<any>>) target(%arg8 : memref<128x256xbf16, #tpu.memory_space<vmem>>) target_semaphore(%150 : memref<!tpu.dma_semaphore, #tpu.memory_space<semaphore_mem>>)
      %151 = tpu.memref_slice %arg10[%c2_i32] : memref<3x!tpu.dma_semaphore, #tpu.memory_space<semaphore_mem>> -> memref<1x!tpu.dma_semaphore, #tpu.memory_space<semaphore_mem>>
      %152 = tpu.memref_squeeze %151 : memref<1x!tpu.dma_semaphore, #tpu.memory_space<semaphore_mem>> -> memref<!tpu.dma_semaphore, #tpu.memory_space<semaphore_mem>>
      tpu.enqueue_dma source(%arg5 : memref<128x256xbf16, #tpu.memory_space<any>>) target(%arg9 : memref<128x256xbf16, #tpu.memory_space<vmem>>) target_semaphore(%152 : memref<!tpu.dma_semaphore, #tpu.memory_space<semaphore_mem>>)
    } else {
    }
    %c0 = arith.constant 0 : index
    %c0_2 = arith.constant 0 : index
    %3 = vector.load %arg1[%c0, %c0_2] : memref<128x16xf32, #tpu.memory_space<vmem>>, vector<128x16xf32>
    %c0_3 = arith.constant 0 : index
    %c0_4 = arith.constant 0 : index
    %4 = vector.load %arg2[%c0_3, %c0_4] : memref<16x256xbf16, #tpu.memory_space<vmem>>, vector<16x256xbf16>
    %5 = arith.truncf %3 : vector<128x16xf32> to vector<128x16xbf16>
    %cst = arith.constant dense<0.000000e+00> : vector<128x256xf32>
    %6 = tpu.matmul %5, %4, %cst {dimension_numbers = #tpu.dot_dimension_numbers<[1], [0], [0], [1], [0, 0, 1, 1], [], []>} : vector<128x16xbf16>, vector<16x256xbf16>, vector<128x256xf32> -> vector<128x256xf32>
    %cst_5 = arith.constant dense<0.000000e+00> : vector<256xf32>
    %7 = vector.multi_reduction <add>, %6, %cst_5 [0] : vector<128x256xf32> to vector<256xf32>
    %8 = vector.shape_cast %7 : vector<256xf32> to vector<1x256xf32>
    %cst_6 = arith.constant 1.280000e+02 : f32
    %9 = vector.broadcast %cst_6 : f32 to vector<1x256xf32>
    %10 = arith.divf %8, %9 : vector<1x256xf32>
    %11 = arith.mulf %6, %6 : vector<128x256xf32>
    %cst_7 = arith.constant dense<0.000000e+00> : vector<256xf32>
    %12 = vector.multi_reduction <add>, %11, %cst_7 [0] : vector<128x256xf32> to vector<256xf32>
    %13 = vector.shape_cast %12 : vector<256xf32> to vector<1x256xf32>
    %cst_8 = arith.constant 1.280000e+02 : f32
    %14 = vector.broadcast %cst_8 : f32 to vector<1x256xf32>
    %15 = arith.divf %13, %14 : vector<1x256xf32>
    %16 = arith.mulf %10, %10 : vector<1x256xf32>
    %17 = arith.subf %15, %16 : vector<1x256xf32>
    %cst_9 = arith.constant 0.000000e+00 : f32
    %18 = vector.broadcast %cst_9 : f32 to vector<1x256xf32>
    %19 = arith.maximumf %17, %18 : vector<1x256xf32>
    %20 = vector.broadcast %10 : vector<1x256xf32> to vector<128x256xf32>
    %21 = arith.subf %6, %20 : vector<128x256xf32>
    %cst_10 = arith.constant 9.99999974E-6 : f32
    %22 = vector.broadcast %cst_10 : f32 to vector<1x256xf32>
    %23 = arith.addf %19, %22 : vector<1x256xf32>
    %24 = math.rsqrt %23 : vector<1x256xf32>
    %25 = vector.broadcast %24 : vector<1x256xf32> to vector<128x256xf32>
    %26 = arith.mulf %21, %25 : vector<128x256xf32>
    %27 = vector.extract_strided_slice %26 {offsets = [0, 0], sizes = [128, 128], strides = [1, 1]} : vector<128x256xf32> to vector<128x128xf32>
    %28 = vector.extract_strided_slice %26 {offsets = [0, 128], sizes = [128, 128], strides = [1, 1]} : vector<128x256xf32> to vector<128x128xf32>
    %29 = arith.negf %28 : vector<128x128xf32>
    %30 = math.exp %29 : vector<128x128xf32>
    %cst_11 = arith.constant 1.000000e+00 : f32
    %31 = vector.broadcast %cst_11 : f32 to vector<128x128xf32>
    %32 = arith.addf %31, %30 : vector<128x128xf32>
    %33 = arith.divf %31, %32 : vector<128x128xf32>
    %34 = arith.mulf %27, %33 : vector<128x128xf32>
    %c0_i32_12 = arith.constant 0 : i32
    %35 = arith.cmpi eq, %arg0, %c0_i32_12 : i32
    %36 = arith.extui %35 : i1 to i32
    %c0_i32_13 = arith.constant 0 : i32
    %c0_i32_14 = arith.constant 0 : i32
    %37 = arith.cmpi ne, %36, %c0_i32_14 : i32
    scf.if %37 {
      %147 = tpu.memref_slice %arg10[%c0_i32_13] : memref<3x!tpu.dma_semaphore, #tpu.memory_space<semaphore_mem>> -> memref<1x!tpu.dma_semaphore, #tpu.memory_space<semaphore_mem>>
      %148 = tpu.memref_squeeze %147 : memref<1x!tpu.dma_semaphore, #tpu.memory_space<semaphore_mem>> -> memref<!tpu.dma_semaphore, #tpu.memory_space<semaphore_mem>>
      tpu.wait_dma2 semaphore(%148 : memref<!tpu.dma_semaphore, #tpu.memory_space<semaphore_mem>>) src(%arg3 : memref<128x256xbf16, #tpu.memory_space<any>>) dst(%arg7 : memref<128x256xbf16, #tpu.memory_space<vmem>>)
    } else {
    }
    %c0_15 = arith.constant 0 : index
    %c0_16 = arith.constant 0 : index
    %38 = vector.load %arg7[%c0_15, %c0_16] : memref<128x256xbf16, #tpu.memory_space<vmem>>, vector<128x256xbf16>
    %39 = arith.truncf %34 : vector<128x128xf32> to vector<128x128xbf16>
    %cst_17 = arith.constant dense<0.000000e+00> : vector<128x256xf32>
    %40 = tpu.matmul %39, %38, %cst_17 {dimension_numbers = #tpu.dot_dimension_numbers<[1], [0], [0], [1], [0, 0, 1, 1], [], []>} : vector<128x128xbf16>, vector<128x256xbf16>, vector<128x256xf32> -> vector<128x256xf32>
    %cst_18 = arith.constant dense<0.000000e+00> : vector<256xf32>
    %41 = vector.multi_reduction <add>, %40, %cst_18 [0] : vector<128x256xf32> to vector<256xf32>
    %42 = vector.shape_cast %41 : vector<256xf32> to vector<1x256xf32>
    %cst_19 = arith.constant 1.280000e+02 : f32
    %43 = vector.broadcast %cst_19 : f32 to vector<1x256xf32>
    %44 = arith.divf %42, %43 : vector<1x256xf32>
    %45 = arith.mulf %40, %40 : vector<128x256xf32>
    %cst_20 = arith.constant dense<0.000000e+00> : vector<256xf32>
    %46 = vector.multi_reduction <add>, %45, %cst_20 [0] : vector<128x256xf32> to vector<256xf32>
    %47 = vector.shape_cast %46 : vector<256xf32> to vector<1x256xf32>
    %cst_21 = arith.constant 1.280000e+02 : f32
    %48 = vector.broadcast %cst_21 : f32 to vector<1x256xf32>
    %49 = arith.divf %47, %48 : vector<1x256xf32>
    %50 = arith.mulf %44, %44 : vector<1x256xf32>
    %51 = arith.subf %49, %50 : vector<1x256xf32>
    %cst_22 = arith.constant 0.000000e+00 : f32
    %52 = vector.broadcast %cst_22 : f32 to vector<1x256xf32>
    %53 = arith.maximumf %51, %52 : vector<1x256xf32>
    %54 = vector.broadcast %44 : vector<1x256xf32> to vector<128x256xf32>
    %55 = arith.subf %40, %54 : vector<128x256xf32>
    %cst_23 = arith.constant 9.99999974E-6 : f32
    %56 = vector.broadcast %cst_23 : f32 to vector<1x256xf32>
    %57 = arith.addf %53, %56 : vector<1x256xf32>
    %58 = math.rsqrt %57 : vector<1x256xf32>
    %59 = vector.broadcast %58 : vector<1x256xf32> to vector<128x256xf32>
    %60 = arith.mulf %55, %59 : vector<128x256xf32>
    %61 = vector.extract_strided_slice %60 {offsets = [0, 0], sizes = [128, 128], strides = [1, 1]} : vector<128x256xf32> to vector<128x128xf32>
    %62 = vector.extract_strided_slice %60 {offsets = [0, 128], sizes = [128, 128], strides = [1, 1]} : vector<128x256xf32> to vector<128x128xf32>
    %63 = arith.negf %62 : vector<128x128xf32>
    %64 = math.exp %63 : vector<128x128xf32>
    %cst_24 = arith.constant 1.000000e+00 : f32
    %65 = vector.broadcast %cst_24 : f32 to vector<128x128xf32>
    %66 = arith.addf %65, %64 : vector<128x128xf32>
    %67 = arith.divf %65, %66 : vector<128x128xf32>
    %68 = arith.mulf %61, %67 : vector<128x128xf32>
    %69 = arith.addf %34, %68 : vector<128x128xf32>
    %cst_25 = arith.constant 0.707106769 : f32
    %70 = vector.broadcast %cst_25 : f32 to vector<128x128xf32>
    %71 = arith.mulf %69, %70 : vector<128x128xf32>
    %c0_i32_26 = arith.constant 0 : i32
    %72 = arith.cmpi eq, %arg0, %c0_i32_26 : i32
    %73 = arith.extui %72 : i1 to i32
    %c1_i32_27 = arith.constant 1 : i32
    %c0_i32_28 = arith.constant 0 : i32
    %74 = arith.cmpi ne, %73, %c0_i32_28 : i32
    scf.if %74 {
      %147 = tpu.memref_slice %arg10[%c1_i32_27] : memref<3x!tpu.dma_semaphore, #tpu.memory_space<semaphore_mem>> -> memref<1x!tpu.dma_semaphore, #tpu.memory_space<semaphore_mem>>
      %148 = tpu.memref_squeeze %147 : memref<1x!tpu.dma_semaphore, #tpu.memory_space<semaphore_mem>> -> memref<!tpu.dma_semaphore, #tpu.memory_space<semaphore_mem>>
      tpu.wait_dma2 semaphore(%148 : memref<!tpu.dma_semaphore, #tpu.memory_space<semaphore_mem>>) src(%arg4 : memref<128x256xbf16, #tpu.memory_space<any>>) dst(%arg8 : memref<128x256xbf16, #tpu.memory_space<vmem>>)
    } else {
    }
    %c0_29 = arith.constant 0 : index
    %c0_30 = arith.constant 0 : index
    %75 = vector.load %arg8[%c0_29, %c0_30] : memref<128x256xbf16, #tpu.memory_space<vmem>>, vector<128x256xbf16>
    %76 = arith.truncf %71 : vector<128x128xf32> to vector<128x128xbf16>
    %cst_31 = arith.constant dense<0.000000e+00> : vector<128x256xf32>
    %77 = tpu.matmul %76, %75, %cst_31 {dimension_numbers = #tpu.dot_dimension_numbers<[1], [0], [0], [1], [0, 0, 1, 1], [], []>} : vector<128x128xbf16>, vector<128x256xbf16>, vector<128x256xf32> -> vector<128x256xf32>
    %cst_32 = arith.constant dense<0.000000e+00> : vector<256xf32>
    %78 = vector.multi_reduction <add>, %77, %cst_32 [0] : vector<128x256xf32> to vector<256xf32>
    %79 = vector.shape_cast %78 : vector<256xf32> to vector<1x256xf32>
    %cst_33 = arith.constant 1.280000e+02 : f32
    %80 = vector.broadcast %cst_33 : f32 to vector<1x256xf32>
    %81 = arith.divf %79, %80 : vector<1x256xf32>
    %82 = arith.mulf %77, %77 : vector<128x256xf32>
    %cst_34 = arith.constant dense<0.000000e+00> : vector<256xf32>
    %83 = vector.multi_reduction <add>, %82, %cst_34 [0] : vector<128x256xf32> to vector<256xf32>
    %84 = vector.shape_cast %83 : vector<256xf32> to vector<1x256xf32>
    %cst_35 = arith.constant 1.280000e+02 : f32
    %85 = vector.broadcast %cst_35 : f32 to vector<1x256xf32>
    %86 = arith.divf %84, %85 : vector<1x256xf32>
    %87 = arith.mulf %81, %81 : vector<1x256xf32>
    %88 = arith.subf %86, %87 : vector<1x256xf32>
    %cst_36 = arith.constant 0.000000e+00 : f32
    %89 = vector.broadcast %cst_36 : f32 to vector<1x256xf32>
    %90 = arith.maximumf %88, %89 : vector<1x256xf32>
    %91 = vector.broadcast %81 : vector<1x256xf32> to vector<128x256xf32>
    %92 = arith.subf %77, %91 : vector<128x256xf32>
    %cst_37 = arith.constant 9.99999974E-6 : f32
    %93 = vector.broadcast %cst_37 : f32 to vector<1x256xf32>
    %94 = arith.addf %90, %93 : vector<1x256xf32>
    %95 = math.rsqrt %94 : vector<1x256xf32>
    %96 = vector.broadcast %95 : vector<1x256xf32> to vector<128x256xf32>
    %97 = arith.mulf %92, %96 : vector<128x256xf32>
    %98 = vector.extract_strided_slice %97 {offsets = [0, 0], sizes = [128, 128], strides = [1, 1]} : vector<128x256xf32> to vector<128x128xf32>
    %99 = vector.extract_strided_slice %97 {offsets = [0, 128], sizes = [128, 128], strides = [1, 1]} : vector<128x256xf32> to vector<128x128xf32>
    %100 = arith.negf %99 : vector<128x128xf32>
    %101 = math.exp %100 : vector<128x128xf32>
    %cst_38 = arith.constant 1.000000e+00 : f32
    %102 = vector.broadcast %cst_38 : f32 to vector<128x128xf32>
    %103 = arith.addf %102, %101 : vector<128x128xf32>
    %104 = arith.divf %102, %103 : vector<128x128xf32>
    %105 = arith.mulf %98, %104 : vector<128x128xf32>
    %106 = arith.addf %71, %105 : vector<128x128xf32>
    %cst_39 = arith.constant 0.707106769 : f32
    %107 = vector.broadcast %cst_39 : f32 to vector<128x128xf32>
    %108 = arith.mulf %106, %107 : vector<128x128xf32>
    %c0_i32_40 = arith.constant 0 : i32
    %109 = arith.cmpi eq, %arg0, %c0_i32_40 : i32
    %110 = arith.extui %109 : i1 to i32
    %c2_i32_41 = arith.constant 2 : i32
    %c0_i32_42 = arith.constant 0 : i32
    %111 = arith.cmpi ne, %110, %c0_i32_42 : i32
    scf.if %111 {
      %147 = tpu.memref_slice %arg10[%c2_i32_41] : memref<3x!tpu.dma_semaphore, #tpu.memory_space<semaphore_mem>> -> memref<1x!tpu.dma_semaphore, #tpu.memory_space<semaphore_mem>>
      %148 = tpu.memref_squeeze %147 : memref<1x!tpu.dma_semaphore, #tpu.memory_space<semaphore_mem>> -> memref<!tpu.dma_semaphore, #tpu.memory_space<semaphore_mem>>
      tpu.wait_dma2 semaphore(%148 : memref<!tpu.dma_semaphore, #tpu.memory_space<semaphore_mem>>) src(%arg5 : memref<128x256xbf16, #tpu.memory_space<any>>) dst(%arg9 : memref<128x256xbf16, #tpu.memory_space<vmem>>)
    } else {
    }
    %c0_43 = arith.constant 0 : index
    %c0_44 = arith.constant 0 : index
    %112 = vector.load %arg9[%c0_43, %c0_44] : memref<128x256xbf16, #tpu.memory_space<vmem>>, vector<128x256xbf16>
    %113 = arith.truncf %108 : vector<128x128xf32> to vector<128x128xbf16>
    %cst_45 = arith.constant dense<0.000000e+00> : vector<128x256xf32>
    %114 = tpu.matmul %113, %112, %cst_45 {dimension_numbers = #tpu.dot_dimension_numbers<[1], [0], [0], [1], [0, 0, 1, 1], [], []>} : vector<128x128xbf16>, vector<128x256xbf16>, vector<128x256xf32> -> vector<128x256xf32>
    %cst_46 = arith.constant dense<0.000000e+00> : vector<256xf32>
    %115 = vector.multi_reduction <add>, %114, %cst_46 [0] : vector<128x256xf32> to vector<256xf32>
    %116 = vector.shape_cast %115 : vector<256xf32> to vector<1x256xf32>
    %cst_47 = arith.constant 1.280000e+02 : f32
    %117 = vector.broadcast %cst_47 : f32 to vector<1x256xf32>
    %118 = arith.divf %116, %117 : vector<1x256xf32>
    %119 = arith.mulf %114, %114 : vector<128x256xf32>
    %cst_48 = arith.constant dense<0.000000e+00> : vector<256xf32>
    %120 = vector.multi_reduction <add>, %119, %cst_48 [0] : vector<128x256xf32> to vector<256xf32>
    %121 = vector.shape_cast %120 : vector<256xf32> to vector<1x256xf32>
    %cst_49 = arith.constant 1.280000e+02 : f32
    %122 = vector.broadcast %cst_49 : f32 to vector<1x256xf32>
    %123 = arith.divf %121, %122 : vector<1x256xf32>
    %124 = arith.mulf %118, %118 : vector<1x256xf32>
    %125 = arith.subf %123, %124 : vector<1x256xf32>
    %cst_50 = arith.constant 0.000000e+00 : f32
    %126 = vector.broadcast %cst_50 : f32 to vector<1x256xf32>
    %127 = arith.maximumf %125, %126 : vector<1x256xf32>
    %128 = vector.broadcast %118 : vector<1x256xf32> to vector<128x256xf32>
    %129 = arith.subf %114, %128 : vector<128x256xf32>
    %cst_51 = arith.constant 9.99999974E-6 : f32
    %130 = vector.broadcast %cst_51 : f32 to vector<1x256xf32>
    %131 = arith.addf %127, %130 : vector<1x256xf32>
    %132 = math.rsqrt %131 : vector<1x256xf32>
    %133 = vector.broadcast %132 : vector<1x256xf32> to vector<128x256xf32>
    %134 = arith.mulf %129, %133 : vector<128x256xf32>
    %135 = vector.extract_strided_slice %134 {offsets = [0, 0], sizes = [128, 128], strides = [1, 1]} : vector<128x256xf32> to vector<128x128xf32>
    %136 = vector.extract_strided_slice %134 {offsets = [0, 128], sizes = [128, 128], strides = [1, 1]} : vector<128x256xf32> to vector<128x128xf32>
    %137 = arith.negf %136 : vector<128x128xf32>
    %138 = math.exp %137 : vector<128x128xf32>
    %cst_52 = arith.constant 1.000000e+00 : f32
    %139 = vector.broadcast %cst_52 : f32 to vector<128x128xf32>
    %140 = arith.addf %139, %138 : vector<128x128xf32>
    %141 = arith.divf %139, %140 : vector<128x128xf32>
    %142 = arith.mulf %135, %141 : vector<128x128xf32>
    %143 = arith.addf %108, %142 : vector<128x128xf32>
    %cst_53 = arith.constant 0.707106769 : f32
    %144 = vector.broadcast %cst_53 : f32 to vector<128x128xf32>
    %145 = arith.mulf %143, %144 : vector<128x128xf32>
    %c0_54 = arith.constant 0 : index
    %c0_55 = arith.constant 0 : index
    %146 = vector.load %arg6[%c0_54, %c0_55] : memref<128x128xf32, #tpu.memory_space<vmem>>, vector<128x128xf32>
    tpu.vector_store %arg6[%c0_54, %c0_55], %145 {strides = array<i32>} : memref<128x128xf32, #tpu.memory_space<vmem>>, vector<128x128xf32>,
    return
  }
  func.func @transform_0(%arg0: i32) -> (i32, i32) {
    %c0_i32 = arith.constant 0 : i32
    %c0_i32_0 = arith.constant 0 : i32
    return %arg0, %c0_i32 : i32, i32
  }
  func.func @transform_1(%arg0: i32) -> (i32, i32) {
    %c0_i32 = arith.constant 0 : i32
    %c0_i32_0 = arith.constant 0 : i32
    %c0_i32_1 = arith.constant 0 : i32
    return %c0_i32, %c0_i32_0 : i32, i32
  }
  func.func @transform_5(%arg0: i32) -> (i32, i32) {
    %c0_i32 = arith.constant 0 : i32
    %c0_i32_0 = arith.constant 0 : i32
    return %arg0, %c0_i32 : i32, i32
  }
}

</mosaic_0001>

<llo_original>
// kernel: feat_transformer.1
$region0: #{feat_transformer.1}
  #allocation0 [shape = 'u32[]', space=smem, size = 0x4, offset = 0x4, fixed_abs, tag = 'smem constant byte address 0x4 - core index']
  #allocation1 [shape = 'u32[144,128]{1,0:T(1,128)}', space=vmem, size = 0x12000, scoped, tag = 'internal scratch']
  #allocation2 [shape = 'bf16[128,256]{1,0:T(16,128)(2,1)}', space=vmem, size = 0x10000, scoped, tag = 'scratch operand']
  #allocation3 [shape = 'bf16[128,256]{1,0:T(16,128)(2,1)}', space=vmem, size = 0x10000, scoped, tag = 'scratch operand']
  #allocation4 [shape = 'bf16[128,256]{1,0:T(16,128)(2,1)}', space=vmem, size = 0x10000, scoped, tag = 'scratch operand']
  #allocation5 [shape = 's32[3]{0}', space=sflag, size = 0xc, scoped, tag = 'scratch operand']
  #allocation8 [shape = 's32[]', space=sflag, size = 0x4, offset = 0, fixed_abs, tag = 'sflag constant byte address 0x0 - dummy sync flag']
  #allocation9 [shape = 's32[]', space=sflag, size = 0x4, offset = 0, fixed_abs, tag = 'sflag constant byte address 0x0 - dummy sync flag']
  #allocation10 [shape = 's32[]', space=sflag, size = 0x4, offset = 0, fixed_abs, tag = 'sflag constant byte address 0x0 - dummy sync flag']
  %s0 = inlined_call_operand.vmem [shape: f32[256,16], index: 0, kind: input, shape index: {}]
  %s1 = inlined_call_operand.vmem [shape: bf16[16,256], index: 1, kind: input, shape index: {}]
  %s2 = inlined_call_operand.vmem [shape: bf16[128,256], index: 2, kind: input, shape index: {}]
  %s3 = inlined_call_operand.vmem [shape: bf16[128,256], index: 3, kind: input, shape index: {}]
  %s4 = inlined_call_operand.vmem [shape: bf16[128,256], index: 4, kind: input, shape index: {}]
  %s5 = inlined_call_operand.hbm [shape: f32[256,128], index: 5, kind: output, shape index: {}]
  %s6 = sld [smem:[#allocation0]]
  $region168: #{feat_transformer.1} parent=0
    _
  %s8 = ssub.s32 1, %s6
  %s9 = scalar_select 0, %s8, %s6
  $region1: #{feat_transformer.1} parent=0
    #allocation6 [shape = 'u8[131072]{0}', space=vmem, size = 0x20000, scoped, tag = 'output window, operand 0']
    #allocation7 [shape = 's32[2]{0}', space=sflag, size = 0x8, scoped, tag = 'scoped memory for feat_transformer.1']
    %10 = vsyncpa [#allocation7], 0
    %s11 = scalar_lea.sflag [#allocation7], 1
    %12 = vsyncpa %s11, 0
    loop: start=0, step=1, limit=4
    $region2: #{feat_transformer.1} parent=1 // loop_pre_header
      _
    $region3: #{feat_transformer.1} parent=1 // loop_header
      %s14 = sphi 0, %s18
      %p15 = scmp.ge.s32.totalorder %s14, 4
      %s24 = sphi 0, %s26
      %s27 = sphi 0, %s24
      %s28 = sphi 0, %s27
      %s44 = sphi 0, %s28
      %s48 = sphi 0, %s48
      %s50 = sphi 0, %s48
      %s51 = sphi 0, %s50
      %s65 = sphi 0, %s51
      %s71 = sphi 0, %s73
      %s74 = sphi 0, %s71
      %s75 = sphi 0, %s74
      %s91 = sphi 0, %s75
    $region4: #{feat_transformer.1} parent=1 // loop_header_branch
      %17 = sbr.rel (%p15) target = $region8
    $region5: #{feat_transformer.1} parent=1 // loop_body
      %s19 = ssub.s32 %s14, 1
      %s20 = ssub.s32 %s14, 2
      %s21 = sadd.s32 %s14, 1
      %s22 = ssub.s32 %s14, %s21
      %p23 = scmp.eq.s32.totalorder %s22, 0
      %s25 = sadd.s32 %s24, 1
      %s26 = scalar_select %p23, %s24, %s25
      %p29 = pneg %p23
      %p30 = scmp.eq.s32.totalorder %s14, 1
      %p31 = por %p29, %p30
      %p32 = scmp.ne.s32.totalorder %s24, %s27
      %p33 = scmp.eq.s32.totalorder %s14, 0
      %p34 = por %p32, %p33
      %p35 = scmp.ne.s32.totalorder %s24, %s27
      %p36 = scmp.eq.s32.totalorder %s19, 1
      %p37 = por %p35, %p36
      %p38 = scmp.ne.s32.totalorder %s27, %s28
      %p39 = scmp.eq.s32.totalorder %s19, 0
      %p40 = por %p38, %p39
      %p41 = scmp.ne.s32.totalorder %s27, %s28
      %p42 = scmp.eq.s32.totalorder %s20, 1
      %p43 = por %p41, %p42
      %p45 = scmp.ne.s32.totalorder %s28, %s44
      %p46 = scmp.eq.s32.totalorder %s20, 0
      %p47 = por %p45, %p46
      %s49 = sadd.s32 %s48, 1
      %p52 = scmp.eq.s32.totalorder %s14, 1
      %p53 = scmp.ne.s32.totalorder %s48, %s50
      %p54 = scmp.eq.s32.totalorder %s14, 0
      %p55 = por %p53, %p54
      %p56 = scmp.ne.s32.totalorder %s48, %s50
      %p57 = scmp.eq.s32.totalorder %s19, 1
      %p58 = por %p56, %p57
      %p59 = scmp.ne.s32.totalorder %s50, %s51
      %p60 = scmp.eq.s32.totalorder %s19, 0
      %p61 = por %p59, %p60
      %p62 = scmp.ne.s32.totalorder %s50, %s51
      %p63 = scmp.eq.s32.totalorder %s20, 1
      %p64 = por %p62, %p63
      %p66 = scmp.ne.s32.totalorder %s51, %s65
      %p67 = scmp.eq.s32.totalorder %s20, 0
      %p68 = por %p66, %p67
      %s69 = ssub.s32 %s14, %s21
      %p70 = scmp.eq.s32.totalorder %s69, 0
      %s72 = sadd.s32 %s71, 1
      %s73 = scalar_select %p70, %s71, %s72
      %p76 = pneg %p70
      %p77 = scmp.eq.s32.totalorder %s14, 1
      %p78 = por %p76, %p77
      %p79 = scmp.ne.s32.totalorder %s71, %s74
      %p80 = scmp.eq.s32.totalorder %s14, 0
      %p81 = por %p79, %p80
      %p82 = scmp.ne.s32.totalorder %s71, %s74
      %p83 = scmp.eq.s32.totalorder %s19, 1
      %p84 = por %p82, %p83
      %p85 = scmp.ne.s32.totalorder %s74, %s75
      %p86 = scmp.eq.s32.totalorder %s19, 0
      %p87 = por %p85, %p86
      %p88 = scmp.ne.s32.totalorder %s74, %s75
      %p89 = scmp.eq.s32.totalorder %s20, 1
      %p90 = por %p88, %p89
      %p92 = scmp.ne.s32.totalorder %s75, %s91
      %p93 = scmp.eq.s32.totalorder %s20, 0
      %p94 = por %p92, %p93
      %p95 = scmp.le.s32.totalorder 1, %s14
      %p96 = scmp.lt.s32.totalorder %s14, 3
      %p97 = pnand %p95, %p96
      %p98 = pneg %p97
      // Predicated region
      $region9: #{feat_transformer.1} parent=5 // pred_check
        _
      $region10: #{feat_transformer.1} parent=5 // pred_check_branch
        %100 = sbr.rel (%p97) target = $region12
      $region11: #{feat_transformer.1} parent=5 // pred_region
        %s101 = ssub.s32 %s14, 1
        // Predicated region
        $region13: #{feat_transformer.1} parent=11 // pred_check
          %p102 = pneg %p61
        $region14: #{feat_transformer.1} parent=11 // pred_check_branch
          %104 = sbr.rel (%p102) target = $region16
        $region15: #{feat_transformer.1} parent=11 // pred_region
          _
        $region16: #{feat_transformer.1} parent=11 // pred_fallthru
          _
      $region12: #{feat_transformer.1} parent=5 // pred_fallthru
        _
      %p105 = scmp.lt.s32.totalorder %s14, 2
      // Predicated region
      $region17: #{feat_transformer.1} parent=5 // pred_check
        %p106 = pneg %p105
      $region18: #{feat_transformer.1} parent=5 // pred_check_branch
        %108 = sbr.rel (%p106) target = $region20
      $region19: #{feat_transformer.1} parent=5 // pred_region
        // Predicated region
        $region21: #{feat_transformer.1} parent=19 // pred_check
          %p109 = pneg %p34
        $region22: #{feat_transformer.1} parent=19 // pred_check_branch
          %111 = sbr.rel (%p109) target = $region24
        $region23: #{feat_transformer.1} parent=19 // pred_region
          %s112 = smul.u32 16, %s14
          %p113 = scmp.lt.s32.totalorder %s112, 31
          %s114 = scalar_select %p113, %s112, 31
          %s115 = smul.addr %s114, 8
          %s116 = scalar_lea.vmem %s0, %s115
          %s117 = smul.u32 16, %s14
        $region24: #{feat_transformer.1} parent=19 // pred_fallthru
          _
      $region20: #{feat_transformer.1} parent=5 // pred_fallthru
        _
      %p118 = scmp.le.s32.totalorder 1, %s14
      %p119 = scmp.lt.s32.totalorder %s14, 3
      %p120 = pnand %p118, %p119
      %p121 = pneg %p120
      // Predicated region
      $region25: #{feat_transformer.1} parent=5 // pred_check
        _
      $region26: #{feat_transformer.1} parent=5 // pred_check_branch
        %123 = sbr.rel (%p120) target = $region28
      $region27: #{feat_transformer.1} parent=5 // pred_region
        %s124 = ssub.s32 %s14, 1
        %s125 = smul.u32 16, %s19
        %p126 = scmp.lt.s32.totalorder %s125, 31
        %s127 = scalar_select %p126, %s125, 31
        %s128 = smul.addr %s127, 8
        %s129 = scalar_lea.vmem %s0, %s128
        %p130 = pneg %p40
        %p131 = pneg %p37
        %p132 = pneg %p61
        %p133 = pneg %p58
        %p134 = pneg %p87
        %p135 = pneg %p84
        %s136 = sand.u32 %s74, 1
        %s137 = scalar_lea.sflag [#allocation7], %s136
        %s138 = sand.u32 %s74, 1
        %s139 = smul.addr %s138, 128
        %s140 = scalar_lea.vmem [#allocation6], %s139
        %s141 = smul.u32 16, %s19
        %p142 = scmp.lt.s32.totalorder %s141, 31
        %s143 = scalar_select %p142, %s141, 31
        %s144 = smul.addr %s143, 8
        %s145 = scalar_lea.vmem %s0, %s144
        %s146 = smul.u32 16, %s19
        %s147 = smul.u32 16, %s19
        %p149 = scmp.eq.s32.totalorder %s19, 0
        // Predicated region
        $region29: #{feat_transformer.1} parent=27 // pred_check
          %p150 = pneg %p149
        $region30: #{feat_transformer.1} parent=27 // pred_check_branch
          %152 = sbr.rel (%p150) target = $region32
        $region31: #{feat_transformer.1} parent=27 // pred_region
          %p154 = scmp.lt.u32.totalorder 4, 8
          %p155 = pneg %p154
          // Predicated region
          $region33: #{feat_transformer.1} parent=31 // pred_check
            _
          $region34: #{feat_transformer.1} parent=31 // pred_check_branch
            %157 = sbr.rel (%p154) target = $region36
          $region35: #{feat_transformer.1} parent=31 // pred_region
            %s234 = sand.u32 4, 7
            %p235 = scmp.eq.s32.totalorder %s234, 0
            %p236 = pneg %p235
            // Predicated region
            $region48: #{feat_transformer.1} parent=35 // pred_check
              _
            $region49: #{feat_transformer.1} parent=35 // pred_check_branch
              %238 = sbr.rel (%p235) target = $region51
            $region50: #{feat_transformer.1} parent=35 // pred_region
              %s239 = sand.u32 4, 7
              %s240 = ssub.s32 4, %s239
              %s241 = scalar_lea.vmem %s2, %s240
              %s242 = ssub.s32 4, %s239
              %s243 = scalar_lea.vmem [#allocation2], %s242
              loop: start=0, step=1, limit=1
              $region52: #{feat_transformer.1} parent=50 // loop_pre_header
                _
              $region53: #{feat_transformer.1} parent=50 // loop_header
                %s245 = sphi 0, %s249
                %p246 = scmp.ge.s32.totalorder %s245, 1
                %s250 = sphi %s2, %s2
                %s251 = sphi [#allocation2], [#allocation2]
              $region54: #{feat_transformer.1} parent=50 // loop_header_branch
                %248 = sbr.rel (%p246) target = $region58
              $region55: #{feat_transformer.1} parent=50 // loop_body
                _
              $region56: #{feat_transformer.1} parent=50 // loop_footer
                %s249 = sadd.s32 1, %s245
              $region57: #{feat_transformer.1} parent=50 // loop_footer_branch
                %244 = sbr.rel target = $region53
              $region58: #{feat_transformer.1} parent=50 // loop_exit
                _
              %s252 = sshllo.u32 0, %s239
              loop: start=0, step=1, limit=1
              $region59: #{feat_transformer.1} parent=50 // loop_pre_header
                _
              $region60: #{feat_transformer.1} parent=50 // loop_header
                %s254 = sphi 0, %s258
                %p255 = scmp.ge.s32.totalorder %s254, 1
                %s259 = sphi %s241, %s241
                %s260 = sphi %s243, %s243
              $region61: #{feat_transformer.1} parent=50 // loop_header_branch
                %257 = sbr.rel (%p255) target = $region65
              $region62: #{feat_transformer.1} parent=50 // loop_body
                %v261 = vld [vmem:[%s259] sm:%s252]
                %262 = vst [vmem:[%s260] sm:%s252] %v261
                %v263 = vld [vmem:[%s259 + $0x8] sm:%s252]
                %264 = vst [vmem:[%s260 + $0x4] sm:%s252] %v263
                %v265 = vld [vmem:[%s259 + $0x4] sm:%s252]
                %266 = vst [vmem:[%s260 + $0x8] sm:%s252] %v265
                %v267 = vld [vmem:[%s259 + $0xc] sm:%s252]
                %268 = vst [vmem:[%s260 + $0xc] sm:%s252] %v267
                %v269 = vld [vmem:[%s259 + $0x10] sm:%s252]
                %270 = vst [vmem:[%s260 + $0x10] sm:%s252] %v269
                %v271 = vld [vmem:[%s259 + $0x18] sm:%s252]
                %272 = vst [vmem:[%s260 + $0x14] sm:%s252] %v271
                %v273 = vld [vmem:[%s259 + $0x14] sm:%s252]
                %274 = vst [vmem:[%s260 + $0x18] sm:%s252] %v273
                %v275 = vld [vmem:[%s259 + $0x1c] sm:%s252]
                %276 = vst [vmem:[%s260 + $0x1c] sm:%s252] %v275
                %v277 = vld [vmem:[%s259 + $0x20] sm:%s252]
                %278 = vst [vmem:[%s260 + $0x20] sm:%s252] %v277
                %v279 = vld [vmem:[%s259 + $0x28] sm:%s252]
                %280 = vst [vmem:[%s260 + $0x24] sm:%s252] %v279
                %v281 = vld [vmem:[%s259 + $0x24] sm:%s252]
                %282 = vst [vmem:[%s260 + $0x28] sm:%s252] %v281
                %v283 = vld [vmem:[%s259 + $0x2c] sm:%s252]
                %284 = vst [vmem:[%s260 + $0x2c] sm:%s252] %v283
                %v285 = vld [vmem:[%s259 + $0x30] sm:%s252]
                %286 = vst [vmem:[%s260 + $0x30] sm:%s252] %v285
                %v287 = vld [vmem:[%s259 + $0x38] sm:%s252]
                %288 = vst [vmem:[%s260 + $0x34] sm:%s252] %v287
                %v289 = vld [vmem:[%s259 + $0x34] sm:%s252]
                %290 = vst [vmem:[%s260 + $0x38] sm:%s252] %v289
                %v291 = vld [vmem:[%s259 + $0x3c] sm:%s252]
                %292 = vst [vmem:[%s260 + $0x3c] sm:%s252] %v291
                %v293 = vld [vmem:[%s259 + $0x40] sm:%s252]
                %294 = vst [vmem:[%s260 + $0x40] sm:%s252] %v293
                %v295 = vld [vmem:[%s259 + $0x48] sm:%s252]
                %296 = vst [vmem:[%s260 + $0x44] sm:%s252] %v295
                %v297 = vld [vmem:[%s259 + $0x44] sm:%s252]
                %298 = vst [vmem:[%s260 + $0x48] sm:%s252] %v297
                %v299 = vld [vmem:[%s259 + $0x4c] sm:%s252]
                %300 = vst [vmem:[%s260 + $0x4c] sm:%s252] %v299
                %v301 = vld [vmem:[%s259 + $0x50] sm:%s252]
                %302 = vst [vmem:[%s260 + $0x50] sm:%s252] %v301
                %v303 = vld [vmem:[%s259 + $0x58] sm:%s252]
                %304 = vst [vmem:[%s260 + $0x54] sm:%s252] %v303
                %v305 = vld [vmem:[%s259 + $0x54] sm:%s252]
                %306 = vst [vmem:[%s260 + $0x58] sm:%s252] %v305
                %v307 = vld [vmem:[%s259 + $0x5c] sm:%s252]
                %308 = vst [vmem:[%s260 + $0x5c] sm:%s252] %v307
                %v309 = vld [vmem:[%s259 + $0x60] sm:%s252]
                %310 = vst [vmem:[%s260 + $0x60] sm:%s252] %v309
                %v311 = vld [vmem:[%s259 + $0x68] sm:%s252]
                %312 = vst [vmem:[%s260 + $0x64] sm:%s252] %v311
                %v313 = vld [vmem:[%s259 + $0x64] sm:%s252]
                %314 = vst [vmem:[%s260 + $0x68] sm:%s252] %v313
                %v315 = vld [vmem:[%s259 + $0x6c] sm:%s252]
                %316 = vst [vmem:[%s260 + $0x6c] sm:%s252] %v315
                %v317 = vld [vmem:[%s259 + $0x70] sm:%s252]
                %318 = vst [vmem:[%s260 + $0x70] sm:%s252] %v317
                %v319 = vld [vmem:[%s259 + $0x78] sm:%s252]
                %320 = vst [vmem:[%s260 + $0x74] sm:%s252] %v319
                %v321 = vld [vmem:[%s259 + $0x74] sm:%s252]
                %322 = vst [vmem:[%s260 + $0x78] sm:%s252] %v321
                %v323 = vld [vmem:[%s259 + $0x7c] sm:%s252]
                %324 = vst [vmem:[%s260 + $0x7c] sm:%s252] %v323
              $region63: #{feat_transformer.1} parent=50 // loop_footer
                %s258 = sadd.s32 1, %s254
              $region64: #{feat_transformer.1} parent=50 // loop_footer_branch
                %253 = sbr.rel target = $region60
              $region65: #{feat_transformer.1} parent=50 // loop_exit
                _
            $region51: #{feat_transformer.1} parent=35 // pred_fallthru
              _
          $region36: #{feat_transformer.1} parent=31 // pred_fallthru
            _
          // Predicated region
          $region37: #{feat_transformer.1} parent=31 // pred_check
            %p158 = pneg %p154
          $region38: #{feat_transformer.1} parent=31 // pred_check_branch
            %160 = sbr.rel (%p158) target = $region40
          $region39: #{feat_transformer.1} parent=31 // pred_region
            %s161 = sshllo.u32 0, 4
            loop: start=0, step=1, limit=1
            $region41: #{feat_transformer.1} parent=39 // loop_pre_header
              _
            $region42: #{feat_transformer.1} parent=39 // loop_header
              %s163 = sphi 0, %s167
              %p164 = scmp.ge.s32.totalorder %s163, 1
              %s168 = sphi %s2, %s2
              %s169 = sphi [#allocation2], [#allocation2]
            $region43: #{feat_transformer.1} parent=39 // loop_header_branch
              %166 = sbr.rel (%p164) target = $region47
            $region44: #{feat_transformer.1} parent=39 // loop_body
              %v170 = vld [vmem:[%s168] sm:%s161]
              %171 = vst [vmem:[%s169] sm:%s161] %v170
              %v172 = vld [vmem:[%s168 + $0x8] sm:%s161]
              %173 = vst [vmem:[%s169 + $0x4] sm:%s161] %v172
              %v174 = vld [vmem:[%s168 + $0x4] sm:%s161]
              %175 = vst [vmem:[%s169 + $0x8] sm:%s161] %v174
              %v176 = vld [vmem:[%s168 + $0xc] sm:%s161]
              %177 = vst [vmem:[%s169 + $0xc] sm:%s161] %v176
              %v178 = vld [vmem:[%s168 + $0x10] sm:%s161]
              %179 = vst [vmem:[%s169 + $0x10] sm:%s161] %v178
              %v180 = vld [vmem:[%s168 + $0x18] sm:%s161]
              %181 = vst [vmem:[%s169 + $0x14] sm:%s161] %v180
              %v182 = vld [vmem:[%s168 + $0x14] sm:%s161]
              %183 = vst [vmem:[%s169 + $0x18] sm:%s161] %v182
              %v184 = vld [vmem:[%s168 + $0x1c] sm:%s161]
              %185 = vst [vmem:[%s169 + $0x1c] sm:%s161] %v184
              %v186 = vld [vmem:[%s168 + $0x20] sm:%s161]
              %187 = vst [vmem:[%s169 + $0x20] sm:%s161] %v186
              %v188 = vld [vmem:[%s168 + $0x28] sm:%s161]
              %189 = vst [vmem:[%s169 + $0x24] sm:%s161] %v188
              %v190 = vld [vmem:[%s168 + $0x24] sm:%s161]
              %191 = vst [vmem:[%s169 + $0x28] sm:%s161] %v190
              %v192 = vld [vmem:[%s168 + $0x2c] sm:%s161]
              %193 = vst [vmem:[%s169 + $0x2c] sm:%s161] %v192
              %v194 = vld [vmem:[%s168 + $0x30] sm:%s161]
              %195 = vst [vmem:[%s169 + $0x30] sm:%s161] %v194
              %v196 = vld [vmem:[%s168 + $0x38] sm:%s161]
              %197 = vst [vmem:[%s169 + $0x34] sm:%s161] %v196
              %v198 = vld [vmem:[%s168 + $0x34] sm:%s161]
              %199 = vst [vmem:[%s169 + $0x38] sm:%s161] %v198
              %v200 = vld [vmem:[%s168 + $0x3c] sm:%s161]
              %201 = vst [vmem:[%s169 + $0x3c] sm:%s161] %v200
              %v202 = vld [vmem:[%s168 + $0x40] sm:%s161]
              %203 = vst [vmem:[%s169 + $0x40] sm:%s161] %v202
              %v204 = vld [vmem:[%s168 + $0x48] sm:%s161]
              %205 = vst [vmem:[%s169 + $0x44] sm:%s161] %v204
              %v206 = vld [vmem:[%s168 + $0x44] sm:%s161]
              %207 = vst [vmem:[%s169 + $0x48] sm:%s161] %v206
              %v208 = vld [vmem:[%s168 + $0x4c] sm:%s161]
              %209 = vst [vmem:[%s169 + $0x4c] sm:%s161] %v208
              %v210 = vld [vmem:[%s168 + $0x50] sm:%s161]
              %211 = vst [vmem:[%s169 + $0x50] sm:%s161] %v210
              %v212 = vld [vmem:[%s168 + $0x58] sm:%s161]
              %213 = vst [vmem:[%s169 + $0x54] sm:%s161] %v212
              %v214 = vld [vmem:[%s168 + $0x54] sm:%s161]
              %215 = vst [vmem:[%s169 + $0x58] sm:%s161] %v214
              %v216 = vld [vmem:[%s168 + $0x5c] sm:%s161]
              %217 = vst [vmem:[%s169 + $0x5c] sm:%s161] %v216
              %v218 = vld [vmem:[%s168 + $0x60] sm:%s161]
              %219 = vst [vmem:[%s169 + $0x60] sm:%s161] %v218
              %v220 = vld [vmem:[%s168 + $0x68] sm:%s161]
              %221 = vst [vmem:[%s169 + $0x64] sm:%s161] %v220
              %v222 = vld [vmem:[%s168 + $0x64] sm:%s161]
              %223 = vst [vmem:[%s169 + $0x68] sm:%s161] %v222
              %v224 = vld [vmem:[%s168 + $0x6c] sm:%s161]
              %225 = vst [vmem:[%s169 + $0x6c] sm:%s161] %v224
              %v226 = vld [vmem:[%s168 + $0x70] sm:%s161]
              %227 = vst [vmem:[%s169 + $0x70] sm:%s161] %v226
              %v228 = vld [vmem:[%s168 + $0x78] sm:%s161]
              %229 = vst [vmem:[%s169 + $0x74] sm:%s161] %v228
              %v230 = vld [vmem:[%s168 + $0x74] sm:%s161]
              %231 = vst [vmem:[%s169 + $0x78] sm:%s161] %v230
              %v232 = vld [vmem:[%s168 + $0x7c] sm:%s161]
              %233 = vst [vmem:[%s169 + $0x7c] sm:%s161] %v232
            $region45: #{feat_transformer.1} parent=39 // loop_footer
              %s167 = sadd.s32 1, %s163
            $region46: #{feat_transformer.1} parent=39 // loop_footer_branch
              %162 = sbr.rel target = $region42
            $region47: #{feat_transformer.1} parent=39 // loop_exit
              _
          $region40: #{feat_transformer.1} parent=31 // pred_fallthru
            _
          // Predicated region
          $region66: #{feat_transformer.1} parent=31 // pred_check
            _
          $region67: #{feat_transformer.1} parent=31 // pred_check_branch
            %327 = sbr.rel (0) target = $region69
          $region68: #{feat_transformer.1} parent=31 // pred_region
            %328 = vsyncadd [#allocation5], 2048
          $region69: #{feat_transformer.1} parent=31 // pred_fallthru
            _
          %s329 = scalar_lea.sflag [#allocation5], 1
          %p331 = scmp.lt.u32.totalorder 4, 8
          %p332 = pneg %p331
          // Predicated region
          $region70: #{feat_transformer.1} parent=31 // pred_check
            _
          $region71: #{feat_transformer.1} parent=31 // pred_check_branch
            %334 = sbr.rel (%p331) target = $region73
          $region72: #{feat_transformer.1} parent=31 // pred_region
            %s411 = sand.u32 4, 7
            %p412 = scmp.eq.s32.totalorder %s411, 0
            %p413 = pneg %p412
            // Predicated region
            $region85: #{feat_transformer.1} parent=72 // pred_check
              _
            $region86: #{feat_transformer.1} parent=72 // pred_check_branch
              %415 = sbr.rel (%p412) target = $region88
            $region87: #{feat_transformer.1} parent=72 // pred_region
              %s416 = sand.u32 4, 7
              %s417 = ssub.s32 4, %s416
              %s418 = scalar_lea.vmem %s3, %s417
              %s419 = ssub.s32 4, %s416
              %s420 = scalar_lea.vmem [#allocation3], %s419
              loop: start=0, step=1, limit=1
              $region89: #{feat_transformer.1} parent=87 // loop_pre_header
                _
              $region90: #{feat_transformer.1} parent=87 // loop_header
                %s422 = sphi 0, %s426
                %p423 = scmp.ge.s32.totalorder %s422, 1
                %s427 = sphi %s3, %s3
                %s428 = sphi [#allocation3], [#allocation3]
              $region91: #{feat_transformer.1} parent=87 // loop_header_branch
                %425 = sbr.rel (%p423) target = $region95
              $region92: #{feat_transformer.1} parent=87 // loop_body
                _
              $region93: #{feat_transformer.1} parent=87 // loop_footer
                %s426 = sadd.s32 1, %s422
              $region94: #{feat_transformer.1} parent=87 // loop_footer_branch
                %421 = sbr.rel target = $region90
              $region95: #{feat_transformer.1} parent=87 // loop_exit
                _
              %s429 = sshllo.u32 0, %s416
              loop: start=0, step=1, limit=1
              $region96: #{feat_transformer.1} parent=87 // loop_pre_header
                _
              $region97: #{feat_transformer.1} parent=87 // loop_header
                %s431 = sphi 0, %s435
                %p432 = scmp.ge.s32.totalorder %s431, 1
                %s436 = sphi %s418, %s418
                %s437 = sphi %s420, %s420
              $region98: #{feat_transformer.1} parent=87 // loop_header_branch
                %434 = sbr.rel (%p432) target = $region102
              $region99: #{feat_transformer.1} parent=87 // loop_body
                %v438 = vld [vmem:[%s436] sm:%s429]
                %439 = vst [vmem:[%s437] sm:%s429] %v438
                %v440 = vld [vmem:[%s436 + $0x8] sm:%s429]
                %441 = vst [vmem:[%s437 + $0x4] sm:%s429] %v440
                %v442 = vld [vmem:[%s436 + $0x4] sm:%s429]
                %443 = vst [vmem:[%s437 + $0x8] sm:%s429] %v442
                %v444 = vld [vmem:[%s436 + $0xc] sm:%s429]
                %445 = vst [vmem:[%s437 + $0xc] sm:%s429] %v444
                %v446 = vld [vmem:[%s436 + $0x10] sm:%s429]
                %447 = vst [vmem:[%s437 + $0x10] sm:%s429] %v446
                %v448 = vld [vmem:[%s436 + $0x18] sm:%s429]
                %449 = vst [vmem:[%s437 + $0x14] sm:%s429] %v448
                %v450 = vld [vmem:[%s436 + $0x14] sm:%s429]
                %451 = vst [vmem:[%s437 + $0x18] sm:%s429] %v450
                %v452 = vld [vmem:[%s436 + $0x1c] sm:%s429]
                %453 = vst [vmem:[%s437 + $0x1c] sm:%s429] %v452
                %v454 = vld [vmem:[%s436 + $0x20] sm:%s429]
                %455 = vst [vmem:[%s437 + $0x20] sm:%s429] %v454
                %v456 = vld [vmem:[%s436 + $0x28] sm:%s429]
                %457 = vst [vmem:[%s437 + $0x24] sm:%s429] %v456
                %v458 = vld [vmem:[%s436 + $0x24] sm:%s429]
                %459 = vst [vmem:[%s437 + $0x28] sm:%s429] %v458
                %v460 = vld [vmem:[%s436 + $0x2c] sm:%s429]
                %461 = vst [vmem:[%s437 + $0x2c] sm:%s429] %v460
                %v462 = vld [vmem:[%s436 + $0x30] sm:%s429]
                %463 = vst [vmem:[%s437 + $0x30] sm:%s429] %v462
                %v464 = vld [vmem:[%s436 + $0x38] sm:%s429]
                %465 = vst [vmem:[%s437 + $0x34] sm:%s429] %v464
                %v466 = vld [vmem:[%s436 + $0x34] sm:%s429]
                %467 = vst [vmem:[%s437 + $0x38] sm:%s429] %v466
                %v468 = vld [vmem:[%s436 + $0x3c] sm:%s429]
                %469 = vst [vmem:[%s437 + $0x3c] sm:%s429] %v468
                %v470 = vld [vmem:[%s436 + $0x40] sm:%s429]
                %471 = vst [vmem:[%s437 + $0x40] sm:%s429] %v470
                %v472 = vld [vmem:[%s436 + $0x48] sm:%s429]
                %473 = vst [vmem:[%s437 + $0x44] sm:%s429] %v472
                %v474 = vld [vmem:[%s436 + $0x44] sm:%s429]
                %475 = vst [vmem:[%s437 + $0x48] sm:%s429] %v474
                %v476 = vld [vmem:[%s436 + $0x4c] sm:%s429]
                %477 = vst [vmem:[%s437 + $0x4c] sm:%s429] %v476
                %v478 = vld [vmem:[%s436 + $0x50] sm:%s429]
                %479 = vst [vmem:[%s437 + $0x50] sm:%s429] %v478
                %v480 = vld [vmem:[%s436 + $0x58] sm:%s429]
                %481 = vst [vmem:[%s437 + $0x54] sm:%s429] %v480
                %v482 = vld [vmem:[%s436 + $0x54] sm:%s429]
                %483 = vst [vmem:[%s437 + $0x58] sm:%s429] %v482
                %v484 = vld [vmem:[%s436 + $0x5c] sm:%s429]
                %485 = vst [vmem:[%s437 + $0x5c] sm:%s429] %v484
                %v486 = vld [vmem:[%s436 + $0x60] sm:%s429]
                %487 = vst [vmem:[%s437 + $0x60] sm:%s429] %v486
                %v488 = vld [vmem:[%s436 + $0x68] sm:%s429]
                %489 = vst [vmem:[%s437 + $0x64] sm:%s429] %v488
                %v490 = vld [vmem:[%s436 + $0x64] sm:%s429]
                %491 = vst [vmem:[%s437 + $0x68] sm:%s429] %v490
                %v492 = vld [vmem:[%s436 + $0x6c] sm:%s429]
                %493 = vst [vmem:[%s437 + $0x6c] sm:%s429] %v492
                %v494 = vld [vmem:[%s436 + $0x70] sm:%s429]
                %495 = vst [vmem:[%s437 + $0x70] sm:%s429] %v494
                %v496 = vld [vmem:[%s436 + $0x78] sm:%s429]
                %497 = vst [vmem:[%s437 + $0x74] sm:%s429] %v496
                %v498 = vld [vmem:[%s436 + $0x74] sm:%s429]
                %499 = vst [vmem:[%s437 + $0x78] sm:%s429] %v498
                %v500 = vld [vmem:[%s436 + $0x7c] sm:%s429]
                %501 = vst [vmem:[%s437 + $0x7c] sm:%s429] %v500
              $region100: #{feat_transformer.1} parent=87 // loop_footer
                %s435 = sadd.s32 1, %s431
              $region101: #{feat_transformer.1} parent=87 // loop_footer_branch
                %430 = sbr.rel target = $region97
              $region102: #{feat_transformer.1} parent=87 // loop_exit
                _
            $region88: #{feat_transformer.1} parent=72 // pred_fallthru
              _
          $region73: #{feat_transformer.1} parent=31 // pred_fallthru
            _
          // Predicated region
          $region74: #{feat_transformer.1} parent=31 // pred_check
            %p335 = pneg %p331
          $region75: #{feat_transformer.1} parent=31 // pred_check_branch
            %337 = sbr.rel (%p335) target = $region77
          $region76: #{feat_transformer.1} parent=31 // pred_region
            %s338 = sshllo.u32 0, 4
            loop: start=0, step=1, limit=1
            $region78: #{feat_transformer.1} parent=76 // loop_pre_header
              _
            $region79: #{feat_transformer.1} parent=76 // loop_header
              %s340 = sphi 0, %s344
              %p341 = scmp.ge.s32.totalorder %s340, 1
              %s345 = sphi %s3, %s3
              %s346 = sphi [#allocation3], [#allocation3]
            $region80: #{feat_transformer.1} parent=76 // loop_header_branch
              %343 = sbr.rel (%p341) target = $region84
            $region81: #{feat_transformer.1} parent=76 // loop_body
              %v347 = vld [vmem:[%s345] sm:%s338]
              %348 = vst [vmem:[%s346] sm:%s338] %v347
              %v349 = vld [vmem:[%s345 + $0x8] sm:%s338]
              %350 = vst [vmem:[%s346 + $0x4] sm:%s338] %v349
              %v351 = vld [vmem:[%s345 + $0x4] sm:%s338]
              %352 = vst [vmem:[%s346 + $0x8] sm:%s338] %v351
              %v353 = vld [vmem:[%s345 + $0xc] sm:%s338]
              %354 = vst [vmem:[%s346 + $0xc] sm:%s338] %v353
              %v355 = vld [vmem:[%s345 + $0x10] sm:%s338]
              %356 = vst [vmem:[%s346 + $0x10] sm:%s338] %v355
              %v357 = vld [vmem:[%s345 + $0x18] sm:%s338]
              %358 = vst [vmem:[%s346 + $0x14] sm:%s338] %v357
              %v359 = vld [vmem:[%s345 + $0x14] sm:%s338]
              %360 = vst [vmem:[%s346 + $0x18] sm:%s338] %v359
              %v361 = vld [vmem:[%s345 + $0x1c] sm:%s338]
              %362 = vst [vmem:[%s346 + $0x1c] sm:%s338] %v361
              %v363 = vld [vmem:[%s345 + $0x20] sm:%s338]
              %364 = vst [vmem:[%s346 + $0x20] sm:%s338] %v363
              %v365 = vld [vmem:[%s345 + $0x28] sm:%s338]
              %366 = vst [vmem:[%s346 + $0x24] sm:%s338] %v365
              %v367 = vld [vmem:[%s345 + $0x24] sm:%s338]
              %368 = vst [vmem:[%s346 + $0x28] sm:%s338] %v367
              %v369 = vld [vmem:[%s345 + $0x2c] sm:%s338]
              %370 = vst [vmem:[%s346 + $0x2c] sm:%s338] %v369
              %v371 = vld [vmem:[%s345 + $0x30] sm:%s338]
              %372 = vst [vmem:[%s346 + $0x30] sm:%s338] %v371
              %v373 = vld [vmem:[%s345 + $0x38] sm:%s338]
              %374 = vst [vmem:[%s346 + $0x34] sm:%s338] %v373
              %v375 = vld [vmem:[%s345 + $0x34] sm:%s338]
              %376 = vst [vmem:[%s346 + $0x38] sm:%s338] %v375
              %v377 = vld [vmem:[%s345 + $0x3c] sm:%s338]
              %378 = vst [vmem:[%s346 + $0x3c] sm:%s338] %v377
              %v379 = vld [vmem:[%s345 + $0x40] sm:%s338]
              %380 = vst [vmem:[%s346 + $0x40] sm:%s338] %v379
              %v381 = vld [vmem:[%s345 + $0x48] sm:%s338]
              %382 = vst [vmem:[%s346 + $0x44] sm:%s338] %v381
              %v383 = vld [vmem:[%s345 + $0x44] sm:%s338]
              %384 = vst [vmem:[%s346 + $0x48] sm:%s338] %v383
              %v385 = vld [vmem:[%s345 + $0x4c] sm:%s338]
              %386 = vst [vmem:[%s346 + $0x4c] sm:%s338] %v385
              %v387 = vld [vmem:[%s345 + $0x50] sm:%s338]
              %388 = vst [vmem:[%s346 + $0x50] sm:%s338] %v387
              %v389 = vld [vmem:[%s345 + $0x58] sm:%s338]
              %390 = vst [vmem:[%s346 + $0x54] sm:%s338] %v389
              %v391 = vld [vmem:[%s345 + $0x54] sm:%s338]
              %392 = vst [vmem:[%s346 + $0x58] sm:%s338] %v391
              %v393 = vld [vmem:[%s345 + $0x5c] sm:%s338]
              %394 = vst [vmem:[%s346 + $0x5c] sm:%s338] %v393
              %v395 = vld [vmem:[%s345 + $0x60] sm:%s338]
              %396 = vst [vmem:[%s346 + $0x60] sm:%s338] %v395
              %v397 = vld [vmem:[%s345 + $0x68] sm:%s338]
              %398 = vst [vmem:[%s346 + $0x64] sm:%s338] %v397
              %v399 = vld [vmem:[%s345 + $0x64] sm:%s338]
              %400 = vst [vmem:[%s346 + $0x68] sm:%s338] %v399
              %v401 = vld [vmem:[%s345 + $0x6c] sm:%s338]
              %402 = vst [vmem:[%s346 + $0x6c] sm:%s338] %v401
              %v403 = vld [vmem:[%s345 + $0x70] sm:%s338]
              %404 = vst [vmem:[%s346 + $0x70] sm:%s338] %v403
              %v405 = vld [vmem:[%s345 + $0x78] sm:%s338]
              %406 = vst [vmem:[%s346 + $0x74] sm:%s338] %v405
              %v407 = vld [vmem:[%s345 + $0x74] sm:%s338]
              %408 = vst [vmem:[%s346 + $0x78] sm:%s338] %v407
              %v409 = vld [vmem:[%s345 + $0x7c] sm:%s338]
              %410 = vst [vmem:[%s346 + $0x7c] sm:%s338] %v409
            $region82: #{feat_transformer.1} parent=76 // loop_footer
              %s344 = sadd.s32 1, %s340
            $region83: #{feat_transformer.1} parent=76 // loop_footer_branch
              %339 = sbr.rel target = $region79
            $region84: #{feat_transformer.1} parent=76 // loop_exit
              _
          $region77: #{feat_transformer.1} parent=31 // pred_fallthru
            _
          // Predicated region
          $region103: #{feat_transformer.1} parent=31 // pred_check
            _
          $region104: #{feat_transformer.1} parent=31 // pred_check_branch
            %504 = sbr.rel (0) target = $region106
          $region105: #{feat_transformer.1} parent=31 // pred_region
            %505 = vsyncadd %s329, 2048
          $region106: #{feat_transformer.1} parent=31 // pred_fallthru
            _
          %s506 = scalar_lea.sflag [#allocation5], 2
          %p508 = scmp.lt.u32.totalorder 4, 8
          %p509 = pneg %p508
          // Predicated region
          $region107: #{feat_transformer.1} parent=31 // pred_check
            _
          $region108: #{feat_transformer.1} parent=31 // pred_check_branch
            %511 = sbr.rel (%p508) target = $region110
          $region109: #{feat_transformer.1} parent=31 // pred_region
            %s588 = sand.u32 4, 7
            %p589 = scmp.eq.s32.totalorder %s588, 0
            %p590 = pneg %p589
            // Predicated region
            $region122: #{feat_transformer.1} parent=109 // pred_check
              _
            $region123: #{feat_transformer.1} parent=109 // pred_check_branch
              %592 = sbr.rel (%p589) target = $region125
            $region124: #{feat_transformer.1} parent=109 // pred_region
              %s593 = sand.u32 4, 7
              %s594 = ssub.s32 4, %s593
              %s595 = scalar_lea.vmem %s4, %s594
              %s596 = ssub.s32 4, %s593
              %s597 = scalar_lea.vmem [#allocation4], %s596
              loop: start=0, step=1, limit=1
              $region126: #{feat_transformer.1} parent=124 // loop_pre_header
                _
              $region127: #{feat_transformer.1} parent=124 // loop_header
                %s599 = sphi 0, %s603
                %p600 = scmp.ge.s32.totalorder %s599, 1
                %s604 = sphi %s4, %s4
                %s605 = sphi [#allocation4], [#allocation4]
              $region128: #{feat_transformer.1} parent=124 // loop_header_branch
                %602 = sbr.rel (%p600) target = $region132
              $region129: #{feat_transformer.1} parent=124 // loop_body
                _
              $region130: #{feat_transformer.1} parent=124 // loop_footer
                %s603 = sadd.s32 1, %s599
              $region131: #{feat_transformer.1} parent=124 // loop_footer_branch
                %598 = sbr.rel target = $region127
              $region132: #{feat_transformer.1} parent=124 // loop_exit
                _
              %s606 = sshllo.u32 0, %s593
              loop: start=0, step=1, limit=1
              $region133: #{feat_transformer.1} parent=124 // loop_pre_header
                _
              $region134: #{feat_transformer.1} parent=124 // loop_header
                %s608 = sphi 0, %s612
                %p609 = scmp.ge.s32.totalorder %s608, 1
                %s613 = sphi %s595, %s595
                %s614 = sphi %s597, %s597
              $region135: #{feat_transformer.1} parent=124 // loop_header_branch
                %611 = sbr.rel (%p609) target = $region139
              $region136: #{feat_transformer.1} parent=124 // loop_body
                %v615 = vld [vmem:[%s613] sm:%s606]
                %616 = vst [vmem:[%s614] sm:%s606] %v615
                %v617 = vld [vmem:[%s613 + $0x8] sm:%s606]
                %618 = vst [vmem:[%s614 + $0x4] sm:%s606] %v617
                %v619 = vld [vmem:[%s613 + $0x4] sm:%s606]
                %620 = vst [vmem:[%s614 + $0x8] sm:%s606] %v619
                %v621 = vld [vmem:[%s613 + $0xc] sm:%s606]
                %622 = vst [vmem:[%s614 + $0xc] sm:%s606] %v621
                %v623 = vld [vmem:[%s613 + $0x10] sm:%s606]
                %624 = vst [vmem:[%s614 + $0x10] sm:%s606] %v623
                %v625 = vld [vmem:[%s613 + $0x18] sm:%s606]
                %626 = vst [vmem:[%s614 + $0x14] sm:%s606] %v625
                %v627 = vld [vmem:[%s613 + $0x14] sm:%s606]
                %628 = vst [vmem:[%s614 + $0x18] sm:%s606] %v627
                %v629 = vld [vmem:[%s613 + $0x1c] sm:%s606]
                %630 = vst [vmem:[%s614 + $0x1c] sm:%s606] %v629
                %v631 = vld [vmem:[%s613 + $0x20] sm:%s606]
                %632 = vst [vmem:[%s614 + $0x20] sm:%s606] %v631
                %v633 = vld [vmem:[%s613 + $0x28] sm:%s606]
                %634 = vst [vmem:[%s614 + $0x24] sm:%s606] %v633
                %v635 = vld [vmem:[%s613 + $0x24] sm:%s606]
                %636 = vst [vmem:[%s614 + $0x28] sm:%s606] %v635
                %v637 = vld [vmem:[%s613 + $0x2c] sm:%s606]
                %638 = vst [vmem:[%s614 + $0x2c] sm:%s606] %v637
                %v639 = vld [vmem:[%s613 + $0x30] sm:%s606]
                %640 = vst [vmem:[%s614 + $0x30] sm:%s606] %v639
                %v641 = vld [vmem:[%s613 + $0x38] sm:%s606]
                %642 = vst [vmem:[%s614 + $0x34] sm:%s606] %v641
                %v643 = vld [vmem:[%s613 + $0x34] sm:%s606]
                %644 = vst [vmem:[%s614 + $0x38] sm:%s606] %v643
                %v645 = vld [vmem:[%s613 + $0x3c] sm:%s606]
                %646 = vst [vmem:[%s614 + $0x3c] sm:%s606] %v645
                %v647 = vld [vmem:[%s613 + $0x40] sm:%s606]
                %648 = vst [vmem:[%s614 + $0x40] sm:%s606] %v647
                %v649 = vld [vmem:[%s613 + $0x48] sm:%s606]
                %650 = vst [vmem:[%s614 + $0x44] sm:%s606] %v649
                %v651 = vld [vmem:[%s613 + $0x44] sm:%s606]
                %652 = vst [vmem:[%s614 + $0x48] sm:%s606] %v651
                %v653 = vld [vmem:[%s613 + $0x4c] sm:%s606]
                %654 = vst [vmem:[%s614 + $0x4c] sm:%s606] %v653
                %v655 = vld [vmem:[%s613 + $0x50] sm:%s606]
                %656 = vst [vmem:[%s614 + $0x50] sm:%s606] %v655
                %v657 = vld [vmem:[%s613 + $0x58] sm:%s606]
                %658 = vst [vmem:[%s614 + $0x54] sm:%s606] %v657
                %v659 = vld [vmem:[%s613 + $0x54] sm:%s606]
                %660 = vst [vmem:[%s614 + $0x58] sm:%s606] %v659
                %v661 = vld [vmem:[%s613 + $0x5c] sm:%s606]
                %662 = vst [vmem:[%s614 + $0x5c] sm:%s606] %v661
                %v663 = vld [vmem:[%s613 + $0x60] sm:%s606]
                %664 = vst [vmem:[%s614 + $0x60] sm:%s606] %v663
                %v665 = vld [vmem:[%s613 + $0x68] sm:%s606]
                %666 = vst [vmem:[%s614 + $0x64] sm:%s606] %v665
                %v667 = vld [vmem:[%s613 + $0x64] sm:%s606]
                %668 = vst [vmem:[%s614 + $0x68] sm:%s606] %v667
                %v669 = vld [vmem:[%s613 + $0x6c] sm:%s606]
                %670 = vst [vmem:[%s614 + $0x6c] sm:%s606] %v669
                %v671 = vld [vmem:[%s613 + $0x70] sm:%s606]
                %672 = vst [vmem:[%s614 + $0x70] sm:%s606] %v671
                %v673 = vld [vmem:[%s613 + $0x78] sm:%s606]
                %674 = vst [vmem:[%s614 + $0x74] sm:%s606] %v673
                %v675 = vld [vmem:[%s613 + $0x74] sm:%s606]
                %676 = vst [vmem:[%s614 + $0x78] sm:%s606] %v675
                %v677 = vld [vmem:[%s613 + $0x7c] sm:%s606]
                %678 = vst [vmem:[%s614 + $0x7c] sm:%s606] %v677
              $region137: #{feat_transformer.1} parent=124 // loop_footer
                %s612 = sadd.s32 1, %s608
              $region138: #{feat_transformer.1} parent=124 // loop_footer_branch
                %607 = sbr.rel target = $region134
              $region139: #{feat_transformer.1} parent=124 // loop_exit
                _
            $region125: #{feat_transformer.1} parent=109 // pred_fallthru
              _
          $region110: #{feat_transformer.1} parent=31 // pred_fallthru
            _
          // Predicated region
          $region111: #{feat_transformer.1} parent=31 // pred_check
            %p512 = pneg %p508
          $region112: #{feat_transformer.1} parent=31 // pred_check_branch
            %514 = sbr.rel (%p512) target = $region114
          $region113: #{feat_transformer.1} parent=31 // pred_region
            %s515 = sshllo.u32 0, 4
            loop: start=0, step=1, limit=1
            $region115: #{feat_transformer.1} parent=113 // loop_pre_header
              _
            $region116: #{feat_transformer.1} parent=113 // loop_header
              %s517 = sphi 0, %s521
              %p518 = scmp.ge.s32.totalorder %s517, 1
              %s522 = sphi %s4, %s4
              %s523 = sphi [#allocation4], [#allocation4]
            $region117: #{feat_transformer.1} parent=113 // loop_header_branch
              %520 = sbr.rel (%p518) target = $region121
            $region118: #{feat_transformer.1} parent=113 // loop_body
              %v524 = vld [vmem:[%s522] sm:%s515]
              %525 = vst [vmem:[%s523] sm:%s515] %v524
              %v526 = vld [vmem:[%s522 + $0x8] sm:%s515]
              %527 = vst [vmem:[%s523 + $0x4] sm:%s515] %v526
              %v528 = vld [vmem:[%s522 + $0x4] sm:%s515]
              %529 = vst [vmem:[%s523 + $0x8] sm:%s515] %v528
              %v530 = vld [vmem:[%s522 + $0xc] sm:%s515]
              %531 = vst [vmem:[%s523 + $0xc] sm:%s515] %v530
              %v532 = vld [vmem:[%s522 + $0x10] sm:%s515]
              %533 = vst [vmem:[%s523 + $0x10] sm:%s515] %v532
              %v534 = vld [vmem:[%s522 + $0x18] sm:%s515]
              %535 = vst [vmem:[%s523 + $0x14] sm:%s515] %v534
              %v536 = vld [vmem:[%s522 + $0x14] sm:%s515]
              %537 = vst [vmem:[%s523 + $0x18] sm:%s515] %v536
              %v538 = vld [vmem:[%s522 + $0x1c] sm:%s515]
              %539 = vst [vmem:[%s523 + $0x1c] sm:%s515] %v538
              %v540 = vld [vmem:[%s522 + $0x20] sm:%s515]
              %541 = vst [vmem:[%s523 + $0x20] sm:%s515] %v540
              %v542 = vld [vmem:[%s522 + $0x28] sm:%s515]
              %543 = vst [vmem:[%s523 + $0x24] sm:%s515] %v542
              %v544 = vld [vmem:[%s522 + $0x24] sm:%s515]
              %545 = vst [vmem:[%s523 + $0x28] sm:%s515] %v544
              %v546 = vld [vmem:[%s522 + $0x2c] sm:%s515]
              %547 = vst [vmem:[%s523 + $0x2c] sm:%s515] %v546
              %v548 = vld [vmem:[%s522 + $0x30] sm:%s515]
              %549 = vst [vmem:[%s523 + $0x30] sm:%s515] %v548
              %v550 = vld [vmem:[%s522 + $0x38] sm:%s515]
              %551 = vst [vmem:[%s523 + $0x34] sm:%s515] %v550
              %v552 = vld [vmem:[%s522 + $0x34] sm:%s515]
              %553 = vst [vmem:[%s523 + $0x38] sm:%s515] %v552
              %v554 = vld [vmem:[%s522 + $0x3c] sm:%s515]
              %555 = vst [vmem:[%s523 + $0x3c] sm:%s515] %v554
              %v556 = vld [vmem:[%s522 + $0x40] sm:%s515]
              %557 = vst [vmem:[%s523 + $0x40] sm:%s515] %v556
              %v558 = vld [vmem:[%s522 + $0x48] sm:%s515]
              %559 = vst [vmem:[%s523 + $0x44] sm:%s515] %v558
              %v560 = vld [vmem:[%s522 + $0x44] sm:%s515]
              %561 = vst [vmem:[%s523 + $0x48] sm:%s515] %v560
              %v562 = vld [vmem:[%s522 + $0x4c] sm:%s515]
              %563 = vst [vmem:[%s523 + $0x4c] sm:%s515] %v562
              %v564 = vld [vmem:[%s522 + $0x50] sm:%s515]
              %565 = vst [vmem:[%s523 + $0x50] sm:%s515] %v564
              %v566 = vld [vmem:[%s522 + $0x58] sm:%s515]
              %567 = vst [vmem:[%s523 + $0x54] sm:%s515] %v566
              %v568 = vld [vmem:[%s522 + $0x54] sm:%s515]
              %569 = vst [vmem:[%s523 + $0x58] sm:%s515] %v568
              %v570 = vld [vmem:[%s522 + $0x5c] sm:%s515]
              %571 = vst [vmem:[%s523 + $0x5c] sm:%s515] %v570
              %v572 = vld [vmem:[%s522 + $0x60] sm:%s515]
              %573 = vst [vmem:[%s523 + $0x60] sm:%s515] %v572
              %v574 = vld [vmem:[%s522 + $0x68] sm:%s515]
              %575 = vst [vmem:[%s523 + $0x64] sm:%s515] %v574
              %v576 = vld [vmem:[%s522 + $0x64] sm:%s515]
              %577 = vst [vmem:[%s523 + $0x68] sm:%s515] %v576
              %v578 = vld [vmem:[%s522 + $0x6c] sm:%s515]
              %579 = vst [vmem:[%s523 + $0x6c] sm:%s515] %v578
              %v580 = vld [vmem:[%s522 + $0x70] sm:%s515]
              %581 = vst [vmem:[%s523 + $0x70] sm:%s515] %v580
              %v582 = vld [vmem:[%s522 + $0x78] sm:%s515]
              %583 = vst [vmem:[%s523 + $0x74] sm:%s515] %v582
              %v584 = vld [vmem:[%s522 + $0x74] sm:%s515]
              %585 = vst [vmem:[%s523 + $0x78] sm:%s515] %v584
              %v586 = vld [vmem:[%s522 + $0x7c] sm:%s515]
              %587 = vst [vmem:[%s523 + $0x7c] sm:%s515] %v586
            $region119: #{feat_transformer.1} parent=113 // loop_footer
              %s521 = sadd.s32 1, %s517
            $region120: #{feat_transformer.1} parent=113 // loop_footer_branch
              %516 = sbr.rel target = $region116
            $region121: #{feat_transformer.1} parent=113 // loop_exit
              _
          $region114: #{feat_transformer.1} parent=31 // pred_fallthru
            _
          // Predicated region
          $region140: #{feat_transformer.1} parent=31 // pred_check
            _
          $region141: #{feat_transformer.1} parent=31 // pred_check_branch
            %681 = sbr.rel (0) target = $region143
          $region142: #{feat_transformer.1} parent=31 // pred_region
            %682 = vsyncadd %s506, 2048
          $region143: #{feat_transformer.1} parent=31 // pred_fallthru
            _
        $region32: #{feat_transformer.1} parent=27 // pred_fallthru
          _
        %v683 = vld [vmem:[%s145] sm:$0xff]
        %v684 = vld [vmem:[%s145 + $0x8] sm:$0xff]
        %v685 = vld [vmem:[%s145 + $0x10] sm:$0xff]
        %v686 = vld [vmem:[%s145 + $0x18] sm:$0xff]
        %v687 = vld [vmem:[%s145 + $0x20] sm:$0xff]
        %v688 = vld [vmem:[%s145 + $0x28] sm:$0xff]
        %v689 = vld [vmem:[%s145 + $0x30] sm:$0xff]
        %v690 = vld [vmem:[%s145 + $0x38] sm:$0xff]
        %v691 = vld [vmem:[%s145 + $0x40] sm:$0xff]
        %v692 = vld [vmem:[%s145 + $0x48] sm:$0xff]
        %v693 = vld [vmem:[%s145 + $0x50] sm:$0xff]
        %v694 = vld [vmem:[%s145 + $0x58] sm:$0xff]
        %v695 = vld [vmem:[%s145 + $0x60] sm:$0xff]
        %v696 = vld [vmem:[%s145 + $0x68] sm:$0xff]
        %v697 = vld [vmem:[%s145 + $0x70] sm:$0xff]
        %v698 = vld [vmem:[%s145 + $0x78] sm:$0xff]
        %v699 = vld [vmem:[%s1] sm:$0xff]
        %v700 = vld [vmem:[%s1 + $0x8] sm:$0xff]
        %v701 = vpack.c.bf16 %v684, %v683
        %v702 = vpack.c.bf16 %v686, %v685
        %v703 = vpack.c.bf16 %v688, %v687
        %v704 = vpack.c.bf16 %v690, %v689
        %v705 = vpack.c.bf16 %v692, %v691
        %v706 = vpack.c.bf16 %v694, %v693
        %v707 = vpack.c.bf16 %v696, %v695
        %v708 = vpack.c.bf16 %v698, %v697
        %v711 = vunpack.c.l.b16 %v699
        %v712 = vunpack.c.h.b16 %v699
        %v713 = vunpack.c.l.b16 %v700
        %v714 = vunpack.c.h.b16 %v700
        %v715 = vpack.c.b16 %v713, %v711
        %v716 = vpack.c.b16 %v714, %v712
        %vm719 = vcmask 130048
        %v721 = vsel %vm719, %v701, 0
        %v724 = vsel %vm719, %v702, 0
        %v727 = vsel %vm719, %v703, 0
        %v730 = vsel %vm719, %v704, 0
        %v733 = vsel %vm719, %v705, 0
        %v736 = vsel %vm719, %v706, 0
        %v739 = vsel %vm719, %v707, 0
        %v742 = vsel %vm719, %v708, 0
        %744 = vmatprep.subr.bf16.mxu0 %v716
        %745 = vmatpush1.bf16.msra.mxu0 %v715
        %746 = vmatprep.subr.bf16.mxu0 0
        %747 = vmatpush1.bf16.msra.mxu0 0
        %748 = vmatprep.subr.bf16.mxu0 0
        %749 = vmatpush1.bf16.msra.mxu0 0
        %750 = vmatprep.subr.bf16.mxu0 0
        %751 = vmatpush1.bf16.msra.mxu0 0
        %752 = vmatprep.subr.bf16.mxu0 0
        %753 = vmatpush1.bf16.msra.mxu0 0
        %754 = vmatprep.subr.bf16.mxu0 0
        %755 = vmatpush1.bf16.msra.mxu0 0
        %756 = vmatprep.subr.bf16.mxu0 0
        %757 = vmatpush1.bf16.msra.mxu0 0
        %758 = vmatprep.subr.bf16.mxu0 0
        %759 = vmatpush1.bf16.msra.mxu0 0
        %760 = vmatprep.subr.bf16.mxu0 0
        %761 = vmatpush1.bf16.msra.mxu0 0
        %762 = vmatprep.subr.bf16.mxu0 0
        %763 = vmatpush1.bf16.msra.mxu0 0
        %764 = vmatprep.subr.bf16.mxu0 0
        %765 = vmatpush1.bf16.msra.mxu0 0
        %766 = vmatprep.subr.bf16.mxu0 0
        %767 = vmatpush1.bf16.msra.mxu0 0
        %768 = vmatprep.subr.bf16.mxu0 0
        %769 = vmatpush1.bf16.msra.mxu0 0
        %770 = vmatprep.subr.bf16.mxu0 0
        %771 = vmatpush1.bf16.msra.mxu0 0
        %772 = vmatprep.subr.bf16.mxu0 0
        %773 = vmatpush1.bf16.msra.mxu0 0
        %774 = vmatprep.subr.bf16.mxu0 0
        %775 = vmatpush1.bf16.msra.mxu0 0
        %776 = vmatprep.mubr.bf16.mxu0 0
        %777 = vmatmul.mubr.bf16.gmra.mrb[0].mxu0 %v721
        %v778 = vpop.f32.mrb[0].mxu0
        %v779 = vadd.f32 0.0, %v778
        %v780 = vpop.f32.mrb[0].mxu0
        %v781 = vadd.f32 0.0, %v780
        %v782 = vpop.f32.mrb[0].mxu0
        %v783 = vadd.f32 0.0, %v782
        %v784 = vpop.f32.mrb[0].mxu0
        %v785 = vadd.f32 0.0, %v784
        %786 = vmatprep.mubr.bf16.mxu0 0
        %787 = vmatmul.mubr.bf16.gmra.mrb[0].mxu0 %v724
        %v788 = vpop.f32.mrb[0].mxu0
        %v789 = vadd.f32 0.0, %v788
        %v790 = vpop.f32.mrb[0].mxu0
        %v791 = vadd.f32 0.0, %v790
        %v792 = vpop.f32.mrb[0].mxu0
        %v793 = vadd.f32 0.0, %v792
        %v794 = vpop.f32.mrb[0].mxu0
        %v795 = vadd.f32 0.0, %v794
        %796 = vmatprep.mubr.bf16.mxu0 0
        %797 = vmatmul.mubr.bf16.gmra.mrb[0].mxu0 %v727
        %v798 = vpop.f32.mrb[0].mxu0
        %v799 = vadd.f32 0.0, %v798
        %v800 = vpop.f32.mrb[0].mxu0
        %v801 = vadd.f32 0.0, %v800
        %v802 = vpop.f32.mrb[0].mxu0
        %v803 = vadd.f32 0.0, %v802
        %v804 = vpop.f32.mrb[0].mxu0
        %v805 = vadd.f32 0.0, %v804
        %806 = vmatprep.mubr.bf16.mxu0 0
        %807 = vmatmul.mubr.bf16.gmra.mrb[0].mxu0 %v730
        %v808 = vpop.f32.mrb[0].mxu0
        %v809 = vadd.f32 0.0, %v808
        %v810 = vpop.f32.mrb[0].mxu0
        %v811 = vadd.f32 0.0, %v810
        %v812 = vpop.f32.mrb[0].mxu0
        %v813 = vadd.f32 0.0, %v812
        %v814 = vpop.f32.mrb[0].mxu0
        %v815 = vadd.f32 0.0, %v814
        %816 = vmatprep.mubr.bf16.mxu0 0
        %817 = vmatmul.mubr.bf16.gmra.mrb[0].mxu0 %v733
        %v818 = vpop.f32.mrb[0].mxu0
        %v819 = vadd.f32 0.0, %v818
        %v820 = vpop.f32.mrb[0].mxu0
        %v821 = vadd.f32 0.0, %v820
        %v822 = vpop.f32.mrb[0].mxu0
        %v823 = vadd.f32 0.0, %v822
        %v824 = vpop.f32.mrb[0].mxu0
        %v825 = vadd.f32 0.0, %v824
        %826 = vmatprep.mubr.bf16.mxu0 0
        %827 = vmatmul.mubr.bf16.gmra.mrb[0].mxu0 %v736
        %v828 = vpop.f32.mrb[0].mxu0
        %v829 = vadd.f32 0.0, %v828
        %v830 = vpop.f32.mrb[0].mxu0
        %v831 = vadd.f32 0.0, %v830
        %v832 = vpop.f32.mrb[0].mxu0
        %v833 = vadd.f32 0.0, %v832
        %v834 = vpop.f32.mrb[0].mxu0
        %v835 = vadd.f32 0.0, %v834
        %836 = vmatprep.mubr.bf16.mxu0 0
        %837 = vmatmul.mubr.bf16.gmra.mrb[0].mxu0 %v739
        %v838 = vpop.f32.mrb[0].mxu0
        %v839 = vadd.f32 0.0, %v838
        %v840 = vpop.f32.mrb[0].mxu0
        %v841 = vadd.f32 0.0, %v840
        %v842 = vpop.f32.mrb[0].mxu0
        %v843 = vadd.f32 0.0, %v842
        %v844 = vpop.f32.mrb[0].mxu0
        %v845 = vadd.f32 0.0, %v844
        %846 = vmatprep.mubr.bf16.mxu0 0
        %847 = vmatmul.mubr.bf16.gmra.mrb[0].mxu0 %v742
        %v848 = vpop.f32.mrb[0].mxu0
        %v849 = vadd.f32 0.0, %v848
        %v850 = vpop.f32.mrb[0].mxu0
        %v851 = vadd.f32 0.0, %v850
        %v852 = vpop.f32.mrb[0].mxu0
        %v853 = vadd.f32 0.0, %v852
        %v854 = vpop.f32.mrb[0].mxu0
        %v855 = vadd.f32 0.0, %v854
        %856 = vdwg.mxu0
        %v857 = vadd.f32 %v779, %v783
        %v858 = vadd.f32 %v857, %v789
        %v859 = vadd.f32 %v858, %v793
        %v860 = vadd.f32 %v859, %v799
        %v861 = vadd.f32 %v860, %v803
        %v862 = vadd.f32 %v861, %v809
        %v863 = vadd.f32 %v862, %v813
        %v864 = vadd.f32 %v863, %v819
        %v865 = vadd.f32 %v864, %v823
        %v866 = vadd.f32 %v865, %v829
        %v867 = vadd.f32 %v866, %v833
        %v868 = vadd.f32 %v867, %v839
        %v869 = vadd.f32 %v868, %v843
        %v870 = vadd.f32 %v869, %v849
        %v871 = vadd.f32 %v870, %v853
        %v872 = vrot.slane %v871, 4
        %v873 = vadd.f32 %v871, %v872
        %v874 = vrot.slane %v873, 2
        %v875 = vadd.f32 %v873, %v874
        %v876 = vrot.slane %v875, 1
        %v877 = vadd.f32 %v875, %v876
        %v878 = vadd.f32 %v781, %v785
        %v879 = vadd.f32 %v878, %v791
        %v880 = vadd.f32 %v879, %v795
        %v881 = vadd.f32 %v880, %v801
        %v882 = vadd.f32 %v881, %v805
        %v883 = vadd.f32 %v882, %v811
        %v884 = vadd.f32 %v883, %v815
        %v885 = vadd.f32 %v884, %v821
        %v886 = vadd.f32 %v885, %v825
        %v887 = vadd.f32 %v886, %v831
        %v888 = vadd.f32 %v887, %v835
        %v889 = vadd.f32 %v888, %v841
        %v890 = vadd.f32 %v889, %v845
        %v891 = vadd.f32 %v890, %v851
        %v892 = vadd.f32 %v891, %v855
        %v893 = vrot.slane %v892, 4
        %v894 = vadd.f32 %v892, %v893
        %v895 = vrot.slane %v894, 2
        %v896 = vadd.f32 %v894, %v895
        %v897 = vrot.slane %v896, 1
        %v898 = vadd.f32 %v896, %v897
        %v899 = vrcp.pop 128.0
        %v900 = vmul.f32 %v877, %v899
        %v901 = vmul.f32 %v898, %v899
        %v902 = vmul.f32 %v779, %v779
        %v903 = vmul.f32 %v781, %v781
        %v904 = vmul.f32 %v783, %v783
        %v905 = vmul.f32 %v785, %v785
        %v906 = vmul.f32 %v789, %v789
        %v907 = vmul.f32 %v791, %v791
        %v908 = vmul.f32 %v793, %v793
        %v909 = vmul.f32 %v795, %v795
        %v910 = vmul.f32 %v799, %v799
        %v911 = vmul.f32 %v801, %v801
        %v912 = vmul.f32 %v803, %v803
        %v913 = vmul.f32 %v805, %v805
        %v914 = vmul.f32 %v809, %v809
        %v915 = vmul.f32 %v811, %v811
        %v916 = vmul.f32 %v813, %v813
        %v917 = vmul.f32 %v815, %v815
        %v918 = vmul.f32 %v819, %v819
        %v919 = vmul.f32 %v821, %v821
        %v920 = vmul.f32 %v823, %v823
        %v921 = vmul.f32 %v825, %v825
        %v922 = vmul.f32 %v829, %v829
        %v923 = vmul.f32 %v831, %v831
        %v924 = vmul.f32 %v833, %v833
        %v925 = vmul.f32 %v835, %v835
        %v926 = vmul.f32 %v839, %v839
        %v927 = vmul.f32 %v841, %v841
        %v928 = vmul.f32 %v843, %v843
        %v929 = vmul.f32 %v845, %v845
        %v930 = vmul.f32 %v849, %v849
        %v931 = vmul.f32 %v851, %v851
        %v932 = vmul.f32 %v853, %v853
        %v933 = vmul.f32 %v855, %v855
        %v934 = vadd.f32 %v902, %v904
        %v935 = vadd.f32 %v934, %v906
        %v936 = vadd.f32 %v935, %v908
        %v937 = vadd.f32 %v936, %v910
        %v938 = vadd.f32 %v937, %v912
        %v939 = vadd.f32 %v938, %v914
        %v940 = vadd.f32 %v939, %v916
        %v941 = vadd.f32 %v940, %v918
        %v942 = vadd.f32 %v941, %v920
        %v943 = vadd.f32 %v942, %v922
        %v944 = vadd.f32 %v943, %v924
        %v945 = vadd.f32 %v944, %v926
        %v946 = vadd.f32 %v945, %v928
        %v947 = vadd.f32 %v946, %v930
        %v948 = vadd.f32 %v947, %v932
        %v949 = vrot.slane %v948, 4
        %v950 = vadd.f32 %v948, %v949
        %v951 = vrot.slane %v950, 2
        %v952 = vadd.f32 %v950, %v951
        %v953 = vrot.slane %v952, 1
        %v954 = vadd.f32 %v952, %v953
        %v955 = vadd.f32 %v903, %v905
        %v956 = vadd.f32 %v955, %v907
        %v957 = vadd.f32 %v956, %v909
        %v958 = vadd.f32 %v957, %v911
        %v959 = vadd.f32 %v958, %v913
        %v960 = vadd.f32 %v959, %v915
        %v961 = vadd.f32 %v960, %v917
        %v962 = vadd.f32 %v961, %v919
        %v963 = vadd.f32 %v962, %v921
        %v964 = vadd.f32 %v963, %v923
        %v965 = vadd.f32 %v964, %v925
        %v966 = vadd.f32 %v965, %v927
        %v967 = vadd.f32 %v966, %v929
        %v968 = vadd.f32 %v967, %v931
        %v969 = vadd.f32 %v968, %v933
        %v970 = vrot.slane %v969, 4
        %v971 = vadd.f32 %v969, %v970
        %v972 = vrot.slane %v971, 2
        %v973 = vadd.f32 %v971, %v972
        %v974 = vrot.slane %v973, 1
        %v975 = vadd.f32 %v973, %v974
        %v976 = vmul.f32 %v954, %v899
        %v977 = vmul.f32 %v975, %v899
        %v978 = vmul.f32 %v900, %v900
        %v979 = vmul.f32 %v901, %v901
        %v980 = vsub.f32 %v976, %v978
        %v981 = vsub.f32 %v977, %v979
        %v982 = vmax.f32 %v980, 0.0
        %v983 = vmax.f32 %v981, 0.0
        %v984 = vsub.f32 %v779, %v900
        %v985 = vsub.f32 %v781, %v901
        %v986 = vsub.f32 %v783, %v900
        %v987 = vsub.f32 %v785, %v901
        %v988 = vsub.f32 %v789, %v900
        %v989 = vsub.f32 %v791, %v901
        %v990 = vsub.f32 %v793, %v900
        %v991 = vsub.f32 %v795, %v901
        %v992 = vsub.f32 %v799, %v900
        %v993 = vsub.f32 %v801, %v901
        %v994 = vsub.f32 %v803, %v900
        %v995 = vsub.f32 %v805, %v901
        %v996 = vsub.f32 %v809, %v900
        %v997 = vsub.f32 %v811, %v901
        %v998 = vsub.f32 %v813, %v900
        %v999 = vsub.f32 %v815, %v901
        %v1000 = vsub.f32 %v819, %v900
        %v1001 = vsub.f32 %v821, %v901
        %v1002 = vsub.f32 %v823, %v900
        %v1003 = vsub.f32 %v825, %v901
        %v1004 = vsub.f32 %v829, %v900
        %v1005 = vsub.f32 %v831, %v901
        %v1006 = vsub.f32 %v833, %v900
        %v1007 = vsub.f32 %v835, %v901
        %v1008 = vsub.f32 %v839, %v900
        %v1009 = vsub.f32 %v841, %v901
        %v1010 = vsub.f32 %v843, %v900
        %v1011 = vsub.f32 %v845, %v901
        %v1012 = vsub.f32 %v849, %v900
        %v1013 = vsub.f32 %v851, %v901
        %v1014 = vsub.f32 %v853, %v900
        %v1015 = vsub.f32 %v855, %v901
        %v1016 = vadd.f32 %v982, 1e-05
        %v1017 = vadd.f32 %v983, 1e-05
        %v1018 = vrsqrt.pop %v1016
        %v1019 = vrsqrt.pop %v1017
        %v1020 = vmul.f32 %v984, %v1018
        %v1021 = vmul.f32 %v985, %v1019
        %v1022 = vmul.f32 %v986, %v1018
        %v1023 = vmul.f32 %v987, %v1019
        %v1024 = vmul.f32 %v988, %v1018
        %v1025 = vmul.f32 %v989, %v1019
        %v1026 = vmul.f32 %v990, %v1018
        %v1027 = vmul.f32 %v991, %v1019
        %v1028 = vmul.f32 %v992, %v1018
        %v1029 = vmul.f32 %v993, %v1019
        %v1030 = vmul.f32 %v994, %v1018
        %v1031 = vmul.f32 %v995, %v1019
        %v1032 = vmul.f32 %v996, %v1018
        %v1033 = vmul.f32 %v997, %v1019
        %v1034 = vmul.f32 %v998, %v1018
        %v1035 = vmul.f32 %v999, %v1019
        %v1036 = vmul.f32 %v1000, %v1018
        %v1037 = vmul.f32 %v1001, %v1019
        %v1038 = vmul.f32 %v1002, %v1018
        %v1039 = vmul.f32 %v1003, %v1019
        %v1040 = vmul.f32 %v1004, %v1018
        %v1041 = vmul.f32 %v1005, %v1019
        %v1042 = vmul.f32 %v1006, %v1018
        %v1043 = vmul.f32 %v1007, %v1019
        %v1044 = vmul.f32 %v1008, %v1018
        %v1045 = vmul.f32 %v1009, %v1019
        %v1046 = vmul.f32 %v1010, %v1018
        %v1047 = vmul.f32 %v1011, %v1019
        %v1048 = vmul.f32 %v1012, %v1018
        %v1049 = vmul.f32 %v1013, %v1019
        %v1050 = vmul.f32 %v1014, %v1018
        %v1051 = vmul.f32 %v1015, %v1019
        %v1052 = vxor.u32 %v1021, 2147483648
        %v1053 = vxor.u32 %v1023, 2147483648
        %v1054 = vxor.u32 %v1025, 2147483648
        %v1055 = vxor.u32 %v1027, 2147483648
        %v1056 = vxor.u32 %v1029, 2147483648
        %v1057 = vxor.u32 %v1031, 2147483648
        %v1058 = vxor.u32 %v1033, 2147483648
        %v1059 = vxor.u32 %v1035, 2147483648
        %v1060 = vxor.u32 %v1037, 2147483648
        %v1061 = vxor.u32 %v1039, 2147483648
        %v1062 = vxor.u32 %v1041, 2147483648
        %v1063 = vxor.u32 %v1043, 2147483648
        %v1064 = vxor.u32 %v1045, 2147483648
        %v1065 = vxor.u32 %v1047, 2147483648
        %v1066 = vxor.u32 %v1049, 2147483648
        %v1067 = vxor.u32 %v1051, 2147483648
        %v1068 = vmul.f32 %v1052, 1.442695
        %v1069 = vpow.pop %v1068
        %v1070 = vmul.f32 %v1053, 1.442695
        %v1071 = vpow.pop %v1070
        %v1072 = vmul.f32 %v1054, 1.442695
        %v1073 = vpow.pop %v1072
        %v1074 = vmul.f32 %v1055, 1.442695
        %v1075 = vpow.pop %v1074
        %v1076 = vmul.f32 %v1056, 1.442695
        %v1077 = vpow.pop %v1076
        %v1078 = vmul.f32 %v1057, 1.442695
        %v1079 = vpow.pop %v1078
        %v1080 = vmul.f32 %v1058, 1.442695
        %v1081 = vpow.pop %v1080
        %v1082 = vmul.f32 %v1059, 1.442695
        %v1083 = vpow.pop %v1082
        %v1084 = vmul.f32 %v1060, 1.442695
        %v1085 = vpow.pop %v1084
        %v1086 = vmul.f32 %v1061, 1.442695
        %v1087 = vpow.pop %v1086
        %v1088 = vmul.f32 %v1062, 1.442695
        %v1089 = vpow.pop %v1088
        %v1090 = vmul.f32 %v1063, 1.442695
        %v1091 = vpow.pop %v1090
        %v1092 = vmul.f32 %v1064, 1.442695
        %v1093 = vpow.pop %v1092
        %v1094 = vmul.f32 %v1065, 1.442695
        %v1095 = vpow.pop %v1094
        %v1096 = vmul.f32 %v1066, 1.442695
        %v1097 = vpow.pop %v1096
        %v1098 = vmul.f32 %v1067, 1.442695
        %v1099 = vpow.pop %v1098
        %v1100 = vadd.f32 %v1069, 1.0
        %v1101 = vadd.f32 %v1071, 1.0
        %v1102 = vadd.f32 %v1073, 1.0
        %v1103 = vadd.f32 %v1075, 1.0
        %v1104 = vadd.f32 %v1077, 1.0
        %v1105 = vadd.f32 %v1079, 1.0
        %v1106 = vadd.f32 %v1081, 1.0
        %v1107 = vadd.f32 %v1083, 1.0
        %v1108 = vadd.f32 %v1085, 1.0
        %v1109 = vadd.f32 %v1087, 1.0
        %v1110 = vadd.f32 %v1089, 1.0
        %v1111 = vadd.f32 %v1091, 1.0
        %v1112 = vadd.f32 %v1093, 1.0
        %v1113 = vadd.f32 %v1095, 1.0
        %v1114 = vadd.f32 %v1097, 1.0
        %v1115 = vadd.f32 %v1099, 1.0
        %v1116 = vrcp.pop %v1100
        %v1117 = vmul.f32 1.0, %v1116
        %v1118 = vrcp.pop %v1101
        %v1119 = vmul.f32 1.0, %v1118
        %v1120 = vrcp.pop %v1102
        %v1121 = vmul.f32 1.0, %v1120
        %v1122 = vrcp.pop %v1103
        %v1123 = vmul.f32 1.0, %v1122
        %v1124 = vrcp.pop %v1104
        %v1125 = vmul.f32 1.0, %v1124
        %v1126 = vrcp.pop %v1105
        %v1127 = vmul.f32 1.0, %v1126
        %v1128 = vrcp.pop %v1106
        %v1129 = vmul.f32 1.0, %v1128
        %v1130 = vrcp.pop %v1107
        %v1131 = vmul.f32 1.0, %v1130
        %v1132 = vrcp.pop %v1108
        %v1133 = vmul.f32 1.0, %v1132
        %v1134 = vrcp.pop %v1109
        %v1135 = vmul.f32 1.0, %v1134
        %v1136 = vrcp.pop %v1110
        %v1137 = vmul.f32 1.0, %v1136
        %v1138 = vrcp.pop %v1111
        %v1139 = vmul.f32 1.0, %v1138
        %v1140 = vrcp.pop %v1112
        %v1141 = vmul.f32 1.0, %v1140
        %v1142 = vrcp.pop %v1113
        %v1143 = vmul.f32 1.0, %v1142
        %v1144 = vrcp.pop %v1114
        %v1145 = vmul.f32 1.0, %v1144
        %v1146 = vrcp.pop %v1115
        %v1147 = vmul.f32 1.0, %v1146
        %v1148 = vmul.f32 %v1020, %v1117
        %v1149 = vmul.f32 %v1022, %v1119
        %v1150 = vmul.f32 %v1024, %v1121
        %v1151 = vmul.f32 %v1026, %v1123
        %v1152 = vmul.f32 %v1028, %v1125
        %v1153 = vmul.f32 %v1030, %v1127
        %v1154 = vmul.f32 %v1032, %v1129
        %v1155 = vmul.f32 %v1034, %v1131
        %v1156 = vmul.f32 %v1036, %v1133
        %v1157 = vmul.f32 %v1038, %v1135
        %v1158 = vmul.f32 %v1040, %v1137
        %v1159 = vmul.f32 %v1042, %v1139
        %v1160 = vmul.f32 %v1044, %v1141
        %v1161 = vmul.f32 %v1046, %v1143
        %v1162 = vmul.f32 %v1048, %v1145
        %v1163 = vmul.f32 %v1050, %v1147
        // Predicated region
        $region144: #{feat_transformer.1} parent=27 // pred_check
          %p1164 = pneg %p149
        $region145: #{feat_transformer.1} parent=27 // pred_check_branch
          %1166 = sbr.rel (%p1164) target = $region147
        $region146: #{feat_transformer.1} parent=27 // pred_region
          %s1167 = smul.u32 4, 16
          %s1168 = smul.u32 %s1167, 2
          %s1169 = sshll.u32 %s1168, 4
          %1170 = dma.done [#allocation5], %s1169
        $region147: #{feat_transformer.1} parent=27 // pred_fallthru
          _
        %v1171 = vld [vmem:[#allocation2] sm:$0xff]
        %v1172 = vld [vmem:[#allocation2 + $0x8] sm:$0xff]
        %v1173 = vld [vmem:[#allocation2 + $0x10] sm:$0xff]
        %v1174 = vld [vmem:[#allocation2 + $0x18] sm:$0xff]
        %v1175 = vld [vmem:[#allocation2 + $0x20] sm:$0xff]
        %v1176 = vld [vmem:[#allocation2 + $0x28] sm:$0xff]
        %v1177 = vld [vmem:[#allocation2 + $0x30] sm:$0xff]
        %v1178 = vld [vmem:[#allocation2 + $0x38] sm:$0xff]
        %v1179 = vld [vmem:[#allocation2 + $0x40] sm:$0xff]
        %v1180 = vld [vmem:[#allocation2 + $0x48] sm:$0xff]
        %v1181 = vld [vmem:[#allocation2 + $0x50] sm:$0xff]
        %v1182 = vld [vmem:[#allocation2 + $0x58] sm:$0xff]
        %v1183 = vld [vmem:[#allocation2 + $0x60] sm:$0xff]
        %v1184 = vld [vmem:[#allocation2 + $0x68] sm:$0xff]
        %v1185 = vld [vmem:[#allocation2 + $0x70] sm:$0xff]
        %v1186 = vld [vmem:[#allocation2 + $0x78] sm:$0xff]
        %v1187 = vpack.c.bf16 %v1149, %v1148
        %v1188 = vpack.c.bf16 %v1151, %v1150
        %v1189 = vpack.c.bf16 %v1153, %v1152
        %v1190 = vpack.c.bf16 %v1155, %v1154
        %v1191 = vpack.c.bf16 %v1157, %v1156
        %v1192 = vpack.c.bf16 %v1159, %v1158
        %v1193 = vpack.c.bf16 %v1161, %v1160
        %v1194 = vpack.c.bf16 %v1163, %v1162
        %1195 = vmatprep.subr.bf16.mxu0 %v1172
        %1196 = vmatpush1.bf16.msra.mxu0 %v1171
        %1197 = vmatprep.subr.bf16.mxu0 %v1174
        %1198 = vmatpush1.bf16.msra.mxu0 %v1173
        %1199 = vmatprep.subr.bf16.mxu0 %v1176
        %1200 = vmatpush1.bf16.msra.mxu0 %v1175
        %1201 = vmatprep.subr.bf16.mxu0 %v1178
        %1202 = vmatpush1.bf16.msra.mxu0 %v1177
        %1203 = vmatprep.subr.bf16.mxu0 %v1180
        %1204 = vmatpush1.bf16.msra.mxu0 %v1179
        %1205 = vmatprep.subr.bf16.mxu0 %v1182
        %1206 = vmatpush1.bf16.msra.mxu0 %v1181
        %1207 = vmatprep.subr.bf16.mxu0 %v1184
        %1208 = vmatpush1.bf16.msra.mxu0 %v1183
        %1209 = vmatprep.subr.bf16.mxu0 %v1186
        %1210 = vmatpush1.bf16.msra.mxu0 %v1185
        %1211 = vmatprep.subr.bf16.mxu0 0
        %1212 = vmatpush1.bf16.msra.mxu0 0
        %1213 = vmatprep.subr.bf16.mxu0 0
        %1214 = vmatpush1.bf16.msra.mxu0 0
        %1215 = vmatprep.subr.bf16.mxu0 0
        %1216 = vmatpush1.bf16.msra.mxu0 0
        %1217 = vmatprep.subr.bf16.mxu0 0
        %1218 = vmatpush1.bf16.msra.mxu0 0
        %1219 = vmatprep.subr.bf16.mxu0 0
        %1220 = vmatpush1.bf16.msra.mxu0 0
        %1221 = vmatprep.subr.bf16.mxu0 0
        %1222 = vmatpush1.bf16.msra.mxu0 0
        %1223 = vmatprep.subr.bf16.mxu0 0
        %1224 = vmatpush1.bf16.msra.mxu0 0
        %1225 = vmatprep.subr.bf16.mxu0 0
        %1226 = vmatpush1.bf16.msra.mxu0 0
        %1227 = vmatprep.mubr.bf16.mxu0 0
        %1228 = vmatmul.mubr.bf16.gmra.mrb[0].mxu0 %v1187
        %v1229 = vpop.f32.mrb[0].mxu0
        %v1230 = vadd.f32 0.0, %v1229
        %v1231 = vpop.f32.mrb[0].mxu0
        %v1232 = vadd.f32 0.0, %v1231
        %v1233 = vpop.f32.mrb[0].mxu0
        %v1234 = vadd.f32 0.0, %v1233
        %v1235 = vpop.f32.mrb[0].mxu0
        %v1236 = vadd.f32 0.0, %v1235
        %1237 = vmatprep.mubr.bf16.mxu0 0
        %1238 = vmatmul.mubr.bf16.gmra.mrb[0].mxu0 %v1188
        %v1239 = vpop.f32.mrb[0].mxu0
        %v1240 = vadd.f32 0.0, %v1239
        %v1241 = vpop.f32.mrb[0].mxu0
        %v1242 = vadd.f32 0.0, %v1241
        %v1243 = vpop.f32.mrb[0].mxu0
        %v1244 = vadd.f32 0.0, %v1243
        %v1245 = vpop.f32.mrb[0].mxu0
        %v1246 = vadd.f32 0.0, %v1245
        %1247 = vmatprep.mubr.bf16.mxu0 0
        %1248 = vmatmul.mubr.bf16.gmra.mrb[0].mxu0 %v1189
        %v1249 = vpop.f32.mrb[0].mxu0
        %v1250 = vadd.f32 0.0, %v1249
        %v1251 = vpop.f32.mrb[0].mxu0
        %v1252 = vadd.f32 0.0, %v1251
        %v1253 = vpop.f32.mrb[0].mxu0
        %v1254 = vadd.f32 0.0, %v1253
        %v1255 = vpop.f32.mrb[0].mxu0
        %v1256 = vadd.f32 0.0, %v1255
        %1257 = vmatprep.mubr.bf16.mxu0 0
        %1258 = vmatmul.mubr.bf16.gmra.mrb[0].mxu0 %v1190
        %v1259 = vpop.f32.mrb[0].mxu0
        %v1260 = vadd.f32 0.0, %v1259
        %v1261 = vpop.f32.mrb[0].mxu0
        %v1262 = vadd.f32 0.0, %v1261
        %v1263 = vpop.f32.mrb[0].mxu0
        %v1264 = vadd.f32 0.0, %v1263
        %v1265 = vpop.f32.mrb[0].mxu0
        %v1266 = vadd.f32 0.0, %v1265
        %1267 = vmatprep.mubr.bf16.mxu0 0
        %1268 = vmatmul.mubr.bf16.gmra.mrb[0].mxu0 %v1191
        %v1269 = vpop.f32.mrb[0].mxu0
        %v1270 = vadd.f32 0.0, %v1269
        %v1271 = vpop.f32.mrb[0].mxu0
        %v1272 = vadd.f32 0.0, %v1271
        %v1273 = vpop.f32.mrb[0].mxu0
        %v1274 = vadd.f32 0.0, %v1273
        %v1275 = vpop.f32.mrb[0].mxu0
        %v1276 = vadd.f32 0.0, %v1275
        %1277 = vmatprep.mubr.bf16.mxu0 0
        %1278 = vmatmul.mubr.bf16.gmra.mrb[0].mxu0 %v1192
        %v1279 = vpop.f32.mrb[0].mxu0
        %v1280 = vadd.f32 0.0, %v1279
        %v1281 = vpop.f32.mrb[0].mxu0
        %v1282 = vadd.f32 0.0, %v1281
        %v1283 = vpop.f32.mrb[0].mxu0
        %v1284 = vadd.f32 0.0, %v1283
        %v1285 = vpop.f32.mrb[0].mxu0
        %v1286 = vadd.f32 0.0, %v1285
        %1287 = vmatprep.mubr.bf16.mxu0 0
        %1288 = vmatmul.mubr.bf16.gmra.mrb[0].mxu0 %v1193
        %v1289 = vpop.f32.mrb[0].mxu0
        %v1290 = vadd.f32 0.0, %v1289
        %v1291 = vpop.f32.mrb[0].mxu0
        %v1292 = vadd.f32 0.0, %v1291
        %v1293 = vpop.f32.mrb[0].mxu0
        %v1294 = vadd.f32 0.0, %v1293
        %v1295 = vpop.f32.mrb[0].mxu0
        %v1296 = vadd.f32 0.0, %v1295
        %1297 = vmatprep.mubr.bf16.mxu0 0
        %1298 = vmatmul.mubr.bf16.gmra.mrb[0].mxu0 %v1194
        %v1299 = vpop.f32.mrb[0].mxu0
        %v1300 = vadd.f32 0.0, %v1299
        %v1301 = vpop.f32.mrb[0].mxu0
        %v1302 = vadd.f32 0.0, %v1301
        %v1303 = vpop.f32.mrb[0].mxu0
        %v1304 = vadd.f32 0.0, %v1303
        %v1305 = vpop.f32.mrb[0].mxu0
        %v1306 = vadd.f32 0.0, %v1305
        %1307 = vdwg.mxu0
        %v1308 = vadd.f32 %v1230, %v1234
        %v1309 = vadd.f32 %v1308, %v1240
        %v1310 = vadd.f32 %v1309, %v1244
        %v1311 = vadd.f32 %v1310, %v1250
        %v1312 = vadd.f32 %v1311, %v1254
        %v1313 = vadd.f32 %v1312, %v1260
        %v1314 = vadd.f32 %v1313, %v1264
        %v1315 = vadd.f32 %v1314, %v1270
        %v1316 = vadd.f32 %v1315, %v1274
        %v1317 = vadd.f32 %v1316, %v1280
        %v1318 = vadd.f32 %v1317, %v1284
        %v1319 = vadd.f32 %v1318, %v1290
        %v1320 = vadd.f32 %v1319, %v1294
        %v1321 = vadd.f32 %v1320, %v1300
        %v1322 = vadd.f32 %v1321, %v1304
        %v1323 = vrot.slane %v1322, 4
        %v1324 = vadd.f32 %v1322, %v1323
        %v1325 = vrot.slane %v1324, 2
        %v1326 = vadd.f32 %v1324, %v1325
        %v1327 = vrot.slane %v1326, 1
        %v1328 = vadd.f32 %v1326, %v1327
        %v1329 = vadd.f32 %v1232, %v1236
        %v1330 = vadd.f32 %v1329, %v1242
        %v1331 = vadd.f32 %v1330, %v1246
        %v1332 = vadd.f32 %v1331, %v1252
        %v1333 = vadd.f32 %v1332, %v1256
        %v1334 = vadd.f32 %v1333, %v1262
        %v1335 = vadd.f32 %v1334, %v1266
        %v1336 = vadd.f32 %v1335, %v1272
        %v1337 = vadd.f32 %v1336, %v1276
        %v1338 = vadd.f32 %v1337, %v1282
        %v1339 = vadd.f32 %v1338, %v1286
        %v1340 = vadd.f32 %v1339, %v1292
        %v1341 = vadd.f32 %v1340, %v1296
        %v1342 = vadd.f32 %v1341, %v1302
        %v1343 = vadd.f32 %v1342, %v1306
        %v1344 = vrot.slane %v1343, 4
        %v1345 = vadd.f32 %v1343, %v1344
        %v1346 = vrot.slane %v1345, 2
        %v1347 = vadd.f32 %v1345, %v1346
        %v1348 = vrot.slane %v1347, 1
        %v1349 = vadd.f32 %v1347, %v1348
        %v1350 = vmul.f32 %v1328, %v899
        %v1351 = vmul.f32 %v1349, %v899
        %v1352 = vmul.f32 %v1230, %v1230
        %v1353 = vmul.f32 %v1232, %v1232
        %v1354 = vmul.f32 %v1234, %v1234
        %v1355 = vmul.f32 %v1236, %v1236
        %v1356 = vmul.f32 %v1240, %v1240
        %v1357 = vmul.f32 %v1242, %v1242
        %v1358 = vmul.f32 %v1244, %v1244
        %v1359 = vmul.f32 %v1246, %v1246
        %v1360 = vmul.f32 %v1250, %v1250
        %v1361 = vmul.f32 %v1252, %v1252
        %v1362 = vmul.f32 %v1254, %v1254
        %v1363 = vmul.f32 %v1256, %v1256
        %v1364 = vmul.f32 %v1260, %v1260
        %v1365 = vmul.f32 %v1262, %v1262
        %v1366 = vmul.f32 %v1264, %v1264
        %v1367 = vmul.f32 %v1266, %v1266
        %v1368 = vmul.f32 %v1270, %v1270
        %v1369 = vmul.f32 %v1272, %v1272
        %v1370 = vmul.f32 %v1274, %v1274
        %v1371 = vmul.f32 %v1276, %v1276
        %v1372 = vmul.f32 %v1280, %v1280
        %v1373 = vmul.f32 %v1282, %v1282
        %v1374 = vmul.f32 %v1284, %v1284
        %v1375 = vmul.f32 %v1286, %v1286
        %v1376 = vmul.f32 %v1290, %v1290
        %v1377 = vmul.f32 %v1292, %v1292
        %v1378 = vmul.f32 %v1294, %v1294
        %v1379 = vmul.f32 %v1296, %v1296
        %v1380 = vmul.f32 %v1300, %v1300
        %v1381 = vmul.f32 %v1302, %v1302
        %v1382 = vmul.f32 %v1304, %v1304
        %v1383 = vmul.f32 %v1306, %v1306
        %v1384 = vadd.f32 %v1352, %v1354
        %v1385 = vadd.f32 %v1384, %v1356
        %v1386 = vadd.f32 %v1385, %v1358
        %v1387 = vadd.f32 %v1386, %v1360
        %v1388 = vadd.f32 %v1387, %v1362
        %v1389 = vadd.f32 %v1388, %v1364
        %v1390 = vadd.f32 %v1389, %v1366
        %v1391 = vadd.f32 %v1390, %v1368
        %v1392 = vadd.f32 %v1391, %v1370
        %v1393 = vadd.f32 %v1392, %v1372
        %v1394 = vadd.f32 %v1393, %v1374
        %v1395 = vadd.f32 %v1394, %v1376
        %v1396 = vadd.f32 %v1395, %v1378
        %v1397 = vadd.f32 %v1396, %v1380
        %v1398 = vadd.f32 %v1397, %v1382
        %v1399 = vrot.slane %v1398, 4
        %v1400 = vadd.f32 %v1398, %v1399
        %v1401 = vrot.slane %v1400, 2
        %v1402 = vadd.f32 %v1400, %v1401
        %v1403 = vrot.slane %v1402, 1
        %v1404 = vadd.f32 %v1402, %v1403
        %v1405 = vadd.f32 %v1353, %v1355
        %v1406 = vadd.f32 %v1405, %v1357
        %v1407 = vadd.f32 %v1406, %v1359
        %v1408 = vadd.f32 %v1407, %v1361
        %v1409 = vadd.f32 %v1408, %v1363
        %v1410 = vadd.f32 %v1409, %v1365
        %v1411 = vadd.f32 %v1410, %v1367
        %v1412 = vadd.f32 %v1411, %v1369
        %v1413 = vadd.f32 %v1412, %v1371
        %v1414 = vadd.f32 %v1413, %v1373
        %v1415 = vadd.f32 %v1414, %v1375
        %v1416 = vadd.f32 %v1415, %v1377
        %v1417 = vadd.f32 %v1416, %v1379
        %v1418 = vadd.f32 %v1417, %v1381
        %v1419 = vadd.f32 %v1418, %v1383
        %v1420 = vrot.slane %v1419, 4
        %v1421 = vadd.f32 %v1419, %v1420
        %v1422 = vrot.slane %v1421, 2
        %v1423 = vadd.f32 %v1421, %v1422
        %v1424 = vrot.slane %v1423, 1
        %v1425 = vadd.f32 %v1423, %v1424
        %v1426 = vmul.f32 %v1404, %v899
        %v1427 = vmul.f32 %v1425, %v899
        %v1428 = vmul.f32 %v1350, %v1350
        %v1429 = vmul.f32 %v1351, %v1351
        %v1430 = vsub.f32 %v1426, %v1428
        %v1431 = vsub.f32 %v1427, %v1429
        %v1432 = vmax.f32 %v1430, 0.0
        %v1433 = vmax.f32 %v1431, 0.0
        %v1434 = vsub.f32 %v1230, %v1350
        %v1435 = vsub.f32 %v1232, %v1351
        %v1436 = vsub.f32 %v1234, %v1350
        %v1437 = vsub.f32 %v1236, %v1351
        %v1438 = vsub.f32 %v1240, %v1350
        %v1439 = vsub.f32 %v1242, %v1351
        %v1440 = vsub.f32 %v1244, %v1350
        %v1441 = vsub.f32 %v1246, %v1351
        %v1442 = vsub.f32 %v1250, %v1350
        %v1443 = vsub.f32 %v1252, %v1351
        %v1444 = vsub.f32 %v1254, %v1350
        %v1445 = vsub.f32 %v1256, %v1351
        %v1446 = vsub.f32 %v1260, %v1350
        %v1447 = vsub.f32 %v1262, %v1351
        %v1448 = vsub.f32 %v1264, %v1350
        %v1449 = vsub.f32 %v1266, %v1351
        %v1450 = vsub.f32 %v1270, %v1350
        %v1451 = vsub.f32 %v1272, %v1351
        %v1452 = vsub.f32 %v1274, %v1350
        %v1453 = vsub.f32 %v1276, %v1351
        %v1454 = vsub.f32 %v1280, %v1350
        %v1455 = vsub.f32 %v1282, %v1351
        %v1456 = vsub.f32 %v1284, %v1350
        %v1457 = vsub.f32 %v1286, %v1351
        %v1458 = vsub.f32 %v1290, %v1350
        %v1459 = vsub.f32 %v1292, %v1351
        %v1460 = vsub.f32 %v1294, %v1350
        %v1461 = vsub.f32 %v1296, %v1351
        %v1462 = vsub.f32 %v1300, %v1350
        %v1463 = vsub.f32 %v1302, %v1351
        %v1464 = vsub.f32 %v1304, %v1350
        %v1465 = vsub.f32 %v1306, %v1351
        %v1466 = vadd.f32 %v1432, 1e-05
        %v1467 = vadd.f32 %v1433, 1e-05
        %v1468 = vrsqrt.pop %v1466
        %v1469 = vrsqrt.pop %v1467
        %v1470 = vmul.f32 %v1434, %v1468
        %v1471 = vmul.f32 %v1435, %v1469
        %v1472 = vmul.f32 %v1436, %v1468
        %v1473 = vmul.f32 %v1437, %v1469
        %v1474 = vmul.f32 %v1438, %v1468
        %v1475 = vmul.f32 %v1439, %v1469
        %v1476 = vmul.f32 %v1440, %v1468
        %v1477 = vmul.f32 %v1441, %v1469
        %v1478 = vmul.f32 %v1442, %v1468
        %v1479 = vmul.f32 %v1443, %v1469
        %v1480 = vmul.f32 %v1444, %v1468
        %v1481 = vmul.f32 %v1445, %v1469
        %v1482 = vmul.f32 %v1446, %v1468
        %v1483 = vmul.f32 %v1447, %v1469
        %v1484 = vmul.f32 %v1448, %v1468
        %v1485 = vmul.f32 %v1449, %v1469
        %v1486 = vmul.f32 %v1450, %v1468
        %v1487 = vmul.f32 %v1451, %v1469
        %v1488 = vmul.f32 %v1452, %v1468
        %v1489 = vmul.f32 %v1453, %v1469
        %v1490 = vmul.f32 %v1454, %v1468
        %v1491 = vmul.f32 %v1455, %v1469
        %v1492 = vmul.f32 %v1456, %v1468
        %v1493 = vmul.f32 %v1457, %v1469
        %v1494 = vmul.f32 %v1458, %v1468
        %v1495 = vmul.f32 %v1459, %v1469
        %v1496 = vmul.f32 %v1460, %v1468
        %v1497 = vmul.f32 %v1461, %v1469
        %v1498 = vmul.f32 %v1462, %v1468
        %v1499 = vmul.f32 %v1463, %v1469
        %v1500 = vmul.f32 %v1464, %v1468
        %v1501 = vmul.f32 %v1465, %v1469
        %v1502 = vxor.u32 %v1471, 2147483648
        %v1503 = vxor.u32 %v1473, 2147483648
        %v1504 = vxor.u32 %v1475, 2147483648
        %v1505 = vxor.u32 %v1477, 2147483648
        %v1506 = vxor.u32 %v1479, 2147483648
        %v1507 = vxor.u32 %v1481, 2147483648
        %v1508 = vxor.u32 %v1483, 2147483648
        %v1509 = vxor.u32 %v1485, 2147483648
        %v1510 = vxor.u32 %v1487, 2147483648
        %v1511 = vxor.u32 %v1489, 2147483648
        %v1512 = vxor.u32 %v1491, 2147483648
        %v1513 = vxor.u32 %v1493, 2147483648
        %v1514 = vxor.u32 %v1495, 2147483648
        %v1515 = vxor.u32 %v1497, 2147483648
        %v1516 = vxor.u32 %v1499, 2147483648
        %v1517 = vxor.u32 %v1501, 2147483648
        %v1518 = vmul.f32 %v1502, 1.442695
        %v1519 = vpow.pop %v1518
        %v1520 = vmul.f32 %v1503, 1.442695
        %v1521 = vpow.pop %v1520
        %v1522 = vmul.f32 %v1504, 1.442695
        %v1523 = vpow.pop %v1522
        %v1524 = vmul.f32 %v1505, 1.442695
        %v1525 = vpow.pop %v1524
        %v1526 = vmul.f32 %v1506, 1.442695
        %v1527 = vpow.pop %v1526
        %v1528 = vmul.f32 %v1507, 1.442695
        %v1529 = vpow.pop %v1528
        %v1530 = vmul.f32 %v1508, 1.442695
        %v1531 = vpow.pop %v1530
        %v1532 = vmul.f32 %v1509, 1.442695
        %v1533 = vpow.pop %v1532
        %v1534 = vmul.f32 %v1510, 1.442695
        %v1535 = vpow.pop %v1534
        %v1536 = vmul.f32 %v1511, 1.442695
        %v1537 = vpow.pop %v1536
        %v1538 = vmul.f32 %v1512, 1.442695
        %v1539 = vpow.pop %v1538
        %v1540 = vmul.f32 %v1513, 1.442695
        %v1541 = vpow.pop %v1540
        %v1542 = vmul.f32 %v1514, 1.442695
        %v1543 = vpow.pop %v1542
        %v1544 = vmul.f32 %v1515, 1.442695
        %v1545 = vpow.pop %v1544
        %v1546 = vmul.f32 %v1516, 1.442695
        %v1547 = vpow.pop %v1546
        %v1548 = vmul.f32 %v1517, 1.442695
        %v1549 = vpow.pop %v1548
        %v1550 = vadd.f32 %v1519, 1.0
        %v1551 = vadd.f32 %v1521, 1.0
        %v1552 = vadd.f32 %v1523, 1.0
        %v1553 = vadd.f32 %v1525, 1.0
        %v1554 = vadd.f32 %v1527, 1.0
        %v1555 = vadd.f32 %v1529, 1.0
        %v1556 = vadd.f32 %v1531, 1.0
        %v1557 = vadd.f32 %v1533, 1.0
        %v1558 = vadd.f32 %v1535, 1.0
        %v1559 = vadd.f32 %v1537, 1.0
        %v1560 = vadd.f32 %v1539, 1.0
        %v1561 = vadd.f32 %v1541, 1.0
        %v1562 = vadd.f32 %v1543, 1.0
        %v1563 = vadd.f32 %v1545, 1.0
        %v1564 = vadd.f32 %v1547, 1.0
        %v1565 = vadd.f32 %v1549, 1.0
        %v1566 = vrcp.pop %v1550
        %v1567 = vmul.f32 1.0, %v1566
        %v1568 = vrcp.pop %v1551
        %v1569 = vmul.f32 1.0, %v1568
        %v1570 = vrcp.pop %v1552
        %v1571 = vmul.f32 1.0, %v1570
        %v1572 = vrcp.pop %v1553
        %v1573 = vmul.f32 1.0, %v1572
        %v1574 = vrcp.pop %v1554
        %v1575 = vmul.f32 1.0, %v1574
        %v1576 = vrcp.pop %v1555
        %v1577 = vmul.f32 1.0, %v1576
        %v1578 = vrcp.pop %v1556
        %v1579 = vmul.f32 1.0, %v1578
        %v1580 = vrcp.pop %v1557
        %v1581 = vmul.f32 1.0, %v1580
        %v1582 = vrcp.pop %v1558
        %v1583 = vmul.f32 1.0, %v1582
        %v1584 = vrcp.pop %v1559
        %v1585 = vmul.f32 1.0, %v1584
        %v1586 = vrcp.pop %v1560
        %v1587 = vmul.f32 1.0, %v1586
        %v1588 = vrcp.pop %v1561
        %v1589 = vmul.f32 1.0, %v1588
        %v1590 = vrcp.pop %v1562
        %v1591 = vmul.f32 1.0, %v1590
        %v1592 = vrcp.pop %v1563
        %v1593 = vmul.f32 1.0, %v1592
        %v1594 = vrcp.pop %v1564
        %v1595 = vmul.f32 1.0, %v1594
        %v1596 = vrcp.pop %v1565
        %v1597 = vmul.f32 1.0, %v1596
        %v1598 = vmul.f32 %v1470, %v1567
        %v1599 = vmul.f32 %v1472, %v1569
        %v1600 = vmul.f32 %v1474, %v1571
        %v1601 = vmul.f32 %v1476, %v1573
        %v1602 = vmul.f32 %v1478, %v1575
        %v1603 = vmul.f32 %v1480, %v1577
        %v1604 = vmul.f32 %v1482, %v1579
        %v1605 = vmul.f32 %v1484, %v1581
        %v1606 = vmul.f32 %v1486, %v1583
        %v1607 = vmul.f32 %v1488, %v1585
        %v1608 = vmul.f32 %v1490, %v1587
        %v1609 = vmul.f32 %v1492, %v1589
        %v1610 = vmul.f32 %v1494, %v1591
        %v1611 = vmul.f32 %v1496, %v1593
        %v1612 = vmul.f32 %v1498, %v1595
        %v1613 = vmul.f32 %v1500, %v1597
        %v1614 = vadd.f32 %v1148, %v1598
        %v1615 = vadd.f32 %v1149, %v1599
        %v1616 = vadd.f32 %v1150, %v1600
        %v1617 = vadd.f32 %v1151, %v1601
        %v1618 = vadd.f32 %v1152, %v1602
        %v1619 = vadd.f32 %v1153, %v1603
        %v1620 = vadd.f32 %v1154, %v1604
        %v1621 = vadd.f32 %v1155, %v1605
        %v1622 = vadd.f32 %v1156, %v1606
        %v1623 = vadd.f32 %v1157, %v1607
        %v1624 = vadd.f32 %v1158, %v1608
        %v1625 = vadd.f32 %v1159, %v1609
        %v1626 = vadd.f32 %v1160, %v1610
        %v1627 = vadd.f32 %v1161, %v1611
        %v1628 = vadd.f32 %v1162, %v1612
        %v1629 = vadd.f32 %v1163, %v1613
        %v1630 = vmul.f32 %v1614, 0.70710677
        %v1631 = vmul.f32 %v1615, 0.70710677
        %v1632 = vmul.f32 %v1616, 0.70710677
        %v1633 = vmul.f32 %v1617, 0.70710677
        %v1634 = vmul.f32 %v1618, 0.70710677
        %v1635 = vmul.f32 %v1619, 0.70710677
        %v1636 = vmul.f32 %v1620, 0.70710677
        %v1637 = vmul.f32 %v1621, 0.70710677
        %v1638 = vmul.f32 %v1622, 0.70710677
        %v1639 = vmul.f32 %v1623, 0.70710677
        %v1640 = vmul.f32 %v1624, 0.70710677
        %v1641 = vmul.f32 %v1625, 0.70710677
        %v1642 = vmul.f32 %v1626, 0.70710677
        %v1643 = vmul.f32 %v1627, 0.70710677
        %v1644 = vmul.f32 %v1628, 0.70710677
        %v1645 = vmul.f32 %v1629, 0.70710677
        // Predicated region
        $region148: #{feat_transformer.1} parent=27 // pred_check
          %p1646 = pneg %p149
        $region149: #{feat_transformer.1} parent=27 // pred_check_branch
          %1648 = sbr.rel (%p1646) target = $region151
        $region150: #{feat_transformer.1} parent=27 // pred_region
          %s1649 = scalar_lea.sflag [#allocation5], 1
          %s1650 = smul.u32 4, 16
          %s1651 = smul.u32 %s1650, 2
          %s1652 = sshll.u32 %s1651, 4
          %1653 = dma.done %s1649, %s1652
        $region151: #{feat_transformer.1} parent=27 // pred_fallthru
          _
        %v1654 = vld [vmem:[#allocation3] sm:$0xff]
        %v1655 = vld [vmem:[#allocation3 + $0x8] sm:$0xff]
        %v1656 = vld [vmem:[#allocation3 + $0x10] sm:$0xff]
        %v1657 = vld [vmem:[#allocation3 + $0x18] sm:$0xff]
        %v1658 = vld [vmem:[#allocation3 + $0x20] sm:$0xff]
        %v1659 = vld [vmem:[#allocation3 + $0x28] sm:$0xff]
        %v1660 = vld [vmem:[#allocation3 + $0x30] sm:$0xff]
        %v1661 = vld [vmem:[#allocation3 + $0x38] sm:$0xff]
        %v1662 = vld [vmem:[#allocation3 + $0x40] sm:$0xff]
        %v1663 = vld [vmem:[#allocation3 + $0x48] sm:$0xff]
        %v1664 = vld [vmem:[#allocation3 + $0x50] sm:$0xff]
        %v1665 = vld [vmem:[#allocation3 + $0x58] sm:$0xff]
        %v1666 = vld [vmem:[#allocation3 + $0x60] sm:$0xff]
        %v1667 = vld [vmem:[#allocation3 + $0x68] sm:$0xff]
        %v1668 = vld [vmem:[#allocation3 + $0x70] sm:$0xff]
        %v1669 = vld [vmem:[#allocation3 + $0x78] sm:$0xff]
        %v1670 = vpack.c.bf16 %v1631, %v1630
        %v1671 = vpack.c.bf16 %v1633, %v1632
        %v1672 = vpack.c.bf16 %v1635, %v1634
        %v1673 = vpack.c.bf16 %v1637, %v1636
        %v1674 = vpack.c.bf16 %v1639, %v1638
        %v1675 = vpack.c.bf16 %v1641, %v1640
        %v1676 = vpack.c.bf16 %v1643, %v1642
        %v1677 = vpack.c.bf16 %v1645, %v1644
        %1678 = vmatprep.subr.bf16.mxu0 %v1655
        %1679 = vmatpush1.bf16.msra.mxu0 %v1654
        %1680 = vmatprep.subr.bf16.mxu0 %v1657
        %1681 = vmatpush1.bf16.msra.mxu0 %v1656
        %1682 = vmatprep.subr.bf16.mxu0 %v1659
        %1683 = vmatpush1.bf16.msra.mxu0 %v1658
        %1684 = vmatprep.subr.bf16.mxu0 %v1661
        %1685 = vmatpush1.bf16.msra.mxu0 %v1660
        %1686 = vmatprep.subr.bf16.mxu0 %v1663
        %1687 = vmatpush1.bf16.msra.mxu0 %v1662
        %1688 = vmatprep.subr.bf16.mxu0 %v1665
        %1689 = vmatpush1.bf16.msra.mxu0 %v1664
        %1690 = vmatprep.subr.bf16.mxu0 %v1667
        %1691 = vmatpush1.bf16.msra.mxu0 %v1666
        %1692 = vmatprep.subr.bf16.mxu0 %v1669
        %1693 = vmatpush1.bf16.msra.mxu0 %v1668
        %1694 = vmatprep.subr.bf16.mxu0 0
        %1695 = vmatpush1.bf16.msra.mxu0 0
        %1696 = vmatprep.subr.bf16.mxu0 0
        %1697 = vmatpush1.bf16.msra.mxu0 0
        %1698 = vmatprep.subr.bf16.mxu0 0
        %1699 = vmatpush1.bf16.msra.mxu0 0
        %1700 = vmatprep.subr.bf16.mxu0 0
        %1701 = vmatpush1.bf16.msra.mxu0 0
        %1702 = vmatprep.subr.bf16.mxu0 0
        %1703 = vmatpush1.bf16.msra.mxu0 0
        %1704 = vmatprep.subr.bf16.mxu0 0
        %1705 = vmatpush1.bf16.msra.mxu0 0
        %1706 = vmatprep.subr.bf16.mxu0 0
        %1707 = vmatpush1.bf16.msra.mxu0 0
        %1708 = vmatprep.subr.bf16.mxu0 0
        %1709 = vmatpush1.bf16.msra.mxu0 0
        %1710 = vmatprep.mubr.bf16.mxu0 0
        %1711 = vmatmul.mubr.bf16.gmra.mrb[0].mxu0 %v1670
        %v1712 = vpop.f32.mrb[0].mxu0
        %v1713 = vadd.f32 0.0, %v1712
        %v1714 = vpop.f32.mrb[0].mxu0
        %v1715 = vadd.f32 0.0, %v1714
        %v1716 = vpop.f32.mrb[0].mxu0
        %v1717 = vadd.f32 0.0, %v1716
        %v1718 = vpop.f32.mrb[0].mxu0
        %v1719 = vadd.f32 0.0, %v1718
        %1720 = vmatprep.mubr.bf16.mxu0 0
        %1721 = vmatmul.mubr.bf16.gmra.mrb[0].mxu0 %v1671
        %v1722 = vpop.f32.mrb[0].mxu0
        %v1723 = vadd.f32 0.0, %v1722
        %v1724 = vpop.f32.mrb[0].mxu0
        %v1725 = vadd.f32 0.0, %v1724
        %v1726 = vpop.f32.mrb[0].mxu0
        %v1727 = vadd.f32 0.0, %v1726
        %v1728 = vpop.f32.mrb[0].mxu0
        %v1729 = vadd.f32 0.0, %v1728
        %1730 = vmatprep.mubr.bf16.mxu0 0
        %1731 = vmatmul.mubr.bf16.gmra.mrb[0].mxu0 %v1672
        %v1732 = vpop.f32.mrb[0].mxu0
        %v1733 = vadd.f32 0.0, %v1732
        %v1734 = vpop.f32.mrb[0].mxu0
        %v1735 = vadd.f32 0.0, %v1734
        %v1736 = vpop.f32.mrb[0].mxu0
        %v1737 = vadd.f32 0.0, %v1736
        %v1738 = vpop.f32.mrb[0].mxu0
        %v1739 = vadd.f32 0.0, %v1738
        %1740 = vmatprep.mubr.bf16.mxu0 0
        %1741 = vmatmul.mubr.bf16.gmra.mrb[0].mxu0 %v1673
        %v1742 = vpop.f32.mrb[0].mxu0
        %v1743 = vadd.f32 0.0, %v1742
        %v1744 = vpop.f32.mrb[0].mxu0
        %v1745 = vadd.f32 0.0, %v1744
        %v1746 = vpop.f32.mrb[0].mxu0
        %v1747 = vadd.f32 0.0, %v1746
        %v1748 = vpop.f32.mrb[0].mxu0
        %v1749 = vadd.f32 0.0, %v1748
        %1750 = vmatprep.mubr.bf16.mxu0 0
        %1751 = vmatmul.mubr.bf16.gmra.mrb[0].mxu0 %v1674
        %v1752 = vpop.f32.mrb[0].mxu0
        %v1753 = vadd.f32 0.0, %v1752
        %v1754 = vpop.f32.mrb[0].mxu0
        %v1755 = vadd.f32 0.0, %v1754
        %v1756 = vpop.f32.mrb[0].mxu0
        %v1757 = vadd.f32 0.0, %v1756
        %v1758 = vpop.f32.mrb[0].mxu0
        %v1759 = vadd.f32 0.0, %v1758
        %1760 = vmatprep.mubr.bf16.mxu0 0
        %1761 = vmatmul.mubr.bf16.gmra.mrb[0].mxu0 %v1675
        %v1762 = vpop.f32.mrb[0].mxu0
        %v1763 = vadd.f32 0.0, %v1762
        %v1764 = vpop.f32.mrb[0].mxu0
        %v1765 = vadd.f32 0.0, %v1764
        %v1766 = vpop.f32.mrb[0].mxu0
        %v1767 = vadd.f32 0.0, %v1766
        %v1768 = vpop.f32.mrb[0].mxu0
        %v1769 = vadd.f32 0.0, %v1768
        %1770 = vmatprep.mubr.bf16.mxu0 0
        %1771 = vmatmul.mubr.bf16.gmra.mrb[0].mxu0 %v1676
        %v1772 = vpop.f32.mrb[0].mxu0
        %v1773 = vadd.f32 0.0, %v1772
        %v1774 = vpop.f32.mrb[0].mxu0
        %v1775 = vadd.f32 0.0, %v1774
        %v1776 = vpop.f32.mrb[0].mxu0
        %v1777 = vadd.f32 0.0, %v1776
        %v1778 = vpop.f32.mrb[0].mxu0
        %v1779 = vadd.f32 0.0, %v1778
        %1780 = vmatprep.mubr.bf16.mxu0 0
        %1781 = vmatmul.mubr.bf16.gmra.mrb[0].mxu0 %v1677
        %v1782 = vpop.f32.mrb[0].mxu0
        %v1783 = vadd.f32 0.0, %v1782
        %v1784 = vpop.f32.mrb[0].mxu0
        %v1785 = vadd.f32 0.0, %v1784
        %v1786 = vpop.f32.mrb[0].mxu0
        %v1787 = vadd.f32 0.0, %v1786
        %v1788 = vpop.f32.mrb[0].mxu0
        %v1789 = vadd.f32 0.0, %v1788
        %1790 = vdwg.mxu0
        %v1791 = vadd.f32 %v1713, %v1717
        %v1792 = vadd.f32 %v1791, %v1723
        %v1793 = vadd.f32 %v1792, %v1727
        %v1794 = vadd.f32 %v1793, %v1733
        %v1795 = vadd.f32 %v1794, %v1737
        %v1796 = vadd.f32 %v1795, %v1743
        %v1797 = vadd.f32 %v1796, %v1747
        %v1798 = vadd.f32 %v1797, %v1753
        %v1799 = vadd.f32 %v1798, %v1757
        %v1800 = vadd.f32 %v1799, %v1763
        %v1801 = vadd.f32 %v1800, %v1767
        %v1802 = vadd.f32 %v1801, %v1773
        %v1803 = vadd.f32 %v1802, %v1777
        %v1804 = vadd.f32 %v1803, %v1783
        %v1805 = vadd.f32 %v1804, %v1787
        %v1806 = vrot.slane %v1805, 4
        %v1807 = vadd.f32 %v1805, %v1806
        %v1808 = vrot.slane %v1807, 2
        %v1809 = vadd.f32 %v1807, %v1808
        %v1810 = vrot.slane %v1809, 1
        %v1811 = vadd.f32 %v1809, %v1810
        %v1812 = vadd.f32 %v1715, %v1719
        %v1813 = vadd.f32 %v1812, %v1725
        %v1814 = vadd.f32 %v1813, %v1729
        %v1815 = vadd.f32 %v1814, %v1735
        %v1816 = vadd.f32 %v1815, %v1739
        %v1817 = vadd.f32 %v1816, %v1745
        %v1818 = vadd.f32 %v1817, %v1749
        %v1819 = vadd.f32 %v1818, %v1755
        %v1820 = vadd.f32 %v1819, %v1759
        %v1821 = vadd.f32 %v1820, %v1765
        %v1822 = vadd.f32 %v1821, %v1769
        %v1823 = vadd.f32 %v1822, %v1775
        %v1824 = vadd.f32 %v1823, %v1779
        %v1825 = vadd.f32 %v1824, %v1785
        %v1826 = vadd.f32 %v1825, %v1789
        %v1827 = vrot.slane %v1826, 4
        %v1828 = vadd.f32 %v1826, %v1827
        %v1829 = vrot.slane %v1828, 2
        %v1830 = vadd.f32 %v1828, %v1829
        %v1831 = vrot.slane %v1830, 1
        %v1832 = vadd.f32 %v1830, %v1831
        %v1833 = vmul.f32 %v1811, %v899
        %v1834 = vmul.f32 %v1832, %v899
        %v1835 = vmul.f32 %v1713, %v1713
        %v1836 = vmul.f32 %v1715, %v1715
        %v1837 = vmul.f32 %v1717, %v1717
        %v1838 = vmul.f32 %v1719, %v1719
        %v1839 = vmul.f32 %v1723, %v1723
        %v1840 = vmul.f32 %v1725, %v1725
        %v1841 = vmul.f32 %v1727, %v1727
        %v1842 = vmul.f32 %v1729, %v1729
        %v1843 = vmul.f32 %v1733, %v1733
        %v1844 = vmul.f32 %v1735, %v1735
        %v1845 = vmul.f32 %v1737, %v1737
        %v1846 = vmul.f32 %v1739, %v1739
        %v1847 = vmul.f32 %v1743, %v1743
        %v1848 = vmul.f32 %v1745, %v1745
        %v1849 = vmul.f32 %v1747, %v1747
        %v1850 = vmul.f32 %v1749, %v1749
        %v1851 = vmul.f32 %v1753, %v1753
        %v1852 = vmul.f32 %v1755, %v1755
        %v1853 = vmul.f32 %v1757, %v1757
        %v1854 = vmul.f32 %v1759, %v1759
        %v1855 = vmul.f32 %v1763, %v1763
        %v1856 = vmul.f32 %v1765, %v1765
        %v1857 = vmul.f32 %v1767, %v1767
        %v1858 = vmul.f32 %v1769, %v1769
        %v1859 = vmul.f32 %v1773, %v1773
        %v1860 = vmul.f32 %v1775, %v1775
        %v1861 = vmul.f32 %v1777, %v1777
        %v1862 = vmul.f32 %v1779, %v1779
        %v1863 = vmul.f32 %v1783, %v1783
        %v1864 = vmul.f32 %v1785, %v1785
        %v1865 = vmul.f32 %v1787, %v1787
        %v1866 = vmul.f32 %v1789, %v1789
        %v1867 = vadd.f32 %v1835, %v1837
        %v1868 = vadd.f32 %v1867, %v1839
        %v1869 = vadd.f32 %v1868, %v1841
        %v1870 = vadd.f32 %v1869, %v1843
        %v1871 = vadd.f32 %v1870, %v1845
        %v1872 = vadd.f32 %v1871, %v1847
        %v1873 = vadd.f32 %v1872, %v1849
        %v1874 = vadd.f32 %v1873, %v1851
        %v1875 = vadd.f32 %v1874, %v1853
        %v1876 = vadd.f32 %v1875, %v1855
        %v1877 = vadd.f32 %v1876, %v1857
        %v1878 = vadd.f32 %v1877, %v1859
        %v1879 = vadd.f32 %v1878, %v1861
        %v1880 = vadd.f32 %v1879, %v1863
        %v1881 = vadd.f32 %v1880, %v1865
        %v1882 = vrot.slane %v1881, 4
        %v1883 = vadd.f32 %v1881, %v1882
        %v1884 = vrot.slane %v1883, 2
        %v1885 = vadd.f32 %v1883, %v1884
        %v1886 = vrot.slane %v1885, 1
        %v1887 = vadd.f32 %v1885, %v1886
        %v1888 = vadd.f32 %v1836, %v1838
        %v1889 = vadd.f32 %v1888, %v1840
        %v1890 = vadd.f32 %v1889, %v1842
        %v1891 = vadd.f32 %v1890, %v1844
        %v1892 = vadd.f32 %v1891, %v1846
        %v1893 = vadd.f32 %v1892, %v1848
        %v1894 = vadd.f32 %v1893, %v1850
        %v1895 = vadd.f32 %v1894, %v1852
        %v1896 = vadd.f32 %v1895, %v1854
        %v1897 = vadd.f32 %v1896, %v1856
        %v1898 = vadd.f32 %v1897, %v1858
        %v1899 = vadd.f32 %v1898, %v1860
        %v1900 = vadd.f32 %v1899, %v1862
        %v1901 = vadd.f32 %v1900, %v1864
        %v1902 = vadd.f32 %v1901, %v1866
        %v1903 = vrot.slane %v1902, 4
        %v1904 = vadd.f32 %v1902, %v1903
        %v1905 = vrot.slane %v1904, 2
        %v1906 = vadd.f32 %v1904, %v1905
        %v1907 = vrot.slane %v1906, 1
        %v1908 = vadd.f32 %v1906, %v1907
        %v1909 = vmul.f32 %v1887, %v899
        %v1910 = vmul.f32 %v1908, %v899
        %v1911 = vmul.f32 %v1833, %v1833
        %v1912 = vmul.f32 %v1834, %v1834
        %v1913 = vsub.f32 %v1909, %v1911
        %v1914 = vsub.f32 %v1910, %v1912
        %v1915 = vmax.f32 %v1913, 0.0
        %v1916 = vmax.f32 %v1914, 0.0
        %v1917 = vsub.f32 %v1713, %v1833
        %v1918 = vsub.f32 %v1715, %v1834
        %v1919 = vsub.f32 %v1717, %v1833
        %v1920 = vsub.f32 %v1719, %v1834
        %v1921 = vsub.f32 %v1723, %v1833
        %v1922 = vsub.f32 %v1725, %v1834
        %v1923 = vsub.f32 %v1727, %v1833
        %v1924 = vsub.f32 %v1729, %v1834
        %v1925 = vsub.f32 %v1733, %v1833
        %v1926 = vsub.f32 %v1735, %v1834
        %v1927 = vsub.f32 %v1737, %v1833
        %v1928 = vsub.f32 %v1739, %v1834
        %v1929 = vsub.f32 %v1743, %v1833
        %v1930 = vsub.f32 %v1745, %v1834
        %v1931 = vsub.f32 %v1747, %v1833
        %v1932 = vsub.f32 %v1749, %v1834
        %v1933 = vsub.f32 %v1753, %v1833
        %v1934 = vsub.f32 %v1755, %v1834
        %v1935 = vsub.f32 %v1757, %v1833
        %v1936 = vsub.f32 %v1759, %v1834
        %v1937 = vsub.f32 %v1763, %v1833
        %v1938 = vsub.f32 %v1765, %v1834
        %v1939 = vsub.f32 %v1767, %v1833
        %v1940 = vsub.f32 %v1769, %v1834
        %v1941 = vsub.f32 %v1773, %v1833
        %v1942 = vsub.f32 %v1775, %v1834
        %v1943 = vsub.f32 %v1777, %v1833
        %v1944 = vsub.f32 %v1779, %v1834
        %v1945 = vsub.f32 %v1783, %v1833
        %v1946 = vsub.f32 %v1785, %v1834
        %v1947 = vsub.f32 %v1787, %v1833
        %v1948 = vsub.f32 %v1789, %v1834
        %v1949 = vadd.f32 %v1915, 1e-05
        %v1950 = vadd.f32 %v1916, 1e-05
        %v1951 = vrsqrt.pop %v1949
        %v1952 = vrsqrt.pop %v1950
        %v1953 = vmul.f32 %v1917, %v1951
        %v1954 = vmul.f32 %v1918, %v1952
        %v1955 = vmul.f32 %v1919, %v1951
        %v1956 = vmul.f32 %v1920, %v1952
        %v1957 = vmul.f32 %v1921, %v1951
        %v1958 = vmul.f32 %v1922, %v1952
        %v1959 = vmul.f32 %v1923, %v1951
        %v1960 = vmul.f32 %v1924, %v1952
        %v1961 = vmul.f32 %v1925, %v1951
        %v1962 = vmul.f32 %v1926, %v1952
        %v1963 = vmul.f32 %v1927, %v1951
        %v1964 = vmul.f32 %v1928, %v1952
        %v1965 = vmul.f32 %v1929, %v1951
        %v1966 = vmul.f32 %v1930, %v1952
        %v1967 = vmul.f32 %v1931, %v1951
        %v1968 = vmul.f32 %v1932, %v1952
        %v1969 = vmul.f32 %v1933, %v1951
        %v1970 = vmul.f32 %v1934, %v1952
        %v1971 = vmul.f32 %v1935, %v1951
        %v1972 = vmul.f32 %v1936, %v1952
        %v1973 = vmul.f32 %v1937, %v1951
        %v1974 = vmul.f32 %v1938, %v1952
        %v1975 = vmul.f32 %v1939, %v1951
        %v1976 = vmul.f32 %v1940, %v1952
        %v1977 = vmul.f32 %v1941, %v1951
        %v1978 = vmul.f32 %v1942, %v1952
        %v1979 = vmul.f32 %v1943, %v1951
        %v1980 = vmul.f32 %v1944, %v1952
        %v1981 = vmul.f32 %v1945, %v1951
        %v1982 = vmul.f32 %v1946, %v1952
        %v1983 = vmul.f32 %v1947, %v1951
        %v1984 = vmul.f32 %v1948, %v1952
        %v1985 = vxor.u32 %v1954, 2147483648
        %v1986 = vxor.u32 %v1956, 2147483648
        %v1987 = vxor.u32 %v1958, 2147483648
        %v1988 = vxor.u32 %v1960, 2147483648
        %v1989 = vxor.u32 %v1962, 2147483648
        %v1990 = vxor.u32 %v1964, 2147483648
        %v1991 = vxor.u32 %v1966, 2147483648
        %v1992 = vxor.u32 %v1968, 2147483648
        %v1993 = vxor.u32 %v1970, 2147483648
        %v1994 = vxor.u32 %v1972, 2147483648
        %v1995 = vxor.u32 %v1974, 2147483648
        %v1996 = vxor.u32 %v1976, 2147483648
        %v1997 = vxor.u32 %v1978, 2147483648
        %v1998 = vxor.u32 %v1980, 2147483648
        %v1999 = vxor.u32 %v1982, 2147483648
        %v2000 = vxor.u32 %v1984, 2147483648
        %v2001 = vmul.f32 %v1985, 1.442695
        %v2002 = vpow.pop %v2001
        %v2003 = vmul.f32 %v1986, 1.442695
        %v2004 = vpow.pop %v2003
        %v2005 = vmul.f32 %v1987, 1.442695
        %v2006 = vpow.pop %v2005
        %v2007 = vmul.f32 %v1988, 1.442695
        %v2008 = vpow.pop %v2007
        %v2009 = vmul.f32 %v1989, 1.442695
        %v2010 = vpow.pop %v2009
        %v2011 = vmul.f32 %v1990, 1.442695
        %v2012 = vpow.pop %v2011
        %v2013 = vmul.f32 %v1991, 1.442695
        %v2014 = vpow.pop %v2013
        %v2015 = vmul.f32 %v1992, 1.442695
        %v2016 = vpow.pop %v2015
        %v2017 = vmul.f32 %v1993, 1.442695
        %v2018 = vpow.pop %v2017
        %v2019 = vmul.f32 %v1994, 1.442695
        %v2020 = vpow.pop %v2019
        %v2021 = vmul.f32 %v1995, 1.442695
        %v2022 = vpow.pop %v2021
        %v2023 = vmul.f32 %v1996, 1.442695
        %v2024 = vpow.pop %v2023
        %v2025 = vmul.f32 %v1997, 1.442695
        %v2026 = vpow.pop %v2025
        %v2027 = vmul.f32 %v1998, 1.442695
        %v2028 = vpow.pop %v2027
        %v2029 = vmul.f32 %v1999, 1.442695
        %v2030 = vpow.pop %v2029
        %v2031 = vmul.f32 %v2000, 1.442695
        %v2032 = vpow.pop %v2031
        %v2033 = vadd.f32 %v2002, 1.0
        %v2034 = vadd.f32 %v2004, 1.0
        %v2035 = vadd.f32 %v2006, 1.0
        %v2036 = vadd.f32 %v2008, 1.0
        %v2037 = vadd.f32 %v2010, 1.0
        %v2038 = vadd.f32 %v2012, 1.0
        %v2039 = vadd.f32 %v2014, 1.0
        %v2040 = vadd.f32 %v2016, 1.0
        %v2041 = vadd.f32 %v2018, 1.0
        %v2042 = vadd.f32 %v2020, 1.0
        %v2043 = vadd.f32 %v2022, 1.0
        %v2044 = vadd.f32 %v2024, 1.0
        %v2045 = vadd.f32 %v2026, 1.0
        %v2046 = vadd.f32 %v2028, 1.0
        %v2047 = vadd.f32 %v2030, 1.0
        %v2048 = vadd.f32 %v2032, 1.0
        %v2049 = vrcp.pop %v2033
        %v2050 = vmul.f32 1.0, %v2049
        %v2051 = vrcp.pop %v2034
        %v2052 = vmul.f32 1.0, %v2051
        %v2053 = vrcp.pop %v2035
        %v2054 = vmul.f32 1.0, %v2053
        %v2055 = vrcp.pop %v2036
        %v2056 = vmul.f32 1.0, %v2055
        %v2057 = vrcp.pop %v2037
        %v2058 = vmul.f32 1.0, %v2057
        %v2059 = vrcp.pop %v2038
        %v2060 = vmul.f32 1.0, %v2059
        %v2061 = vrcp.pop %v2039
        %v2062 = vmul.f32 1.0, %v2061
        %v2063 = vrcp.pop %v2040
        %v2064 = vmul.f32 1.0, %v2063
        %v2065 = vrcp.pop %v2041
        %v2066 = vmul.f32 1.0, %v2065
        %v2067 = vrcp.pop %v2042
        %v2068 = vmul.f32 1.0, %v2067
        %v2069 = vrcp.pop %v2043
        %v2070 = vmul.f32 1.0, %v2069
        %v2071 = vrcp.pop %v2044
        %v2072 = vmul.f32 1.0, %v2071
        %v2073 = vrcp.pop %v2045
        %v2074 = vmul.f32 1.0, %v2073
        %v2075 = vrcp.pop %v2046
        %v2076 = vmul.f32 1.0, %v2075
        %v2077 = vrcp.pop %v2047
        %v2078 = vmul.f32 1.0, %v2077
        %v2079 = vrcp.pop %v2048
        %v2080 = vmul.f32 1.0, %v2079
        %v2081 = vmul.f32 %v1953, %v2050
        %v2082 = vmul.f32 %v1955, %v2052
        %v2083 = vmul.f32 %v1957, %v2054
        %v2084 = vmul.f32 %v1959, %v2056
        %v2085 = vmul.f32 %v1961, %v2058
        %v2086 = vmul.f32 %v1963, %v2060
        %v2087 = vmul.f32 %v1965, %v2062
        %v2088 = vmul.f32 %v1967, %v2064
        %v2089 = vmul.f32 %v1969, %v2066
        %v2090 = vmul.f32 %v1971, %v2068
        %v2091 = vmul.f32 %v1973, %v2070
        %v2092 = vmul.f32 %v1975, %v2072
        %v2093 = vmul.f32 %v1977, %v2074
        %v2094 = vmul.f32 %v1979, %v2076
        %v2095 = vmul.f32 %v1981, %v2078
        %v2096 = vmul.f32 %v1983, %v2080
        %v2097 = vadd.f32 %v1630, %v2081
        %v2098 = vadd.f32 %v1631, %v2082
        %v2099 = vadd.f32 %v1632, %v2083
        %v2100 = vadd.f32 %v1633, %v2084
        %v2101 = vadd.f32 %v1634, %v2085
        %v2102 = vadd.f32 %v1635, %v2086
        %v2103 = vadd.f32 %v1636, %v2087
        %v2104 = vadd.f32 %v1637, %v2088
        %v2105 = vadd.f32 %v1638, %v2089
        %v2106 = vadd.f32 %v1639, %v2090
        %v2107 = vadd.f32 %v1640, %v2091
        %v2108 = vadd.f32 %v1641, %v2092
        %v2109 = vadd.f32 %v1642, %v2093
        %v2110 = vadd.f32 %v1643, %v2094
        %v2111 = vadd.f32 %v1644, %v2095
        %v2112 = vadd.f32 %v1645, %v2096
        %v2113 = vmul.f32 %v2097, 0.70710677
        %v2114 = vmul.f32 %v2098, 0.70710677
        %v2115 = vmul.f32 %v2099, 0.70710677
        %v2116 = vmul.f32 %v2100, 0.70710677
        %v2117 = vmul.f32 %v2101, 0.70710677
        %v2118 = vmul.f32 %v2102, 0.70710677
        %v2119 = vmul.f32 %v2103, 0.70710677
        %v2120 = vmul.f32 %v2104, 0.70710677
        %v2121 = vmul.f32 %v2105, 0.70710677
        %v2122 = vmul.f32 %v2106, 0.70710677
        %v2123 = vmul.f32 %v2107, 0.70710677
        %v2124 = vmul.f32 %v2108, 0.70710677
        %v2125 = vmul.f32 %v2109, 0.70710677
        %v2126 = vmul.f32 %v2110, 0.70710677
        %v2127 = vmul.f32 %v2111, 0.70710677
        %v2128 = vmul.f32 %v2112, 0.70710677
        // Predicated region
        $region152: #{feat_transformer.1} parent=27 // pred_check
          %p2129 = pneg %p149
        $region153: #{feat_transformer.1} parent=27 // pred_check_branch
          %2131 = sbr.rel (%p2129) target = $region155
        $region154: #{feat_transformer.1} parent=27 // pred_region
          %s2132 = scalar_lea.sflag [#allocation5], 2
          %s2133 = smul.u32 4, 16
          %s2134 = smul.u32 %s2133, 2
          %s2135 = sshll.u32 %s2134, 4
          %2136 = dma.done %s2132, %s2135
        $region155: #{feat_transformer.1} parent=27 // pred_fallthru
          _
        %v2137 = vld [vmem:[#allocation4] sm:$0xff]
        %v2138 = vld [vmem:[#allocation4 + $0x8] sm:$0xff]
        %v2139 = vld [vmem:[#allocation4 + $0x10] sm:$0xff]
        %v2140 = vld [vmem:[#allocation4 + $0x18] sm:$0xff]
        %v2141 = vld [vmem:[#allocation4 + $0x20] sm:$0xff]
        %v2142 = vld [vmem:[#allocation4 + $0x28] sm:$0xff]
        %v2143 = vld [vmem:[#allocation4 + $0x30] sm:$0xff]
        %v2144 = vld [vmem:[#allocation4 + $0x38] sm:$0xff]
        %v2145 = vld [vmem:[#allocation4 + $0x40] sm:$0xff]
        %v2146 = vld [vmem:[#allocation4 + $0x48] sm:$0xff]
        %v2147 = vld [vmem:[#allocation4 + $0x50] sm:$0xff]
        %v2148 = vld [vmem:[#allocation4 + $0x58] sm:$0xff]
        %v2149 = vld [vmem:[#allocation4 + $0x60] sm:$0xff]
        %v2150 = vld [vmem:[#allocation4 + $0x68] sm:$0xff]
        %v2151 = vld [vmem:[#allocation4 + $0x70] sm:$0xff]
        %v2152 = vld [vmem:[#allocation4 + $0x78] sm:$0xff]
        %v2153 = vpack.c.bf16 %v2114, %v2113
        %v2154 = vpack.c.bf16 %v2116, %v2115
        %v2155 = vpack.c.bf16 %v2118, %v2117
        %v2156 = vpack.c.bf16 %v2120, %v2119
        %v2157 = vpack.c.bf16 %v2122, %v2121
        %v2158 = vpack.c.bf16 %v2124, %v2123
        %v2159 = vpack.c.bf16 %v2126, %v2125
        %v2160 = vpack.c.bf16 %v2128, %v2127
        %2161 = vmatprep.subr.bf16.mxu0 %v2138
        %2162 = vmatpush1.bf16.msra.mxu0 %v2137
        %2163 = vmatprep.subr.bf16.mxu0 %v2140
        %2164 = vmatpush1.bf16.msra.mxu0 %v2139
        %2165 = vmatprep.subr.bf16.mxu0 %v2142
        %2166 = vmatpush1.bf16.msra.mxu0 %v2141
        %2167 = vmatprep.subr.bf16.mxu0 %v2144
        %2168 = vmatpush1.bf16.msra.mxu0 %v2143
        %2169 = vmatprep.subr.bf16.mxu0 %v2146
        %2170 = vmatpush1.bf16.msra.mxu0 %v2145
        %2171 = vmatprep.subr.bf16.mxu0 %v2148
        %2172 = vmatpush1.bf16.msra.mxu0 %v2147
        %2173 = vmatprep.subr.bf16.mxu0 %v2150
        %2174 = vmatpush1.bf16.msra.mxu0 %v2149
        %2175 = vmatprep.subr.bf16.mxu0 %v2152
        %2176 = vmatpush1.bf16.msra.mxu0 %v2151
        %2177 = vmatprep.subr.bf16.mxu0 0
        %2178 = vmatpush1.bf16.msra.mxu0 0
        %2179 = vmatprep.subr.bf16.mxu0 0
        %2180 = vmatpush1.bf16.msra.mxu0 0
        %2181 = vmatprep.subr.bf16.mxu0 0
        %2182 = vmatpush1.bf16.msra.mxu0 0
        %2183 = vmatprep.subr.bf16.mxu0 0
        %2184 = vmatpush1.bf16.msra.mxu0 0
        %2185 = vmatprep.subr.bf16.mxu0 0
        %2186 = vmatpush1.bf16.msra.mxu0 0
        %2187 = vmatprep.subr.bf16.mxu0 0
        %2188 = vmatpush1.bf16.msra.mxu0 0
        %2189 = vmatprep.subr.bf16.mxu0 0
        %2190 = vmatpush1.bf16.msra.mxu0 0
        %2191 = vmatprep.subr.bf16.mxu0 0
        %2192 = vmatpush1.bf16.msra.mxu0 0
        %2193 = vmatprep.mubr.bf16.mxu0 0
        %2194 = vmatmul.mubr.bf16.gmra.mrb[0].mxu0 %v2153
        %v2195 = vpop.f32.mrb[0].mxu0
        %v2196 = vadd.f32 0.0, %v2195
        %v2197 = vpop.f32.mrb[0].mxu0
        %v2198 = vadd.f32 0.0, %v2197
        %v2199 = vpop.f32.mrb[0].mxu0
        %v2200 = vadd.f32 0.0, %v2199
        %v2201 = vpop.f32.mrb[0].mxu0
        %v2202 = vadd.f32 0.0, %v2201
        %2203 = vmatprep.mubr.bf16.mxu0 0
        %2204 = vmatmul.mubr.bf16.gmra.mrb[0].mxu0 %v2154
        %v2205 = vpop.f32.mrb[0].mxu0
        %v2206 = vadd.f32 0.0, %v2205
        %v2207 = vpop.f32.mrb[0].mxu0
        %v2208 = vadd.f32 0.0, %v2207
        %v2209 = vpop.f32.mrb[0].mxu0
        %v2210 = vadd.f32 0.0, %v2209
        %v2211 = vpop.f32.mrb[0].mxu0
        %v2212 = vadd.f32 0.0, %v2211
        %2213 = vmatprep.mubr.bf16.mxu0 0
        %2214 = vmatmul.mubr.bf16.gmra.mrb[0].mxu0 %v2155
        %v2215 = vpop.f32.mrb[0].mxu0
        %v2216 = vadd.f32 0.0, %v2215
        %v2217 = vpop.f32.mrb[0].mxu0
        %v2218 = vadd.f32 0.0, %v2217
        %v2219 = vpop.f32.mrb[0].mxu0
        %v2220 = vadd.f32 0.0, %v2219
        %v2221 = vpop.f32.mrb[0].mxu0
        %v2222 = vadd.f32 0.0, %v2221
        %2223 = vmatprep.mubr.bf16.mxu0 0
        %2224 = vmatmul.mubr.bf16.gmra.mrb[0].mxu0 %v2156
        %v2225 = vpop.f32.mrb[0].mxu0
        %v2226 = vadd.f32 0.0, %v2225
        %v2227 = vpop.f32.mrb[0].mxu0
        %v2228 = vadd.f32 0.0, %v2227
        %v2229 = vpop.f32.mrb[0].mxu0
        %v2230 = vadd.f32 0.0, %v2229
        %v2231 = vpop.f32.mrb[0].mxu0
        %v2232 = vadd.f32 0.0, %v2231
        %2233 = vmatprep.mubr.bf16.mxu0 0
        %2234 = vmatmul.mubr.bf16.gmra.mrb[0].mxu0 %v2157
        %v2235 = vpop.f32.mrb[0].mxu0
        %v2236 = vadd.f32 0.0, %v2235
        %v2237 = vpop.f32.mrb[0].mxu0
        %v2238 = vadd.f32 0.0, %v2237
        %v2239 = vpop.f32.mrb[0].mxu0
        %v2240 = vadd.f32 0.0, %v2239
        %v2241 = vpop.f32.mrb[0].mxu0
        %v2242 = vadd.f32 0.0, %v2241
        %2243 = vmatprep.mubr.bf16.mxu0 0
        %2244 = vmatmul.mubr.bf16.gmra.mrb[0].mxu0 %v2158
        %v2245 = vpop.f32.mrb[0].mxu0
        %v2246 = vadd.f32 0.0, %v2245
        %v2247 = vpop.f32.mrb[0].mxu0
        %v2248 = vadd.f32 0.0, %v2247
        %v2249 = vpop.f32.mrb[0].mxu0
        %v2250 = vadd.f32 0.0, %v2249
        %v2251 = vpop.f32.mrb[0].mxu0
        %v2252 = vadd.f32 0.0, %v2251
        %2253 = vmatprep.mubr.bf16.mxu0 0
        %2254 = vmatmul.mubr.bf16.gmra.mrb[0].mxu0 %v2159
        %v2255 = vpop.f32.mrb[0].mxu0
        %v2256 = vadd.f32 0.0, %v2255
        %v2257 = vpop.f32.mrb[0].mxu0
        %v2258 = vadd.f32 0.0, %v2257
        %v2259 = vpop.f32.mrb[0].mxu0
        %v2260 = vadd.f32 0.0, %v2259
        %v2261 = vpop.f32.mrb[0].mxu0
        %v2262 = vadd.f32 0.0, %v2261
        %2263 = vmatprep.mubr.bf16.mxu0 0
        %2264 = vmatmul.mubr.bf16.gmra.mrb[0].mxu0 %v2160
        %v2265 = vpop.f32.mrb[0].mxu0
        %v2266 = vadd.f32 0.0, %v2265
        %v2267 = vpop.f32.mrb[0].mxu0
        %v2268 = vadd.f32 0.0, %v2267
        %v2269 = vpop.f32.mrb[0].mxu0
        %v2270 = vadd.f32 0.0, %v2269
        %v2271 = vpop.f32.mrb[0].mxu0
        %v2272 = vadd.f32 0.0, %v2271
        %2273 = vdwg.mxu0
        %v2274 = vadd.f32 %v2196, %v2200
        %v2275 = vadd.f32 %v2274, %v2206
        %v2276 = vadd.f32 %v2275, %v2210
        %v2277 = vadd.f32 %v2276, %v2216
        %v2278 = vadd.f32 %v2277, %v2220
        %v2279 = vadd.f32 %v2278, %v2226
        %v2280 = vadd.f32 %v2279, %v2230
        %v2281 = vadd.f32 %v2280, %v2236
        %v2282 = vadd.f32 %v2281, %v2240
        %v2283 = vadd.f32 %v2282, %v2246
        %v2284 = vadd.f32 %v2283, %v2250
        %v2285 = vadd.f32 %v2284, %v2256
        %v2286 = vadd.f32 %v2285, %v2260
        %v2287 = vadd.f32 %v2286, %v2266
        %v2288 = vadd.f32 %v2287, %v2270
        %v2289 = vrot.slane %v2288, 4
        %v2290 = vadd.f32 %v2288, %v2289
        %v2291 = vrot.slane %v2290, 2
        %v2292 = vadd.f32 %v2290, %v2291
        %v2293 = vrot.slane %v2292, 1
        %v2294 = vadd.f32 %v2292, %v2293
        %v2295 = vadd.f32 %v2198, %v2202
        %v2296 = vadd.f32 %v2295, %v2208
        %v2297 = vadd.f32 %v2296, %v2212
        %v2298 = vadd.f32 %v2297, %v2218
        %v2299 = vadd.f32 %v2298, %v2222
        %v2300 = vadd.f32 %v2299, %v2228
        %v2301 = vadd.f32 %v2300, %v2232
        %v2302 = vadd.f32 %v2301, %v2238
        %v2303 = vadd.f32 %v2302, %v2242
        %v2304 = vadd.f32 %v2303, %v2248
        %v2305 = vadd.f32 %v2304, %v2252
        %v2306 = vadd.f32 %v2305, %v2258
        %v2307 = vadd.f32 %v2306, %v2262
        %v2308 = vadd.f32 %v2307, %v2268
        %v2309 = vadd.f32 %v2308, %v2272
        %v2310 = vrot.slane %v2309, 4
        %v2311 = vadd.f32 %v2309, %v2310
        %v2312 = vrot.slane %v2311, 2
        %v2313 = vadd.f32 %v2311, %v2312
        %v2314 = vrot.slane %v2313, 1
        %v2315 = vadd.f32 %v2313, %v2314
        %v2316 = vmul.f32 %v2294, %v899
        %v2317 = vmul.f32 %v2315, %v899
        %v2318 = vmul.f32 %v2196, %v2196
        %v2319 = vmul.f32 %v2198, %v2198
        %v2320 = vmul.f32 %v2200, %v2200
        %v2321 = vmul.f32 %v2202, %v2202
        %v2322 = vmul.f32 %v2206, %v2206
        %v2323 = vmul.f32 %v2208, %v2208
        %v2324 = vmul.f32 %v2210, %v2210
        %v2325 = vmul.f32 %v2212, %v2212
        %v2326 = vmul.f32 %v2216, %v2216
        %v2327 = vmul.f32 %v2218, %v2218
        %v2328 = vmul.f32 %v2220, %v2220
        %v2329 = vmul.f32 %v2222, %v2222
        %v2330 = vmul.f32 %v2226, %v2226
        %v2331 = vmul.f32 %v2228, %v2228
        %v2332 = vmul.f32 %v2230, %v2230
        %v2333 = vmul.f32 %v2232, %v2232
        %v2334 = vmul.f32 %v2236, %v2236
        %v2335 = vmul.f32 %v2238, %v2238
        %v2336 = vmul.f32 %v2240, %v2240
        %v2337 = vmul.f32 %v2242, %v2242
        %v2338 = vmul.f32 %v2246, %v2246
        %v2339 = vmul.f32 %v2248, %v2248
        %v2340 = vmul.f32 %v2250, %v2250
        %v2341 = vmul.f32 %v2252, %v2252
        %v2342 = vmul.f32 %v2256, %v2256
        %v2343 = vmul.f32 %v2258, %v2258
        %v2344 = vmul.f32 %v2260, %v2260
        %v2345 = vmul.f32 %v2262, %v2262
        %v2346 = vmul.f32 %v2266, %v2266
        %v2347 = vmul.f32 %v2268, %v2268
        %v2348 = vmul.f32 %v2270, %v2270
        %v2349 = vmul.f32 %v2272, %v2272
        %v2350 = vadd.f32 %v2318, %v2320
        %v2351 = vadd.f32 %v2350, %v2322
        %v2352 = vadd.f32 %v2351, %v2324
        %v2353 = vadd.f32 %v2352, %v2326
        %v2354 = vadd.f32 %v2353, %v2328
        %v2355 = vadd.f32 %v2354, %v2330
        %v2356 = vadd.f32 %v2355, %v2332
        %v2357 = vadd.f32 %v2356, %v2334
        %v2358 = vadd.f32 %v2357, %v2336
        %v2359 = vadd.f32 %v2358, %v2338
        %v2360 = vadd.f32 %v2359, %v2340
        %v2361 = vadd.f32 %v2360, %v2342
        %v2362 = vadd.f32 %v2361, %v2344
        %v2363 = vadd.f32 %v2362, %v2346
        %v2364 = vadd.f32 %v2363, %v2348
        %v2365 = vrot.slane %v2364, 4
        %v2366 = vadd.f32 %v2364, %v2365
        %v2367 = vrot.slane %v2366, 2
        %v2368 = vadd.f32 %v2366, %v2367
        %v2369 = vrot.slane %v2368, 1
        %v2370 = vadd.f32 %v2368, %v2369
        %v2371 = vadd.f32 %v2319, %v2321
        %v2372 = vadd.f32 %v2371, %v2323
        %v2373 = vadd.f32 %v2372, %v2325
        %v2374 = vadd.f32 %v2373, %v2327
        %v2375 = vadd.f32 %v2374, %v2329
        %v2376 = vadd.f32 %v2375, %v2331
        %v2377 = vadd.f32 %v2376, %v2333
        %v2378 = vadd.f32 %v2377, %v2335
        %v2379 = vadd.f32 %v2378, %v2337
        %v2380 = vadd.f32 %v2379, %v2339
        %v2381 = vadd.f32 %v2380, %v2341
        %v2382 = vadd.f32 %v2381, %v2343
        %v2383 = vadd.f32 %v2382, %v2345
        %v2384 = vadd.f32 %v2383, %v2347
        %v2385 = vadd.f32 %v2384, %v2349
        %v2386 = vrot.slane %v2385, 4
        %v2387 = vadd.f32 %v2385, %v2386
        %v2388 = vrot.slane %v2387, 2
        %v2389 = vadd.f32 %v2387, %v2388
        %v2390 = vrot.slane %v2389, 1
        %v2391 = vadd.f32 %v2389, %v2390
        %v2392 = vmul.f32 %v2370, %v899
        %v2393 = vmul.f32 %v2391, %v899
        %v2394 = vmul.f32 %v2316, %v2316
        %v2395 = vmul.f32 %v2317, %v2317
        %v2396 = vsub.f32 %v2392, %v2394
        %v2397 = vsub.f32 %v2393, %v2395
        %v2398 = vmax.f32 %v2396, 0.0
        %v2399 = vmax.f32 %v2397, 0.0
        %v2400 = vsub.f32 %v2196, %v2316
        %v2401 = vsub.f32 %v2198, %v2317
        %v2402 = vsub.f32 %v2200, %v2316
        %v2403 = vsub.f32 %v2202, %v2317
        %v2404 = vsub.f32 %v2206, %v2316
        %v2405 = vsub.f32 %v2208, %v2317
        %v2406 = vsub.f32 %v2210, %v2316
        %v2407 = vsub.f32 %v2212, %v2317
        %v2408 = vsub.f32 %v2216, %v2316
        %v2409 = vsub.f32 %v2218, %v2317
        %v2410 = vsub.f32 %v2220, %v2316
        %v2411 = vsub.f32 %v2222, %v2317
        %v2412 = vsub.f32 %v2226, %v2316
        %v2413 = vsub.f32 %v2228, %v2317
        %v2414 = vsub.f32 %v2230, %v2316
        %v2415 = vsub.f32 %v2232, %v2317
        %v2416 = vsub.f32 %v2236, %v2316
        %v2417 = vsub.f32 %v2238, %v2317
        %v2418 = vsub.f32 %v2240, %v2316
        %v2419 = vsub.f32 %v2242, %v2317
        %v2420 = vsub.f32 %v2246, %v2316
        %v2421 = vsub.f32 %v2248, %v2317
        %v2422 = vsub.f32 %v2250, %v2316
        %v2423 = vsub.f32 %v2252, %v2317
        %v2424 = vsub.f32 %v2256, %v2316
        %v2425 = vsub.f32 %v2258, %v2317
        %v2426 = vsub.f32 %v2260, %v2316
        %v2427 = vsub.f32 %v2262, %v2317
        %v2428 = vsub.f32 %v2266, %v2316
        %v2429 = vsub.f32 %v2268, %v2317
        %v2430 = vsub.f32 %v2270, %v2316
        %v2431 = vsub.f32 %v2272, %v2317
        %v2432 = vadd.f32 %v2398, 1e-05
        %v2433 = vadd.f32 %v2399, 1e-05
        %v2434 = vrsqrt.pop %v2432
        %v2435 = vrsqrt.pop %v2433
        %v2436 = vmul.f32 %v2400, %v2434
        %v2437 = vmul.f32 %v2401, %v2435
        %v2438 = vmul.f32 %v2402, %v2434
        %v2439 = vmul.f32 %v2403, %v2435
        %v2440 = vmul.f32 %v2404, %v2434
        %v2441 = vmul.f32 %v2405, %v2435
        %v2442 = vmul.f32 %v2406, %v2434
        %v2443 = vmul.f32 %v2407, %v2435
        %v2444 = vmul.f32 %v2408, %v2434
        %v2445 = vmul.f32 %v2409, %v2435
        %v2446 = vmul.f32 %v2410, %v2434
        %v2447 = vmul.f32 %v2411, %v2435
        %v2448 = vmul.f32 %v2412, %v2434
        %v2449 = vmul.f32 %v2413, %v2435
        %v2450 = vmul.f32 %v2414, %v2434
        %v2451 = vmul.f32 %v2415, %v2435
        %v2452 = vmul.f32 %v2416, %v2434
        %v2453 = vmul.f32 %v2417, %v2435
        %v2454 = vmul.f32 %v2418, %v2434
        %v2455 = vmul.f32 %v2419, %v2435
        %v2456 = vmul.f32 %v2420, %v2434
        %v2457 = vmul.f32 %v2421, %v2435
        %v2458 = vmul.f32 %v2422, %v2434
        %v2459 = vmul.f32 %v2423, %v2435
        %v2460 = vmul.f32 %v2424, %v2434
        %v2461 = vmul.f32 %v2425, %v2435
        %v2462 = vmul.f32 %v2426, %v2434
        %v2463 = vmul.f32 %v2427, %v2435
        %v2464 = vmul.f32 %v2428, %v2434
        %v2465 = vmul.f32 %v2429, %v2435
        %v2466 = vmul.f32 %v2430, %v2434
        %v2467 = vmul.f32 %v2431, %v2435
        %v2468 = vxor.u32 %v2437, 2147483648
        %v2469 = vxor.u32 %v2439, 2147483648
        %v2470 = vxor.u32 %v2441, 2147483648
        %v2471 = vxor.u32 %v2443, 2147483648
        %v2472 = vxor.u32 %v2445, 2147483648
        %v2473 = vxor.u32 %v2447, 2147483648
        %v2474 = vxor.u32 %v2449, 2147483648
        %v2475 = vxor.u32 %v2451, 2147483648
        %v2476 = vxor.u32 %v2453, 2147483648
        %v2477 = vxor.u32 %v2455, 2147483648
        %v2478 = vxor.u32 %v2457, 2147483648
        %v2479 = vxor.u32 %v2459, 2147483648
        %v2480 = vxor.u32 %v2461, 2147483648
        %v2481 = vxor.u32 %v2463, 2147483648
        %v2482 = vxor.u32 %v2465, 2147483648
        %v2483 = vxor.u32 %v2467, 2147483648
        %v2484 = vmul.f32 %v2468, 1.442695
        %v2485 = vpow.pop %v2484
        %v2486 = vmul.f32 %v2469, 1.442695
        %v2487 = vpow.pop %v2486
        %v2488 = vmul.f32 %v2470, 1.442695
        %v2489 = vpow.pop %v2488
        %v2490 = vmul.f32 %v2471, 1.442695
        %v2491 = vpow.pop %v2490
        %v2492 = vmul.f32 %v2472, 1.442695
        %v2493 = vpow.pop %v2492
        %v2494 = vmul.f32 %v2473, 1.442695
        %v2495 = vpow.pop %v2494
        %v2496 = vmul.f32 %v2474, 1.442695
        %v2497 = vpow.pop %v2496
        %v2498 = vmul.f32 %v2475, 1.442695
        %v2499 = vpow.pop %v2498
        %v2500 = vmul.f32 %v2476, 1.442695
        %v2501 = vpow.pop %v2500
        %v2502 = vmul.f32 %v2477, 1.442695
        %v2503 = vpow.pop %v2502
        %v2504 = vmul.f32 %v2478, 1.442695
        %v2505 = vpow.pop %v2504
        %v2506 = vmul.f32 %v2479, 1.442695
        %v2507 = vpow.pop %v2506
        %v2508 = vmul.f32 %v2480, 1.442695
        %v2509 = vpow.pop %v2508
        %v2510 = vmul.f32 %v2481, 1.442695
        %v2511 = vpow.pop %v2510
        %v2512 = vmul.f32 %v2482, 1.442695
        %v2513 = vpow.pop %v2512
        %v2514 = vmul.f32 %v2483, 1.442695
        %v2515 = vpow.pop %v2514
        %v2516 = vadd.f32 %v2485, 1.0
        %v2517 = vadd.f32 %v2487, 1.0
        %v2518 = vadd.f32 %v2489, 1.0
        %v2519 = vadd.f32 %v2491, 1.0
        %v2520 = vadd.f32 %v2493, 1.0
        %v2521 = vadd.f32 %v2495, 1.0
        %v2522 = vadd.f32 %v2497, 1.0
        %v2523 = vadd.f32 %v2499, 1.0
        %v2524 = vadd.f32 %v2501, 1.0
        %v2525 = vadd.f32 %v2503, 1.0
        %v2526 = vadd.f32 %v2505, 1.0
        %v2527 = vadd.f32 %v2507, 1.0
        %v2528 = vadd.f32 %v2509, 1.0
        %v2529 = vadd.f32 %v2511, 1.0
        %v2530 = vadd.f32 %v2513, 1.0
        %v2531 = vadd.f32 %v2515, 1.0
        %v2532 = vrcp.pop %v2516
        %v2533 = vmul.f32 1.0, %v2532
        %v2534 = vrcp.pop %v2517
        %v2535 = vmul.f32 1.0, %v2534
        %v2536 = vrcp.pop %v2518
        %v2537 = vmul.f32 1.0, %v2536
        %v2538 = vrcp.pop %v2519
        %v2539 = vmul.f32 1.0, %v2538
        %v2540 = vrcp.pop %v2520
        %v2541 = vmul.f32 1.0, %v2540
        %v2542 = vrcp.pop %v2521
        %v2543 = vmul.f32 1.0, %v2542
        %v2544 = vrcp.pop %v2522
        %v2545 = vmul.f32 1.0, %v2544
        %v2546 = vrcp.pop %v2523
        %v2547 = vmul.f32 1.0, %v2546
        %v2548 = vrcp.pop %v2524
        %v2549 = vmul.f32 1.0, %v2548
        %v2550 = vrcp.pop %v2525
        %v2551 = vmul.f32 1.0, %v2550
        %v2552 = vrcp.pop %v2526
        %v2553 = vmul.f32 1.0, %v2552
        %v2554 = vrcp.pop %v2527
        %v2555 = vmul.f32 1.0, %v2554
        %v2556 = vrcp.pop %v2528
        %v2557 = vmul.f32 1.0, %v2556
        %v2558 = vrcp.pop %v2529
        %v2559 = vmul.f32 1.0, %v2558
        %v2560 = vrcp.pop %v2530
        %v2561 = vmul.f32 1.0, %v2560
        %v2562 = vrcp.pop %v2531
        %v2563 = vmul.f32 1.0, %v2562
        %v2564 = vmul.f32 %v2436, %v2533
        %v2565 = vmul.f32 %v2438, %v2535
        %v2566 = vmul.f32 %v2440, %v2537
        %v2567 = vmul.f32 %v2442, %v2539
        %v2568 = vmul.f32 %v2444, %v2541
        %v2569 = vmul.f32 %v2446, %v2543
        %v2570 = vmul.f32 %v2448, %v2545
        %v2571 = vmul.f32 %v2450, %v2547
        %v2572 = vmul.f32 %v2452, %v2549
        %v2573 = vmul.f32 %v2454, %v2551
        %v2574 = vmul.f32 %v2456, %v2553
        %v2575 = vmul.f32 %v2458, %v2555
        %v2576 = vmul.f32 %v2460, %v2557
        %v2577 = vmul.f32 %v2462, %v2559
        %v2578 = vmul.f32 %v2464, %v2561
        %v2579 = vmul.f32 %v2466, %v2563
        %v2580 = vadd.f32 %v2113, %v2564
        %v2581 = vadd.f32 %v2114, %v2565
        %v2582 = vadd.f32 %v2115, %v2566
        %v2583 = vadd.f32 %v2116, %v2567
        %v2584 = vadd.f32 %v2117, %v2568
        %v2585 = vadd.f32 %v2118, %v2569
        %v2586 = vadd.f32 %v2119, %v2570
        %v2587 = vadd.f32 %v2120, %v2571
        %v2588 = vadd.f32 %v2121, %v2572
        %v2589 = vadd.f32 %v2122, %v2573
        %v2590 = vadd.f32 %v2123, %v2574
        %v2591 = vadd.f32 %v2124, %v2575
        %v2592 = vadd.f32 %v2125, %v2576
        %v2593 = vadd.f32 %v2126, %v2577
        %v2594 = vadd.f32 %v2127, %v2578
        %v2595 = vadd.f32 %v2128, %v2579
        %v2596 = vmul.f32 %v2580, 0.70710677
        %v2597 = vmul.f32 %v2581, 0.70710677
        %v2598 = vmul.f32 %v2582, 0.70710677
        %v2599 = vmul.f32 %v2583, 0.70710677
        %v2600 = vmul.f32 %v2584, 0.70710677
        %v2601 = vmul.f32 %v2585, 0.70710677
        %v2602 = vmul.f32 %v2586, 0.70710677
        %v2603 = vmul.f32 %v2587, 0.70710677
        %v2604 = vmul.f32 %v2588, 0.70710677
        %v2605 = vmul.f32 %v2589, 0.70710677
        %v2606 = vmul.f32 %v2590, 0.70710677
        %v2607 = vmul.f32 %v2591, 0.70710677
        %v2608 = vmul.f32 %v2592, 0.70710677
        %v2609 = vmul.f32 %v2593, 0.70710677
        %v2610 = vmul.f32 %v2594, 0.70710677
        %v2611 = vmul.f32 %v2595, 0.70710677
        %2612 = vst [vmem:[%s140] sm:$0xff] %v2596
        %2613 = vst [vmem:[%s140 + $0x8] sm:$0xff] %v2597
        %2614 = vst [vmem:[%s140 + $0x10] sm:$0xff] %v2598
        %2615 = vst [vmem:[%s140 + $0x18] sm:$0xff] %v2599
        %2616 = vst [vmem:[%s140 + $0x20] sm:$0xff] %v2600
        %2617 = vst [vmem:[%s140 + $0x28] sm:$0xff] %v2601
        %2618 = vst [vmem:[%s140 + $0x30] sm:$0xff] %v2602
        %2619 = vst [vmem:[%s140 + $0x38] sm:$0xff] %v2603
        %2620 = vst [vmem:[%s140 + $0x40] sm:$0xff] %v2604
        %2621 = vst [vmem:[%s140 + $0x48] sm:$0xff] %v2605
        %2622 = vst [vmem:[%s140 + $0x50] sm:$0xff] %v2606
        %2623 = vst [vmem:[%s140 + $0x58] sm:$0xff] %v2607
        %2624 = vst [vmem:[%s140 + $0x60] sm:$0xff] %v2608
        %2625 = vst [vmem:[%s140 + $0x68] sm:$0xff] %v2609
        %2626 = vst [vmem:[%s140 + $0x70] sm:$0xff] %v2610
        %2627 = vst [vmem:[%s140 + $0x78] sm:$0xff] %v2611
        %s2628 = sand.u32 %s74, 1
        %s2629 = scalar_lea.sflag [#allocation7], %s2628
        %s2630 = sand.u32 %s74, 1
        %s2631 = smul.addr %s2630, 128
        %s2632 = scalar_lea.vmem [#allocation6], %s2631
        // Predicated region
        $region156: #{feat_transformer.1} parent=27 // pred_check
          %p2633 = pneg %p84
        $region157: #{feat_transformer.1} parent=27 // pred_check_branch
          %2635 = sbr.rel (%p2633) target = $region159
        $region158: #{feat_transformer.1} parent=27 // pred_region
          %s2636 = smul.u32 16, %s19
          %s2638 = ssub.s32 2048, 2048
          %2639 = vsyncadd %s2629, %s2638
          %s2640 = smul.addr %s2636, 128
          %s2641 = scalar_lea.hbm %s5, %s2640
          %s2642 = sshll.u32 %s2632, 4
          %s2643 = int_to_ptr.vmem [resolvable:$true] %s2642
          %2648 = dma.vmem_to_hbm [thread:$0]  %s2643, 2048, %s2641, %s2629, 128, 128, 8
        $region159: #{feat_transformer.1} parent=27 // pred_fallthru
          _
      $region28: #{feat_transformer.1} parent=5 // pred_fallthru
        _
      %p2649 = scmp.le.s32.totalorder 2, %s14
      // Predicated region
      $region160: #{feat_transformer.1} parent=5 // pred_check
        %p2650 = pneg %p2649
      $region161: #{feat_transformer.1} parent=5 // pred_check_branch
        %2652 = sbr.rel (%p2650) target = $region163
      $region162: #{feat_transformer.1} parent=5 // pred_region
        %s2653 = ssub.s32 %s14, 2
        // Predicated region
        $region164: #{feat_transformer.1} parent=162 // pred_check
          %p2654 = pneg %p90
        $region165: #{feat_transformer.1} parent=162 // pred_check_branch
          %2656 = sbr.rel (%p2654) target = $region167
        $region166: #{feat_transformer.1} parent=162 // pred_region
          %s2657 = sand.u32 %s75, 1
          %s2658 = scalar_lea.sflag [#allocation7], %s2657
          %s2659 = sand.u32 %s75, 1
          %s2660 = smul.addr %s2659, 128
          %s2661 = scalar_lea.vmem [#allocation6], %s2660
          %2662 = dma.done %s2658, 2048
        $region167: #{feat_transformer.1} parent=162 // pred_fallthru
          _
      $region163: #{feat_transformer.1} parent=5 // pred_fallthru
        _
    $region6: #{feat_transformer.1} parent=1 // loop_footer
      %s18 = sadd.s32 1, %s14
    $region7: #{feat_transformer.1} parent=1 // loop_footer_branch
      %13 = sbr.rel target = $region3
    $region8: #{feat_transformer.1} parent=1 // loop_exit
      _
    %2663 = vsyncpa [#allocation7], 1
    %s2664 = scalar_lea.sflag [#allocation7], 1
    %2665 = vsyncpa %s2664, 1
  %2666 = vsyncmov [#allocation5]
  %s2667 = vpop.sfrf %2666
  %p2668 = scmp.eq.s32.totalorder %s2667, 0
  %p2669 = pneg %p2668
  %2671 = shalt.err (%p2669)
  %s2672 = scalar_lea.sflag [#allocation5], 1
  %2673 = vsyncmov %s2672
  %s2674 = vpop.sfrf %2673
  %p2675 = scmp.eq.s32.totalorder %s2674, 0
  %p2676 = pneg %p2675
  %2678 = shalt.err (%p2676)
  %s2679 = scalar_lea.sflag [#allocation5], 2
  %2680 = vsyncmov %s2679
  %s2681 = vpop.sfrf %2680
  %p2682 = scmp.eq.s32.totalorder %s2681, 0
  %p2683 = pneg %p2682
  %2685 = shalt.err (%p2683)

</llo_original>
